<compile_context>
chip_gen: v7x
topology: tpu7x:2x2x1
jax: 0.10.0
libtpu: 0.0.40
codegen_flags: <defaults>
</compile_context>

<pallas_src>
import functools

import jax
import jax.numpy as jnp
from jax import lax
from jax.experimental import pallas as pl
from jax.experimental.pallas import tpu as pltpu

# ---- synthetic "settings" (small) ----
EMBEDDING_SIZE = 32
BLOCK_SIZE = 8
N_HEADS = 4
HEAD_SIZE = 8            # N_HEADS * HEAD_SIZE == EMBEDDING_SIZE (required for residual)
N_DECODER_BLOCKS = 2
VOCAB_SIZE = 64
DROPOUT = 0.0            # eval mode: all Dropout layers are identity

LN_EPS = 1e-5


def _layernorm(x, g, b):
    mu = jnp.mean(x, axis=-1, keepdims=True)
    var = jnp.mean(jnp.square(x - mu), axis=-1, keepdims=True)
    return (x - mu) * lax.rsqrt(var + LN_EPS) * g + b


def gpt2_kernel(x_ref, wqkv_ref, wproj_ref, bproj_ref, g1_ref, b1_ref,
                w1_ref, bb1_ref, w2_ref, bb2_ref,
                gf_ref, bf_ref, wlm_ref, blm_ref,
                out_ref, *, B, T, H, hs):
    D = H * hs
    L = wqkv_ref.shape[0]
    BT = B * T

    x = x_ref[...]                                   # (B*T, D) f32, lives in vregs

    # ---- layer-invariant additive causal bias, built once: (1, H*T, T) ----
    row = lax.broadcasted_iota(jnp.int32, (H * T, T), 0)
    col = lax.broadcasted_iota(jnp.int32, (H * T, T), 1)
    bias_all = jnp.where(col <= row % T, 0.0, -1e9).astype(jnp.float32)[None]

    for l in range(L):                               # static unroll of the decoder stack
        g1 = g1_ref[l]                               # (1, D)
        b1 = b1_ref[l]                               # (1, D)

        # ---- attention branch: x = x + proj(multi_head(norm1(x))) ----
        xn = _layernorm(x, g1, b1)
        # one fused QKV matmul; columns laid out [Q(all heads) | K | V], Q pre-scaled
        qkv = jnp.dot(xn.astype(jnp.bfloat16), wqkv_ref[l],
                      preferred_element_type=jnp.float32)        # (BT, 3D)
        q = qkv[:, :D].reshape(B, T, D)                          # 3 wide 32-lane slices
        k = qkv[:, D:2 * D].reshape(B, T, D)
        v = qkv[:, 2 * D:].reshape(B, T, D)

        # per-head QK^T (MXU is >90% idle at this size; pushes are cheap),
        # stacked along sublanes so the softmax chain is issued only once.
        scores = [jnp.einsum('btd,bsd->bts',
                             q[:, :, h * hs:(h + 1) * hs].astype(jnp.bfloat16),
                             k[:, :, h * hs:(h + 1) * hs].astype(jnp.bfloat16),
                             preferred_element_type=jnp.float32)
                  for h in range(H)]
        s_all = jnp.concatenate(scores, axis=1) + bias_all       # (B, H*T, T)
        m = jnp.max(s_all, axis=-1, keepdims=True)
        p = jnp.exp(s_all - m)
        p = p * pl.reciprocal(jnp.sum(p, axis=-1, keepdims=True), approx=True)
        # dropout(p=DROPOUT) is identity in eval

        # per-head PV; head-concat folded into the output projection:
        #   cat_h @ Wproj == sum_h o_h @ Wproj[h*hs:(h+1)*hs, :]
        wproj = wproj_ref[l]                                     # (D, D) bf16
        attn = jnp.zeros((BT, D), jnp.float32)
        for h in range(H):
            o_h = jnp.einsum('bts,bsd->btd',
                             p[:, h * T:(h + 1) * T, :].astype(jnp.bfloat16),
                             v[:, :, h * hs:(h + 1) * hs].astype(jnp.bfloat16),
                             preferred_element_type=jnp.float32)  # (B, T, hs)
            attn = attn + jnp.dot(o_h.reshape(BT, hs).astype(jnp.bfloat16),
                                  wproj[h * hs:(h + 1) * hs, :],
                                  preferred_element_type=jnp.float32)
        x = x + attn + bproj_ref[l]

        # ---- MLP branch: x = x + mlp(norm1(x))  (reference reuses norm1; norm2 unused) ----
        xn2 = _layernorm(x, g1, b1)
        h1 = jnp.dot(xn2.astype(jnp.bfloat16), w1_ref[l],
                     preferred_element_type=jnp.float32) + bb1_ref[l]
        h1 = jnp.maximum(h1, 0.0)                                # ReLU
        mlp = jnp.dot(h1.astype(jnp.bfloat16), w2_ref[l],
                      preferred_element_type=jnp.float32) + bb2_ref[l]
        x = x + mlp

    # ---- final LayerNorm + lm_head (lane-dense 128-wide padded logits) ----
    xf = _layernorm(x, gf_ref[...], bf_ref[...])
    out_ref[...] = jnp.dot(xf.astype(jnp.bfloat16), wlm_ref[...],
                           preferred_element_type=jnp.float32) + blm_ref[...]


def _build_call(B, T, VPAD):
    BT = B * T
    kernel = functools.partial(gpt2_kernel, B=B, T=T, H=N_HEADS, hs=HEAD_SIZE)
    vmem = lambda: pl.BlockSpec(memory_space=pltpu.MemorySpace.VMEM)
    # No grid: everything (weights ~50 KB total + 16x32 activation) is VMEM
    # resident for the whole fused forward pass; single invocation, zero
    # per-step pipeline overhead.
    # TODO(synk): at real GPT-2 dims, switch back to a layer-streaming
    # BlockSpec grid on v7x (64 MiB VMEM) while keeping full residency on
    # v6e/v5e (128 MiB) via vmem_limit_bytes.
    return pl.pallas_call(
        kernel,
        out_shape=jax.ShapeDtypeStruct((BT, VPAD), jnp.float32),
        in_specs=[vmem() for _ in range(14)],
        out_specs=vmem(),
    )


def init_params(key):
    """Torch-layout-ish params (per-head to_qkv, per-block norms, etc.)."""
    D = EMBEDDING_SIZE
    ki = iter(jax.random.split(key, 64))

    def norm(shape, scale=0.02):
        return (scale * jax.random.normal(next(ki), shape)).astype(jnp.float32)

    params = {
        'tok_emb': norm((VOCAB_SIZE, D)),
        'pos_emb': norm((BLOCK_SIZE, D)),
        'blocks': [],
        'gf': jnp.ones((D,), jnp.float32),
        'bf': jnp.zeros((D,), jnp.float32),
        'wlm': norm((D, VOCAB_SIZE)),
        'blm': jnp.zeros((VOCAB_SIZE,), jnp.float32),
    }
    for _ in range(N_DECODER_BLOCKS):
        params['blocks'].append(dict(
            wqkv=norm((N_HEADS, D, 3 * HEAD_SIZE)),   # per-head to_qkv (bias=False)
            wproj=norm((D, D)),
            bproj=jnp.zeros((D,), jnp.float32),
            g1=jnp.ones((D,), jnp.float32),
            b1=jnp.zeros((D,), jnp.float32),
            w1=norm((D, 4 * D)),
            bb1=jnp.zeros((4 * D,), jnp.float32),
            w2=norm((4 * D, D)),
            bb2=jnp.zeros((D,), jnp.float32),
        ))
    return params


def pack_params(p):
    """Stack per-layer params, repack QKV as [Qall|Kall|Vall], fold 1/sqrt(hs),
    pad vocab to 128 lanes, bf16 matmul weights."""
    D = EMBEDDING_SIZE
    H = N_HEADS
    hs = HEAD_SIZE
    VPAD = pl.cdiv(VOCAB_SIZE, 128) * 128

    def fused_qkv(w):                      # (H, D, 3hs) per-head [q|k|v] -> (D, 3D)
        q = w[:, :, :hs] * (1.0 / (float(hs) ** 0.5))   # fold 1/sqrt(hs) into Q cols
        k = w[:, :, hs:2 * hs]
        v = w[:, :, 2 * hs:]

        def head_major(a):                 # (H, D, hs) -> (D, H*hs), head-major lanes
            return jnp.transpose(a, (1, 0, 2)).reshape(D, H * hs)

        return jnp.concatenate([head_major(q), head_major(k), head_major(v)],
                               axis=-1).astype(jnp.bfloat16)

    def stack(name, fn=lambda a: a):
        return jnp.stack([fn(b[name]) for b in p['blocks']], axis=0)

    return dict(
        tok_emb=p['tok_emb'],
        pos_emb=p['pos_emb'],
        wqkv=stack('wqkv', fused_qkv),                                   # (L, D, 3D) bf16
        wproj=stack('wproj', lambda a: a.astype(jnp.bfloat16)),          # (L, D, D) bf16
        bproj=stack('bproj', lambda a: a.reshape(1, D)),                 # (L, 1, D) f32
        g1=stack('g1', lambda a: a.reshape(1, D)),
        b1=stack('b1', lambda a: a.reshape(1, D)),
        w1=stack('w1', lambda a: a.astype(jnp.bfloat16)),                # (L, D, 4D) bf16
        bb1=stack('bb1', lambda a: a.reshape(1, 4 * D)),
        w2=stack('w2', lambda a: a.astype(jnp.bfloat16)),                # (L, 4D, D) bf16
        bb2=stack('bb2', lambda a: a.reshape(1, D)),
        g_final=p['gf'].reshape(1, D),
        b_final=p['bf'].reshape(1, D),
        wlm=jnp.pad(p['wlm'], ((0, 0), (0, VPAD - VOCAB_SIZE))).astype(jnp.bfloat16),
        blm=jnp.pad(p['blm'], (0, VPAD - VOCAB_SIZE)).reshape(1, VPAD),
    )


@jax.jit
def gpt2_forward(idx, packed):
    # token + positional embeddings (plain-JAX gather glue)
    B, T = idx.shape
    D = EMBEDDING_SIZE
    tok = jnp.take(packed['tok_emb'], idx, axis=0)            # (B, T, D)
    pos = packed['pos_emb'][:T][None, :, :]                   # (1, T, D)
    x2d = (tok + pos).reshape(B * T, D).astype(jnp.float32)   # flatten (B,T) -> B*T rows

    VPAD = packed['wlm'].shape[-1]
    call = _build_call(B, T, VPAD)
    logits_pad = call(x2d, packed['wqkv'], packed['wproj'], packed['bproj'],
                      packed['g1'], packed['b1'], packed['w1'], packed['bb1'],
                      packed['w2'], packed['bb2'],
                      packed['g_final'], packed['b_final'],
                      packed['wlm'], packed['blm'])
    logits = logits_pad[:, :VOCAB_SIZE].reshape(B, T, VOCAB_SIZE)
    return logits   # targets is None in this synthetic setup -> loss = None
    # TODO(synk): cross-entropy loss path (targets != None) and multinomial
    # generate() loop are host-side / training concerns, not kernelized here.


if __name__ == "__main__":
    key = jax.random.PRNGKey(0)
    pkey, ikey = jax.random.split(key)
    params = init_params(pkey)
    packed = pack_params(params)

    B, T = 2, BLOCK_SIZE
    idx = jax.random.randint(ikey, (B, T), 0, VOCAB_SIZE, dtype=jnp.int32)

    logits = gpt2_forward(idx, packed)
    jax.block_until_ready(logits)
    assert logits.shape == (B, T, VOCAB_SIZE)
    assert bool(jnp.all(jnp.isfinite(logits)))
    print("KERNEL_OK")
</pallas_src>

<mosaic_0001>
module attributes {stable_mosaic.version = 11 : i64} {
  func.func @gpt2_kernel(%arg0: memref<16x32xf32, #tpu.memory_space<vmem>>, %arg1: memref<2x32x96xbf16, #tpu.memory_space<vmem>>, %arg2: memref<2x32x32xbf16, #tpu.memory_space<vmem>>, %arg3: memref<2x1x32xf32, #tpu.memory_space<vmem>>, %arg4: memref<2x1x32xf32, #tpu.memory_space<vmem>>, %arg5: memref<2x1x32xf32, #tpu.memory_space<vmem>>, %arg6: memref<2x32x128xbf16, #tpu.memory_space<vmem>>, %arg7: memref<2x1x128xf32, #tpu.memory_space<vmem>>, %arg8: memref<2x128x32xbf16, #tpu.memory_space<vmem>>, %arg9: memref<2x1x32xf32, #tpu.memory_space<vmem>>, %arg10: memref<1x32xf32, #tpu.memory_space<vmem>>, %arg11: memref<1x32xf32, #tpu.memory_space<vmem>>, %arg12: memref<32x128xbf16, #tpu.memory_space<vmem>>, %arg13: memref<1x128xf32, #tpu.memory_space<vmem>>, %arg14: memref<16x128xf32, #tpu.memory_space<vmem>>) attributes {dimension_semantics = [], scalar_prefetch = 0 : i64, scratch_operands = 0 : i64, tpu.core_type = #tpu.core_type<tc>} {
    %c0 = arith.constant 0 : index
    %c0_0 = arith.constant 0 : index
    %0 = vector.load %arg0[%c0, %c0_0] : memref<16x32xf32, #tpu.memory_space<vmem>>, vector<16x32xf32>
    %1 = tpu.iota {dimensions = array<i32: 0>} : vector<32x8xi32>
    %2 = tpu.iota {dimensions = array<i32: 1>} : vector<32x8xi32>
    %c8_i32 = arith.constant 8 : i32
    %c0_i32 = arith.constant 0 : i32
    %3 = arith.cmpi eq, %c8_i32, %c0_i32 : i32
    %c1_i32 = arith.constant 1 : i32
    %4 = arith.select %3, %c1_i32, %c8_i32 : i32
    %5 = vector.broadcast %4 : i32 to vector<32x8xi32>
    %6 = arith.remsi %1, %5 : vector<32x8xi32>
    %c0_i32_1 = arith.constant 0 : i32
    %7 = vector.broadcast %c0_i32_1 : i32 to vector<32x8xi32>
    %8 = arith.cmpi ne, %6, %7 : vector<32x8xi32>
    %c0_i32_2 = arith.constant 0 : i32
    %9 = vector.broadcast %c0_i32_2 : i32 to vector<32x8xi32>
    %10 = arith.cmpi slt, %6, %9 : vector<32x8xi32>
    %c0_i32_3 = arith.constant 0 : i32
    %11 = arith.cmpi slt, %4, %c0_i32_3 : i32
    %12 = vector.broadcast %11 : i1 to vector<32x8xi1>
    %13 = vector.broadcast %12 : vector<32x8xi1> to vector<32x8xi1>
    %14 = arith.xori %10, %13 : vector<32x8xi1>
    %15 = arith.andi %14, %8 : vector<32x8xi1>
    %16 = vector.broadcast %4 : i32 to vector<32x8xi32>
    %17 = arith.addi %6, %16 : vector<32x8xi32>
    %18 = arith.select %15, %17, %6 : vector<32x8xi1>, vector<32x8xi32>
    %19 = arith.cmpi sle, %2, %18 : vector<32x8xi32>
    %cst = arith.constant 0.000000e+00 : f32
    %cst_4 = arith.constant -1.000000e+09 : f32
    %20 = vector.broadcast %cst : f32 to vector<32x8xf32>
    %21 = vector.broadcast %cst_4 : f32 to vector<32x8xf32>
    %22 = arith.select %19, %20, %21 : vector<32x8xi1>, vector<32x8xf32>
    %23 = vector.shape_cast %22 : vector<32x8xf32> to vector<1x32x8xf32>
    %c0_5 = arith.constant 0 : index
    %c0_6 = arith.constant 0 : index
    %c0_7 = arith.constant 0 : index
    %24 = vector.load %arg4[%c0_5, %c0_6, %c0_7] : memref<2x1x32xf32, #tpu.memory_space<vmem>>, vector<1x1x32xf32>
    %25 = vector.shape_cast %24 : vector<1x1x32xf32> to vector<1x32xf32>
    %c0_8 = arith.constant 0 : index
    %c0_9 = arith.constant 0 : index
    %c0_10 = arith.constant 0 : index
    %26 = vector.load %arg5[%c0_8, %c0_9, %c0_10] : memref<2x1x32xf32, #tpu.memory_space<vmem>>, vector<1x1x32xf32>
    %27 = vector.shape_cast %26 : vector<1x1x32xf32> to vector<1x32xf32>
    %cst_11 = arith.constant dense<0.000000e+00> : vector<16xf32>
    %28 = vector.multi_reduction <add>, %0, %cst_11 [1] : vector<16x32xf32> to vector<16xf32>
    %29 = vector.shape_cast %28 : vector<16xf32> to vector<16x1xf32>
    %cst_12 = arith.constant 3.200000e+01 : f32
    %30 = vector.broadcast %cst_12 : f32 to vector<16x1xf32>
    %31 = arith.divf %29, %30 : vector<16x1xf32>
    %32 = vector.broadcast %31 : vector<16x1xf32> to vector<16x32xf32>
    %33 = arith.subf %0, %32 : vector<16x32xf32>
    %34 = arith.mulf %33, %33 : vector<16x32xf32>
    %cst_13 = arith.constant dense<0.000000e+00> : vector<16xf32>
    %35 = vector.multi_reduction <add>, %34, %cst_13 [1] : vector<16x32xf32> to vector<16xf32>
    %36 = vector.shape_cast %35 : vector<16xf32> to vector<16x1xf32>
    %cst_14 = arith.constant 3.200000e+01 : f32
    %37 = vector.broadcast %cst_14 : f32 to vector<16x1xf32>
    %38 = arith.divf %36, %37 : vector<16x1xf32>
    %39 = vector.broadcast %31 : vector<16x1xf32> to vector<16x32xf32>
    %40 = arith.subf %0, %39 : vector<16x32xf32>
    %cst_15 = arith.constant 9.99999974E-6 : f32
    %41 = vector.broadcast %cst_15 : f32 to vector<16x1xf32>
    %42 = arith.addf %38, %41 : vector<16x1xf32>
    %43 = math.rsqrt %42 : vector<16x1xf32>
    %44 = vector.broadcast %43 : vector<16x1xf32> to vector<16x32xf32>
    %45 = arith.mulf %40, %44 : vector<16x32xf32>
    %46 = vector.broadcast %25 : vector<1x32xf32> to vector<16x32xf32>
    %47 = arith.mulf %45, %46 : vector<16x32xf32>
    %48 = vector.broadcast %27 : vector<1x32xf32> to vector<16x32xf32>
    %49 = arith.addf %47, %48 : vector<16x32xf32>
    %50 = arith.truncf %49 : vector<16x32xf32> to vector<16x32xbf16>
    %c0_16 = arith.constant 0 : index
    %c0_17 = arith.constant 0 : index
    %c0_18 = arith.constant 0 : index
    %51 = vector.load %arg1[%c0_16, %c0_17, %c0_18] : memref<2x32x96xbf16, #tpu.memory_space<vmem>>, vector<1x32x96xbf16>
    %52 = vector.shape_cast %51 : vector<1x32x96xbf16> to vector<32x96xbf16>
    %cst_19 = arith.constant dense<0.000000e+00> : vector<16x96xf32>
    %53 = tpu.matmul %50, %52, %cst_19 {dimension_numbers = #tpu.dot_dimension_numbers<[1], [0], [0], [1], [0, 0, 1, 1], [], []>} : vector<16x32xbf16>, vector<32x96xbf16>, vector<16x96xf32> -> vector<16x96xf32>
    %54 = vector.extract_strided_slice %53 {offsets = [0, 0], sizes = [16, 32], strides = [1, 1]} : vector<16x96xf32> to vector<16x32xf32>
    %55 = vector.shape_cast %54 : vector<16x32xf32> to vector<2x8x32xf32>
    %56 = vector.extract_strided_slice %53 {offsets = [0, 32], sizes = [16, 32], strides = [1, 1]} : vector<16x96xf32> to vector<16x32xf32>
    %57 = vector.shape_cast %56 : vector<16x32xf32> to vector<2x8x32xf32>
    %58 = vector.extract_strided_slice %53 {offsets = [0, 64], sizes = [16, 32], strides = [1, 1]} : vector<16x96xf32> to vector<16x32xf32>
    %59 = vector.shape_cast %58 : vector<16x32xf32> to vector<2x8x32xf32>
    %60 = vector.extract_strided_slice %55 {offsets = [0, 0, 0], sizes = [2, 8, 8], strides = [1, 1, 1]} : vector<2x8x32xf32> to vector<2x8x8xf32>
    %61 = arith.truncf %60 : vector<2x8x8xf32> to vector<2x8x8xbf16>
    %62 = vector.extract_strided_slice %57 {offsets = [0, 0, 0], sizes = [2, 8, 8], strides = [1, 1, 1]} : vector<2x8x32xf32> to vector<2x8x8xf32>
    %63 = arith.truncf %62 : vector<2x8x8xf32> to vector<2x8x8xbf16>
    "tpu.trace_start"() <{level = 10 : i32, message = "btd,bsd->bts"}> : () -> ()
    %cst_20 = arith.constant dense<0.000000e+00> : vector<2x8x8xf32>
    %64 = tpu.matmul %61, %63, %cst_20 {dimension_numbers = #tpu.dot_dimension_numbers<[2], [2], [1], [1], [0, 0, 0, 1, 1, 1], [0], [0]>} : vector<2x8x8xbf16>, vector<2x8x8xbf16>, vector<2x8x8xf32> -> vector<2x8x8xf32>
    "tpu.trace_stop"() : () -> ()
    %65 = vector.extract_strided_slice %55 {offsets = [0, 0, 8], sizes = [2, 8, 8], strides = [1, 1, 1]} : vector<2x8x32xf32> to vector<2x8x8xf32>
    %66 = arith.truncf %65 : vector<2x8x8xf32> to vector<2x8x8xbf16>
    %67 = vector.extract_strided_slice %57 {offsets = [0, 0, 8], sizes = [2, 8, 8], strides = [1, 1, 1]} : vector<2x8x32xf32> to vector<2x8x8xf32>
    %68 = arith.truncf %67 : vector<2x8x8xf32> to vector<2x8x8xbf16>
    "tpu.trace_start"() <{level = 10 : i32, message = "btd,bsd->bts"}> : () -> ()
    %cst_21 = arith.constant dense<0.000000e+00> : vector<2x8x8xf32>
    %69 = tpu.matmul %66, %68, %cst_21 {dimension_numbers = #tpu.dot_dimension_numbers<[2], [2], [1], [1], [0, 0, 0, 1, 1, 1], [0], [0]>} : vector<2x8x8xbf16>, vector<2x8x8xbf16>, vector<2x8x8xf32> -> vector<2x8x8xf32>
    "tpu.trace_stop"() : () -> ()
    %70 = vector.extract_strided_slice %55 {offsets = [0, 0, 16], sizes = [2, 8, 8], strides = [1, 1, 1]} : vector<2x8x32xf32> to vector<2x8x8xf32>
    %71 = arith.truncf %70 : vector<2x8x8xf32> to vector<2x8x8xbf16>
    %72 = vector.extract_strided_slice %57 {offsets = [0, 0, 16], sizes = [2, 8, 8], strides = [1, 1, 1]} : vector<2x8x32xf32> to vector<2x8x8xf32>
    %73 = arith.truncf %72 : vector<2x8x8xf32> to vector<2x8x8xbf16>
    "tpu.trace_start"() <{level = 10 : i32, message = "btd,bsd->bts"}> : () -> ()
    %cst_22 = arith.constant dense<0.000000e+00> : vector<2x8x8xf32>
    %74 = tpu.matmul %71, %73, %cst_22 {dimension_numbers = #tpu.dot_dimension_numbers<[2], [2], [1], [1], [0, 0, 0, 1, 1, 1], [0], [0]>} : vector<2x8x8xbf16>, vector<2x8x8xbf16>, vector<2x8x8xf32> -> vector<2x8x8xf32>
    "tpu.trace_stop"() : () -> ()
    %75 = vector.extract_strided_slice %55 {offsets = [0, 0, 24], sizes = [2, 8, 8], strides = [1, 1, 1]} : vector<2x8x32xf32> to vector<2x8x8xf32>
    %76 = arith.truncf %75 : vector<2x8x8xf32> to vector<2x8x8xbf16>
    %77 = vector.extract_strided_slice %57 {offsets = [0, 0, 24], sizes = [2, 8, 8], strides = [1, 1, 1]} : vector<2x8x32xf32> to vector<2x8x8xf32>
    %78 = arith.truncf %77 : vector<2x8x8xf32> to vector<2x8x8xbf16>
    "tpu.trace_start"() <{level = 10 : i32, message = "btd,bsd->bts"}> : () -> ()
    %cst_23 = arith.constant dense<0.000000e+00> : vector<2x8x8xf32>
    %79 = tpu.matmul %76, %78, %cst_23 {dimension_numbers = #tpu.dot_dimension_numbers<[2], [2], [1], [1], [0, 0, 0, 1, 1, 1], [0], [0]>} : vector<2x8x8xbf16>, vector<2x8x8xbf16>, vector<2x8x8xf32> -> vector<2x8x8xf32>
    "tpu.trace_stop"() : () -> ()
    %80 = tpu.concatenate %64, %69, %74, %79 in 1 : vector<2x8x8xf32>, vector<2x8x8xf32>, vector<2x8x8xf32>, vector<2x8x8xf32> -> vector<2x32x8xf32>
    %81 = vector.broadcast %23 : vector<1x32x8xf32> to vector<2x32x8xf32>
    %82 = arith.addf %80, %81 : vector<2x32x8xf32>
    %cst_24 = arith.constant dense<0xFF800000> : vector<2x32xf32>
    %83 = vector.multi_reduction <maximumf>, %82, %cst_24 [2] : vector<2x32x8xf32> to vector<2x32xf32>
    %84 = vector.shape_cast %83 : vector<2x32xf32> to vector<2x32x1xf32>
    %85 = vector.broadcast %84 : vector<2x32x1xf32> to vector<2x32x8xf32>
    %86 = arith.subf %82, %85 : vector<2x32x8xf32>
    %87 = math.exp %86 : vector<2x32x8xf32>
    %cst_25 = arith.constant dense<0.000000e+00> : vector<2x32xf32>
    %88 = vector.multi_reduction <add>, %87, %cst_25 [2] : vector<2x32x8xf32> to vector<2x32xf32>
    %89 = vector.shape_cast %88 : vector<2x32xf32> to vector<2x32x1xf32>
    %90 = tpu.reciprocal %89 {approx = true} : vector<2x32x1xf32> -> vector<2x32x1xf32>
    %91 = vector.broadcast %90 : vector<2x32x1xf32> to vector<2x32x8xf32>
    %92 = arith.mulf %87, %91 : vector<2x32x8xf32>
    %c0_26 = arith.constant 0 : index
    %c0_27 = arith.constant 0 : index
    %c0_28 = arith.constant 0 : index
    %93 = vector.load %arg2[%c0_26, %c0_27, %c0_28] : memref<2x32x32xbf16, #tpu.memory_space<vmem>>, vector<1x32x32xbf16>
    %94 = vector.shape_cast %93 : vector<1x32x32xbf16> to vector<32x32xbf16>
    %cst_29 = arith.constant 0.000000e+00 : f32
    %95 = vector.broadcast %cst_29 : f32 to vector<16x32xf32>
    %96 = vector.extract_strided_slice %92 {offsets = [0, 0, 0], sizes = [2, 8, 8], strides = [1, 1, 1]} : vector<2x32x8xf32> to vector<2x8x8xf32>
    %97 = arith.truncf %96 : vector<2x8x8xf32> to vector<2x8x8xbf16>
    %98 = vector.extract_strided_slice %59 {offsets = [0, 0, 0], sizes = [2, 8, 8], strides = [1, 1, 1]} : vector<2x8x32xf32> to vector<2x8x8xf32>
    %99 = arith.truncf %98 : vector<2x8x8xf32> to vector<2x8x8xbf16>
    "tpu.trace_start"() <{level = 10 : i32, message = "bts,bsd->btd"}> : () -> ()
    %cst_30 = arith.constant dense<0.000000e+00> : vector<2x8x8xf32>
    %100 = tpu.matmul %97, %99, %cst_30 {dimension_numbers = #tpu.dot_dimension_numbers<[2], [1], [1], [2], [0, 0, 0, 1, 1, 2], [0], [0]>} : vector<2x8x8xbf16>, vector<2x8x8xbf16>, vector<2x8x8xf32> -> vector<2x8x8xf32>
    "tpu.trace_stop"() : () -> ()
    %101 = vector.shape_cast %100 : vector<2x8x8xf32> to vector<16x8xf32>
    %102 = arith.truncf %101 : vector<16x8xf32> to vector<16x8xbf16>
    %103 = vector.extract_strided_slice %94 {offsets = [0, 0], sizes = [8, 32], strides = [1, 1]} : vector<32x32xbf16> to vector<8x32xbf16>
    %cst_31 = arith.constant dense<0.000000e+00> : vector<16x32xf32>
    %104 = tpu.matmul %102, %103, %cst_31 {dimension_numbers = #tpu.dot_dimension_numbers<[1], [0], [0], [1], [0, 0, 1, 1], [], []>} : vector<16x8xbf16>, vector<8x32xbf16>, vector<16x32xf32> -> vector<16x32xf32>
    %105 = arith.addf %95, %104 : vector<16x32xf32>
    %106 = vector.extract_strided_slice %92 {offsets = [0, 8, 0], sizes = [2, 8, 8], strides = [1, 1, 1]} : vector<2x32x8xf32> to vector<2x8x8xf32>
    %107 = arith.truncf %106 : vector<2x8x8xf32> to vector<2x8x8xbf16>
    %108 = vector.extract_strided_slice %59 {offsets = [0, 0, 8], sizes = [2, 8, 8], strides = [1, 1, 1]} : vector<2x8x32xf32> to vector<2x8x8xf32>
    %109 = arith.truncf %108 : vector<2x8x8xf32> to vector<2x8x8xbf16>
    "tpu.trace_start"() <{level = 10 : i32, message = "bts,bsd->btd"}> : () -> ()
    %cst_32 = arith.constant dense<0.000000e+00> : vector<2x8x8xf32>
    %110 = tpu.matmul %107, %109, %cst_32 {dimension_numbers = #tpu.dot_dimension_numbers<[2], [1], [1], [2], [0, 0, 0, 1, 1, 2], [0], [0]>} : vector<2x8x8xbf16>, vector<2x8x8xbf16>, vector<2x8x8xf32> -> vector<2x8x8xf32>
    "tpu.trace_stop"() : () -> ()
    %111 = vector.shape_cast %110 : vector<2x8x8xf32> to vector<16x8xf32>
    %112 = arith.truncf %111 : vector<16x8xf32> to vector<16x8xbf16>
    %113 = vector.extract_strided_slice %94 {offsets = [8, 0], sizes = [8, 32], strides = [1, 1]} : vector<32x32xbf16> to vector<8x32xbf16>
    %cst_33 = arith.constant dense<0.000000e+00> : vector<16x32xf32>
    %114 = tpu.matmul %112, %113, %cst_33 {dimension_numbers = #tpu.dot_dimension_numbers<[1], [0], [0], [1], [0, 0, 1, 1], [], []>} : vector<16x8xbf16>, vector<8x32xbf16>, vector<16x32xf32> -> vector<16x32xf32>
    %115 = arith.addf %105, %114 : vector<16x32xf32>
    %116 = vector.extract_strided_slice %92 {offsets = [0, 16, 0], sizes = [2, 8, 8], strides = [1, 1, 1]} : vector<2x32x8xf32> to vector<2x8x8xf32>
    %117 = arith.truncf %116 : vector<2x8x8xf32> to vector<2x8x8xbf16>
    %118 = vector.extract_strided_slice %59 {offsets = [0, 0, 16], sizes = [2, 8, 8], strides = [1, 1, 1]} : vector<2x8x32xf32> to vector<2x8x8xf32>
    %119 = arith.truncf %118 : vector<2x8x8xf32> to vector<2x8x8xbf16>
    "tpu.trace_start"() <{level = 10 : i32, message = "bts,bsd->btd"}> : () -> ()
    %cst_34 = arith.constant dense<0.000000e+00> : vector<2x8x8xf32>
    %120 = tpu.matmul %117, %119, %cst_34 {dimension_numbers = #tpu.dot_dimension_numbers<[2], [1], [1], [2], [0, 0, 0, 1, 1, 2], [0], [0]>} : vector<2x8x8xbf16>, vector<2x8x8xbf16>, vector<2x8x8xf32> -> vector<2x8x8xf32>
    "tpu.trace_stop"() : () -> ()
    %121 = vector.shape_cast %120 : vector<2x8x8xf32> to vector<16x8xf32>
    %122 = arith.truncf %121 : vector<16x8xf32> to vector<16x8xbf16>
    %123 = vector.extract_strided_slice %94 {offsets = [16, 0], sizes = [8, 32], strides = [1, 1]} : vector<32x32xbf16> to vector<8x32xbf16>
    %cst_35 = arith.constant dense<0.000000e+00> : vector<16x32xf32>
    %124 = tpu.matmul %122, %123, %cst_35 {dimension_numbers = #tpu.dot_dimension_numbers<[1], [0], [0], [1], [0, 0, 1, 1], [], []>} : vector<16x8xbf16>, vector<8x32xbf16>, vector<16x32xf32> -> vector<16x32xf32>
    %125 = arith.addf %115, %124 : vector<16x32xf32>
    %126 = vector.extract_strided_slice %92 {offsets = [0, 24, 0], sizes = [2, 8, 8], strides = [1, 1, 1]} : vector<2x32x8xf32> to vector<2x8x8xf32>
    %127 = arith.truncf %126 : vector<2x8x8xf32> to vector<2x8x8xbf16>
    %128 = vector.extract_strided_slice %59 {offsets = [0, 0, 24], sizes = [2, 8, 8], strides = [1, 1, 1]} : vector<2x8x32xf32> to vector<2x8x8xf32>
    %129 = arith.truncf %128 : vector<2x8x8xf32> to vector<2x8x8xbf16>
    "tpu.trace_start"() <{level = 10 : i32, message = "bts,bsd->btd"}> : () -> ()
    %cst_36 = arith.constant dense<0.000000e+00> : vector<2x8x8xf32>
    %130 = tpu.matmul %127, %129, %cst_36 {dimension_numbers = #tpu.dot_dimension_numbers<[2], [1], [1], [2], [0, 0, 0, 1, 1, 2], [0], [0]>} : vector<2x8x8xbf16>, vector<2x8x8xbf16>, vector<2x8x8xf32> -> vector<2x8x8xf32>
    "tpu.trace_stop"() : () -> ()
    %131 = vector.shape_cast %130 : vector<2x8x8xf32> to vector<16x8xf32>
    %132 = arith.truncf %131 : vector<16x8xf32> to vector<16x8xbf16>
    %133 = vector.extract_strided_slice %94 {offsets = [24, 0], sizes = [8, 32], strides = [1, 1]} : vector<32x32xbf16> to vector<8x32xbf16>
    %cst_37 = arith.constant dense<0.000000e+00> : vector<16x32xf32>
    %134 = tpu.matmul %132, %133, %cst_37 {dimension_numbers = #tpu.dot_dimension_numbers<[1], [0], [0], [1], [0, 0, 1, 1], [], []>} : vector<16x8xbf16>, vector<8x32xbf16>, vector<16x32xf32> -> vector<16x32xf32>
    %135 = arith.addf %125, %134 : vector<16x32xf32>
    %136 = arith.addf %0, %135 : vector<16x32xf32>
    %c0_38 = arith.constant 0 : index
    %c0_39 = arith.constant 0 : index
    %c0_40 = arith.constant 0 : index
    %137 = vector.load %arg3[%c0_38, %c0_39, %c0_40] : memref<2x1x32xf32, #tpu.memory_space<vmem>>, vector<1x1x32xf32>
    %138 = vector.shape_cast %137 : vector<1x1x32xf32> to vector<1x32xf32>
    %139 = vector.broadcast %138 : vector<1x32xf32> to vector<16x32xf32>
    %140 = arith.addf %136, %139 : vector<16x32xf32>
    %cst_41 = arith.constant dense<0.000000e+00> : vector<16xf32>
    %141 = vector.multi_reduction <add>, %140, %cst_41 [1] : vector<16x32xf32> to vector<16xf32>
    %142 = vector.shape_cast %141 : vector<16xf32> to vector<16x1xf32>
    %cst_42 = arith.constant 3.200000e+01 : f32
    %143 = vector.broadcast %cst_42 : f32 to vector<16x1xf32>
    %144 = arith.divf %142, %143 : vector<16x1xf32>
    %145 = vector.broadcast %144 : vector<16x1xf32> to vector<16x32xf32>
    %146 = arith.subf %140, %145 : vector<16x32xf32>
    %147 = arith.mulf %146, %146 : vector<16x32xf32>
    %cst_43 = arith.constant dense<0.000000e+00> : vector<16xf32>
    %148 = vector.multi_reduction <add>, %147, %cst_43 [1] : vector<16x32xf32> to vector<16xf32>
    %149 = vector.shape_cast %148 : vector<16xf32> to vector<16x1xf32>
    %cst_44 = arith.constant 3.200000e+01 : f32
    %150 = vector.broadcast %cst_44 : f32 to vector<16x1xf32>
    %151 = arith.divf %149, %150 : vector<16x1xf32>
    %152 = vector.broadcast %144 : vector<16x1xf32> to vector<16x32xf32>
    %153 = arith.subf %140, %152 : vector<16x32xf32>
    %cst_45 = arith.constant 9.99999974E-6 : f32
    %154 = vector.broadcast %cst_45 : f32 to vector<16x1xf32>
    %155 = arith.addf %151, %154 : vector<16x1xf32>
    %156 = math.rsqrt %155 : vector<16x1xf32>
    %157 = vector.broadcast %156 : vector<16x1xf32> to vector<16x32xf32>
    %158 = arith.mulf %153, %157 : vector<16x32xf32>
    %159 = vector.broadcast %25 : vector<1x32xf32> to vector<16x32xf32>
    %160 = arith.mulf %158, %159 : vector<16x32xf32>
    %161 = vector.broadcast %27 : vector<1x32xf32> to vector<16x32xf32>
    %162 = arith.addf %160, %161 : vector<16x32xf32>
    %163 = arith.truncf %162 : vector<16x32xf32> to vector<16x32xbf16>
    %c0_46 = arith.constant 0 : index
    %c0_47 = arith.constant 0 : index
    %c0_48 = arith.constant 0 : index
    %164 = vector.load %arg6[%c0_46, %c0_47, %c0_48] : memref<2x32x128xbf16, #tpu.memory_space<vmem>>, vector<1x32x128xbf16>
    %165 = vector.shape_cast %164 : vector<1x32x128xbf16> to vector<32x128xbf16>
    %cst_49 = arith.constant dense<0.000000e+00> : vector<16x128xf32>
    %166 = tpu.matmul %163, %165, %cst_49 {dimension_numbers = #tpu.dot_dimension_numbers<[1], [0], [0], [1], [0, 0, 1, 1], [], []>} : vector<16x32xbf16>, vector<32x128xbf16>, vector<16x128xf32> -> vector<16x128xf32>
    %c0_50 = arith.constant 0 : index
    %c0_51 = arith.constant 0 : index
    %c0_52 = arith.constant 0 : index
    %167 = vector.load %arg7[%c0_50, %c0_51, %c0_52] : memref<2x1x128xf32, #tpu.memory_space<vmem>>, vector<1x1x128xf32>
    %168 = vector.shape_cast %167 : vector<1x1x128xf32> to vector<1x128xf32>
    %169 = vector.broadcast %168 : vector<1x128xf32> to vector<16x128xf32>
    %170 = arith.addf %166, %169 : vector<16x128xf32>
    %cst_53 = arith.constant 0.000000e+00 : f32
    %171 = vector.broadcast %cst_53 : f32 to vector<16x128xf32>
    %172 = arith.maximumf %170, %171 : vector<16x128xf32>
    %173 = arith.truncf %172 : vector<16x128xf32> to vector<16x128xbf16>
    %c0_54 = arith.constant 0 : index
    %c0_55 = arith.constant 0 : index
    %c0_56 = arith.constant 0 : index
    %174 = vector.load %arg8[%c0_54, %c0_55, %c0_56] : memref<2x128x32xbf16, #tpu.memory_space<vmem>>, vector<1x128x32xbf16>
    %175 = vector.shape_cast %174 : vector<1x128x32xbf16> to vector<128x32xbf16>
    %cst_57 = arith.constant dense<0.000000e+00> : vector<16x32xf32>
    %176 = tpu.matmul %173, %175, %cst_57 {dimension_numbers = #tpu.dot_dimension_numbers<[1], [0], [0], [1], [0, 0, 1, 1], [], []>} : vector<16x128xbf16>, vector<128x32xbf16>, vector<16x32xf32> -> vector<16x32xf32>
    %c0_58 = arith.constant 0 : index
    %c0_59 = arith.constant 0 : index
    %c0_60 = arith.constant 0 : index
    %177 = vector.load %arg9[%c0_58, %c0_59, %c0_60] : memref<2x1x32xf32, #tpu.memory_space<vmem>>, vector<1x1x32xf32>
    %178 = vector.shape_cast %177 : vector<1x1x32xf32> to vector<1x32xf32>
    %179 = vector.broadcast %178 : vector<1x32xf32> to vector<16x32xf32>
    %180 = arith.addf %176, %179 : vector<16x32xf32>
    %181 = arith.addf %140, %180 : vector<16x32xf32>
    %c1 = arith.constant 1 : index
    %c0_61 = arith.constant 0 : index
    %c0_62 = arith.constant 0 : index
    %182 = vector.load %arg4[%c1, %c0_61, %c0_62] : memref<2x1x32xf32, #tpu.memory_space<vmem>>, vector<1x1x32xf32>
    %183 = vector.shape_cast %182 : vector<1x1x32xf32> to vector<1x32xf32>
    %c1_63 = arith.constant 1 : index
    %c0_64 = arith.constant 0 : index
    %c0_65 = arith.constant 0 : index
    %184 = vector.load %arg5[%c1_63, %c0_64, %c0_65] : memref<2x1x32xf32, #tpu.memory_space<vmem>>, vector<1x1x32xf32>
    %185 = vector.shape_cast %184 : vector<1x1x32xf32> to vector<1x32xf32>
    %cst_66 = arith.constant dense<0.000000e+00> : vector<16xf32>
    %186 = vector.multi_reduction <add>, %181, %cst_66 [1] : vector<16x32xf32> to vector<16xf32>
    %187 = vector.shape_cast %186 : vector<16xf32> to vector<16x1xf32>
    %cst_67 = arith.constant 3.200000e+01 : f32
    %188 = vector.broadcast %cst_67 : f32 to vector<16x1xf32>
    %189 = arith.divf %187, %188 : vector<16x1xf32>
    %190 = vector.broadcast %189 : vector<16x1xf32> to vector<16x32xf32>
    %191 = arith.subf %181, %190 : vector<16x32xf32>
    %192 = arith.mulf %191, %191 : vector<16x32xf32>
    %cst_68 = arith.constant dense<0.000000e+00> : vector<16xf32>
    %193 = vector.multi_reduction <add>, %192, %cst_68 [1] : vector<16x32xf32> to vector<16xf32>
    %194 = vector.shape_cast %193 : vector<16xf32> to vector<16x1xf32>
    %cst_69 = arith.constant 3.200000e+01 : f32
    %195 = vector.broadcast %cst_69 : f32 to vector<16x1xf32>
    %196 = arith.divf %194, %195 : vector<16x1xf32>
    %197 = vector.broadcast %189 : vector<16x1xf32> to vector<16x32xf32>
    %198 = arith.subf %181, %197 : vector<16x32xf32>
    %cst_70 = arith.constant 9.99999974E-6 : f32
    %199 = vector.broadcast %cst_70 : f32 to vector<16x1xf32>
    %200 = arith.addf %196, %199 : vector<16x1xf32>
    %201 = math.rsqrt %200 : vector<16x1xf32>
    %202 = vector.broadcast %201 : vector<16x1xf32> to vector<16x32xf32>
    %203 = arith.mulf %198, %202 : vector<16x32xf32>
    %204 = vector.broadcast %183 : vector<1x32xf32> to vector<16x32xf32>
    %205 = arith.mulf %203, %204 : vector<16x32xf32>
    %206 = vector.broadcast %185 : vector<1x32xf32> to vector<16x32xf32>
    %207 = arith.addf %205, %206 : vector<16x32xf32>
    %208 = arith.truncf %207 : vector<16x32xf32> to vector<16x32xbf16>
    %c1_71 = arith.constant 1 : index
    %c0_72 = arith.constant 0 : index
    %c0_73 = arith.constant 0 : index
    %209 = vector.load %arg1[%c1_71, %c0_72, %c0_73] : memref<2x32x96xbf16, #tpu.memory_space<vmem>>, vector<1x32x96xbf16>
    %210 = vector.shape_cast %209 : vector<1x32x96xbf16> to vector<32x96xbf16>
    %cst_74 = arith.constant dense<0.000000e+00> : vector<16x96xf32>
    %211 = tpu.matmul %208, %210, %cst_74 {dimension_numbers = #tpu.dot_dimension_numbers<[1], [0], [0], [1], [0, 0, 1, 1], [], []>} : vector<16x32xbf16>, vector<32x96xbf16>, vector<16x96xf32> -> vector<16x96xf32>
    %212 = vector.extract_strided_slice %211 {offsets = [0, 0], sizes = [16, 32], strides = [1, 1]} : vector<16x96xf32> to vector<16x32xf32>
    %213 = vector.shape_cast %212 : vector<16x32xf32> to vector<2x8x32xf32>
    %214 = vector.extract_strided_slice %211 {offsets = [0, 32], sizes = [16, 32], strides = [1, 1]} : vector<16x96xf32> to vector<16x32xf32>
    %215 = vector.shape_cast %214 : vector<16x32xf32> to vector<2x8x32xf32>
    %216 = vector.extract_strided_slice %211 {offsets = [0, 64], sizes = [16, 32], strides = [1, 1]} : vector<16x96xf32> to vector<16x32xf32>
    %217 = vector.shape_cast %216 : vector<16x32xf32> to vector<2x8x32xf32>
    %218 = vector.extract_strided_slice %213 {offsets = [0, 0, 0], sizes = [2, 8, 8], strides = [1, 1, 1]} : vector<2x8x32xf32> to vector<2x8x8xf32>
    %219 = arith.truncf %218 : vector<2x8x8xf32> to vector<2x8x8xbf16>
    %220 = vector.extract_strided_slice %215 {offsets = [0, 0, 0], sizes = [2, 8, 8], strides = [1, 1, 1]} : vector<2x8x32xf32> to vector<2x8x8xf32>
    %221 = arith.truncf %220 : vector<2x8x8xf32> to vector<2x8x8xbf16>
    "tpu.trace_start"() <{level = 10 : i32, message = "btd,bsd->bts"}> : () -> ()
    %cst_75 = arith.constant dense<0.000000e+00> : vector<2x8x8xf32>
    %222 = tpu.matmul %219, %221, %cst_75 {dimension_numbers = #tpu.dot_dimension_numbers<[2], [2], [1], [1], [0, 0, 0, 1, 1, 1], [0], [0]>} : vector<2x8x8xbf16>, vector<2x8x8xbf16>, vector<2x8x8xf32> -> vector<2x8x8xf32>
    "tpu.trace_stop"() : () -> ()
    %223 = vector.extract_strided_slice %213 {offsets = [0, 0, 8], sizes = [2, 8, 8], strides = [1, 1, 1]} : vector<2x8x32xf32> to vector<2x8x8xf32>
    %224 = arith.truncf %223 : vector<2x8x8xf32> to vector<2x8x8xbf16>
    %225 = vector.extract_strided_slice %215 {offsets = [0, 0, 8], sizes = [2, 8, 8], strides = [1, 1, 1]} : vector<2x8x32xf32> to vector<2x8x8xf32>
    %226 = arith.truncf %225 : vector<2x8x8xf32> to vector<2x8x8xbf16>
    "tpu.trace_start"() <{level = 10 : i32, message = "btd,bsd->bts"}> : () -> ()
    %cst_76 = arith.constant dense<0.000000e+00> : vector<2x8x8xf32>
    %227 = tpu.matmul %224, %226, %cst_76 {dimension_numbers = #tpu.dot_dimension_numbers<[2], [2], [1], [1], [0, 0, 0, 1, 1, 1], [0], [0]>} : vector<2x8x8xbf16>, vector<2x8x8xbf16>, vector<2x8x8xf32> -> vector<2x8x8xf32>
    "tpu.trace_stop"() : () -> ()
    %228 = vector.extract_strided_slice %213 {offsets = [0, 0, 16], sizes = [2, 8, 8], strides = [1, 1, 1]} : vector<2x8x32xf32> to vector<2x8x8xf32>
    %229 = arith.truncf %228 : vector<2x8x8xf32> to vector<2x8x8xbf16>
    %230 = vector.extract_strided_slice %215 {offsets = [0, 0, 16], sizes = [2, 8, 8], strides = [1, 1, 1]} : vector<2x8x32xf32> to vector<2x8x8xf32>
    %231 = arith.truncf %230 : vector<2x8x8xf32> to vector<2x8x8xbf16>
    "tpu.trace_start"() <{level = 10 : i32, message = "btd,bsd->bts"}> : () -> ()
    %cst_77 = arith.constant dense<0.000000e+00> : vector<2x8x8xf32>
    %232 = tpu.matmul %229, %231, %cst_77 {dimension_numbers = #tpu.dot_dimension_numbers<[2], [2], [1], [1], [0, 0, 0, 1, 1, 1], [0], [0]>} : vector<2x8x8xbf16>, vector<2x8x8xbf16>, vector<2x8x8xf32> -> vector<2x8x8xf32>
    "tpu.trace_stop"() : () -> ()
    %233 = vector.extract_strided_slice %213 {offsets = [0, 0, 24], sizes = [2, 8, 8], strides = [1, 1, 1]} : vector<2x8x32xf32> to vector<2x8x8xf32>
    %234 = arith.truncf %233 : vector<2x8x8xf32> to vector<2x8x8xbf16>
    %235 = vector.extract_strided_slice %215 {offsets = [0, 0, 24], sizes = [2, 8, 8], strides = [1, 1, 1]} : vector<2x8x32xf32> to vector<2x8x8xf32>
    %236 = arith.truncf %235 : vector<2x8x8xf32> to vector<2x8x8xbf16>
    "tpu.trace_start"() <{level = 10 : i32, message = "btd,bsd->bts"}> : () -> ()
    %cst_78 = arith.constant dense<0.000000e+00> : vector<2x8x8xf32>
    %237 = tpu.matmul %234, %236, %cst_78 {dimension_numbers = #tpu.dot_dimension_numbers<[2], [2], [1], [1], [0, 0, 0, 1, 1, 1], [0], [0]>} : vector<2x8x8xbf16>, vector<2x8x8xbf16>, vector<2x8x8xf32> -> vector<2x8x8xf32>
    "tpu.trace_stop"() : () -> ()
    %238 = tpu.concatenate %222, %227, %232, %237 in 1 : vector<2x8x8xf32>, vector<2x8x8xf32>, vector<2x8x8xf32>, vector<2x8x8xf32> -> vector<2x32x8xf32>
    %239 = vector.broadcast %23 : vector<1x32x8xf32> to vector<2x32x8xf32>
    %240 = arith.addf %238, %239 : vector<2x32x8xf32>
    %cst_79 = arith.constant dense<0xFF800000> : vector<2x32xf32>
    %241 = vector.multi_reduction <maximumf>, %240, %cst_79 [2] : vector<2x32x8xf32> to vector<2x32xf32>
    %242 = vector.shape_cast %241 : vector<2x32xf32> to vector<2x32x1xf32>
    %243 = vector.broadcast %242 : vector<2x32x1xf32> to vector<2x32x8xf32>
    %244 = arith.subf %240, %243 : vector<2x32x8xf32>
    %245 = math.exp %244 : vector<2x32x8xf32>
    %cst_80 = arith.constant dense<0.000000e+00> : vector<2x32xf32>
    %246 = vector.multi_reduction <add>, %245, %cst_80 [2] : vector<2x32x8xf32> to vector<2x32xf32>
    %247 = vector.shape_cast %246 : vector<2x32xf32> to vector<2x32x1xf32>
    %248 = tpu.reciprocal %247 {approx = true} : vector<2x32x1xf32> -> vector<2x32x1xf32>
    %249 = vector.broadcast %248 : vector<2x32x1xf32> to vector<2x32x8xf32>
    %250 = arith.mulf %245, %249 : vector<2x32x8xf32>
    %c1_81 = arith.constant 1 : index
    %c0_82 = arith.constant 0 : index
    %c0_83 = arith.constant 0 : index
    %251 = vector.load %arg2[%c1_81, %c0_82, %c0_83] : memref<2x32x32xbf16, #tpu.memory_space<vmem>>, vector<1x32x32xbf16>
    %252 = vector.shape_cast %251 : vector<1x32x32xbf16> to vector<32x32xbf16>
    %cst_84 = arith.constant 0.000000e+00 : f32
    %253 = vector.broadcast %cst_84 : f32 to vector<16x32xf32>
    %254 = vector.extract_strided_slice %250 {offsets = [0, 0, 0], sizes = [2, 8, 8], strides = [1, 1, 1]} : vector<2x32x8xf32> to vector<2x8x8xf32>
    %255 = arith.truncf %254 : vector<2x8x8xf32> to vector<2x8x8xbf16>
    %256 = vector.extract_strided_slice %217 {offsets = [0, 0, 0], sizes = [2, 8, 8], strides = [1, 1, 1]} : vector<2x8x32xf32> to vector<2x8x8xf32>
    %257 = arith.truncf %256 : vector<2x8x8xf32> to vector<2x8x8xbf16>
    "tpu.trace_start"() <{level = 10 : i32, message = "bts,bsd->btd"}> : () -> ()
    %cst_85 = arith.constant dense<0.000000e+00> : vector<2x8x8xf32>
    %258 = tpu.matmul %255, %257, %cst_85 {dimension_numbers = #tpu.dot_dimension_numbers<[2], [1], [1], [2], [0, 0, 0, 1, 1, 2], [0], [0]>} : vector<2x8x8xbf16>, vector<2x8x8xbf16>, vector<2x8x8xf32> -> vector<2x8x8xf32>
    "tpu.trace_stop"() : () -> ()
    %259 = vector.shape_cast %258 : vector<2x8x8xf32> to vector<16x8xf32>
    %260 = arith.truncf %259 : vector<16x8xf32> to vector<16x8xbf16>
    %261 = vector.extract_strided_slice %252 {offsets = [0, 0], sizes = [8, 32], strides = [1, 1]} : vector<32x32xbf16> to vector<8x32xbf16>
    %cst_86 = arith.constant dense<0.000000e+00> : vector<16x32xf32>
    %262 = tpu.matmul %260, %261, %cst_86 {dimension_numbers = #tpu.dot_dimension_numbers<[1], [0], [0], [1], [0, 0, 1, 1], [], []>} : vector<16x8xbf16>, vector<8x32xbf16>, vector<16x32xf32> -> vector<16x32xf32>
    %263 = arith.addf %253, %262 : vector<16x32xf32>
    %264 = vector.extract_strided_slice %250 {offsets = [0, 8, 0], sizes = [2, 8, 8], strides = [1, 1, 1]} : vector<2x32x8xf32> to vector<2x8x8xf32>
    %265 = arith.truncf %264 : vector<2x8x8xf32> to vector<2x8x8xbf16>
    %266 = vector.extract_strided_slice %217 {offsets = [0, 0, 8], sizes = [2, 8, 8], strides = [1, 1, 1]} : vector<2x8x32xf32> to vector<2x8x8xf32>
    %267 = arith.truncf %266 : vector<2x8x8xf32> to vector<2x8x8xbf16>
    "tpu.trace_start"() <{level = 10 : i32, message = "bts,bsd->btd"}> : () -> ()
    %cst_87 = arith.constant dense<0.000000e+00> : vector<2x8x8xf32>
    %268 = tpu.matmul %265, %267, %cst_87 {dimension_numbers = #tpu.dot_dimension_numbers<[2], [1], [1], [2], [0, 0, 0, 1, 1, 2], [0], [0]>} : vector<2x8x8xbf16>, vector<2x8x8xbf16>, vector<2x8x8xf32> -> vector<2x8x8xf32>
    "tpu.trace_stop"() : () -> ()
    %269 = vector.shape_cast %268 : vector<2x8x8xf32> to vector<16x8xf32>
    %270 = arith.truncf %269 : vector<16x8xf32> to vector<16x8xbf16>
    %271 = vector.extract_strided_slice %252 {offsets = [8, 0], sizes = [8, 32], strides = [1, 1]} : vector<32x32xbf16> to vector<8x32xbf16>
    %cst_88 = arith.constant dense<0.000000e+00> : vector<16x32xf32>
    %272 = tpu.matmul %270, %271, %cst_88 {dimension_numbers = #tpu.dot_dimension_numbers<[1], [0], [0], [1], [0, 0, 1, 1], [], []>} : vector<16x8xbf16>, vector<8x32xbf16>, vector<16x32xf32> -> vector<16x32xf32>
    %273 = arith.addf %263, %272 : vector<16x32xf32>
    %274 = vector.extract_strided_slice %250 {offsets = [0, 16, 0], sizes = [2, 8, 8], strides = [1, 1, 1]} : vector<2x32x8xf32> to vector<2x8x8xf32>
    %275 = arith.truncf %274 : vector<2x8x8xf32> to vector<2x8x8xbf16>
    %276 = vector.extract_strided_slice %217 {offsets = [0, 0, 16], sizes = [2, 8, 8], strides = [1, 1, 1]} : vector<2x8x32xf32> to vector<2x8x8xf32>
    %277 = arith.truncf %276 : vector<2x8x8xf32> to vector<2x8x8xbf16>
    "tpu.trace_start"() <{level = 10 : i32, message = "bts,bsd->btd"}> : () -> ()
    %cst_89 = arith.constant dense<0.000000e+00> : vector<2x8x8xf32>
    %278 = tpu.matmul %275, %277, %cst_89 {dimension_numbers = #tpu.dot_dimension_numbers<[2], [1], [1], [2], [0, 0, 0, 1, 1, 2], [0], [0]>} : vector<2x8x8xbf16>, vector<2x8x8xbf16>, vector<2x8x8xf32> -> vector<2x8x8xf32>
    "tpu.trace_stop"() : () -> ()
    %279 = vector.shape_cast %278 : vector<2x8x8xf32> to vector<16x8xf32>
    %280 = arith.truncf %279 : vector<16x8xf32> to vector<16x8xbf16>
    %281 = vector.extract_strided_slice %252 {offsets = [16, 0], sizes = [8, 32], strides = [1, 1]} : vector<32x32xbf16> to vector<8x32xbf16>
    %cst_90 = arith.constant dense<0.000000e+00> : vector<16x32xf32>
    %282 = tpu.matmul %280, %281, %cst_90 {dimension_numbers = #tpu.dot_dimension_numbers<[1], [0], [0], [1], [0, 0, 1, 1], [], []>} : vector<16x8xbf16>, vector<8x32xbf16>, vector<16x32xf32> -> vector<16x32xf32>
    %283 = arith.addf %273, %282 : vector<16x32xf32>
    %284 = vector.extract_strided_slice %250 {offsets = [0, 24, 0], sizes = [2, 8, 8], strides = [1, 1, 1]} : vector<2x32x8xf32> to vector<2x8x8xf32>
    %285 = arith.truncf %284 : vector<2x8x8xf32> to vector<2x8x8xbf16>
    %286 = vector.extract_strided_slice %217 {offsets = [0, 0, 24], sizes = [2, 8, 8], strides = [1, 1, 1]} : vector<2x8x32xf32> to vector<2x8x8xf32>
    %287 = arith.truncf %286 : vector<2x8x8xf32> to vector<2x8x8xbf16>
    "tpu.trace_start"() <{level = 10 : i32, message = "bts,bsd->btd"}> : () -> ()
    %cst_91 = arith.constant dense<0.000000e+00> : vector<2x8x8xf32>
    %288 = tpu.matmul %285, %287, %cst_91 {dimension_numbers = #tpu.dot_dimension_numbers<[2], [1], [1], [2], [0, 0, 0, 1, 1, 2], [0], [0]>} : vector<2x8x8xbf16>, vector<2x8x8xbf16>, vector<2x8x8xf32> -> vector<2x8x8xf32>
    "tpu.trace_stop"() : () -> ()
    %289 = vector.shape_cast %288 : vector<2x8x8xf32> to vector<16x8xf32>
    %290 = arith.truncf %289 : vector<16x8xf32> to vector<16x8xbf16>
    %291 = vector.extract_strided_slice %252 {offsets = [24, 0], sizes = [8, 32], strides = [1, 1]} : vector<32x32xbf16> to vector<8x32xbf16>
    %cst_92 = arith.constant dense<0.000000e+00> : vector<16x32xf32>
    %292 = tpu.matmul %290, %291, %cst_92 {dimension_numbers = #tpu.dot_dimension_numbers<[1], [0], [0], [1], [0, 0, 1, 1], [], []>} : vector<16x8xbf16>, vector<8x32xbf16>, vector<16x32xf32> -> vector<16x32xf32>
    %293 = arith.addf %283, %292 : vector<16x32xf32>
    %294 = arith.addf %181, %293 : vector<16x32xf32>
    %c1_93 = arith.constant 1 : index
    %c0_94 = arith.constant 0 : index
    %c0_95 = arith.constant 0 : index
    %295 = vector.load %arg3[%c1_93, %c0_94, %c0_95] : memref<2x1x32xf32, #tpu.memory_space<vmem>>, vector<1x1x32xf32>
    %296 = vector.shape_cast %295 : vector<1x1x32xf32> to vector<1x32xf32>
    %297 = vector.broadcast %296 : vector<1x32xf32> to vector<16x32xf32>
    %298 = arith.addf %294, %297 : vector<16x32xf32>
    %cst_96 = arith.constant dense<0.000000e+00> : vector<16xf32>
    %299 = vector.multi_reduction <add>, %298, %cst_96 [1] : vector<16x32xf32> to vector<16xf32>
    %300 = vector.shape_cast %299 : vector<16xf32> to vector<16x1xf32>
    %cst_97 = arith.constant 3.200000e+01 : f32
    %301 = vector.broadcast %cst_97 : f32 to vector<16x1xf32>
    %302 = arith.divf %300, %301 : vector<16x1xf32>
    %303 = vector.broadcast %302 : vector<16x1xf32> to vector<16x32xf32>
    %304 = arith.subf %298, %303 : vector<16x32xf32>
    %305 = arith.mulf %304, %304 : vector<16x32xf32>
    %cst_98 = arith.constant dense<0.000000e+00> : vector<16xf32>
    %306 = vector.multi_reduction <add>, %305, %cst_98 [1] : vector<16x32xf32> to vector<16xf32>
    %307 = vector.shape_cast %306 : vector<16xf32> to vector<16x1xf32>
    %cst_99 = arith.constant 3.200000e+01 : f32
    %308 = vector.broadcast %cst_99 : f32 to vector<16x1xf32>
    %309 = arith.divf %307, %308 : vector<16x1xf32>
    %310 = vector.broadcast %302 : vector<16x1xf32> to vector<16x32xf32>
    %311 = arith.subf %298, %310 : vector<16x32xf32>
    %cst_100 = arith.constant 9.99999974E-6 : f32
    %312 = vector.broadcast %cst_100 : f32 to vector<16x1xf32>
    %313 = arith.addf %309, %312 : vector<16x1xf32>
    %314 = math.rsqrt %313 : vector<16x1xf32>
    %315 = vector.broadcast %314 : vector<16x1xf32> to vector<16x32xf32>
    %316 = arith.mulf %311, %315 : vector<16x32xf32>
    %317 = vector.broadcast %183 : vector<1x32xf32> to vector<16x32xf32>
    %318 = arith.mulf %316, %317 : vector<16x32xf32>
    %319 = vector.broadcast %185 : vector<1x32xf32> to vector<16x32xf32>
    %320 = arith.addf %318, %319 : vector<16x32xf32>
    %321 = arith.truncf %320 : vector<16x32xf32> to vector<16x32xbf16>
    %c1_101 = arith.constant 1 : index
    %c0_102 = arith.constant 0 : index
    %c0_103 = arith.constant 0 : index
    %322 = vector.load %arg6[%c1_101, %c0_102, %c0_103] : memref<2x32x128xbf16, #tpu.memory_space<vmem>>, vector<1x32x128xbf16>
    %323 = vector.shape_cast %322 : vector<1x32x128xbf16> to vector<32x128xbf16>
    %cst_104 = arith.constant dense<0.000000e+00> : vector<16x128xf32>
    %324 = tpu.matmul %321, %323, %cst_104 {dimension_numbers = #tpu.dot_dimension_numbers<[1], [0], [0], [1], [0, 0, 1, 1], [], []>} : vector<16x32xbf16>, vector<32x128xbf16>, vector<16x128xf32> -> vector<16x128xf32>
    %c1_105 = arith.constant 1 : index
    %c0_106 = arith.constant 0 : index
    %c0_107 = arith.constant 0 : index
    %325 = vector.load %arg7[%c1_105, %c0_106, %c0_107] : memref<2x1x128xf32, #tpu.memory_space<vmem>>, vector<1x1x128xf32>
    %326 = vector.shape_cast %325 : vector<1x1x128xf32> to vector<1x128xf32>
    %327 = vector.broadcast %326 : vector<1x128xf32> to vector<16x128xf32>
    %328 = arith.addf %324, %327 : vector<16x128xf32>
    %cst_108 = arith.constant 0.000000e+00 : f32
    %329 = vector.broadcast %cst_108 : f32 to vector<16x128xf32>
    %330 = arith.maximumf %328, %329 : vector<16x128xf32>
    %331 = arith.truncf %330 : vector<16x128xf32> to vector<16x128xbf16>
    %c1_109 = arith.constant 1 : index
    %c0_110 = arith.constant 0 : index
    %c0_111 = arith.constant 0 : index
    %332 = vector.load %arg8[%c1_109, %c0_110, %c0_111] : memref<2x128x32xbf16, #tpu.memory_space<vmem>>, vector<1x128x32xbf16>
    %333 = vector.shape_cast %332 : vector<1x128x32xbf16> to vector<128x32xbf16>
    %cst_112 = arith.constant dense<0.000000e+00> : vector<16x32xf32>
    %334 = tpu.matmul %331, %333, %cst_112 {dimension_numbers = #tpu.dot_dimension_numbers<[1], [0], [0], [1], [0, 0, 1, 1], [], []>} : vector<16x128xbf16>, vector<128x32xbf16>, vector<16x32xf32> -> vector<16x32xf32>
    %c1_113 = arith.constant 1 : index
    %c0_114 = arith.constant 0 : index
    %c0_115 = arith.constant 0 : index
    %335 = vector.load %arg9[%c1_113, %c0_114, %c0_115] : memref<2x1x32xf32, #tpu.memory_space<vmem>>, vector<1x1x32xf32>
    %336 = vector.shape_cast %335 : vector<1x1x32xf32> to vector<1x32xf32>
    %337 = vector.broadcast %336 : vector<1x32xf32> to vector<16x32xf32>
    %338 = arith.addf %334, %337 : vector<16x32xf32>
    %339 = arith.addf %298, %338 : vector<16x32xf32>
    %c0_116 = arith.constant 0 : index
    %c0_117 = arith.constant 0 : index
    %340 = vector.load %arg10[%c0_116, %c0_117] : memref<1x32xf32, #tpu.memory_space<vmem>>, vector<1x32xf32>
    %c0_118 = arith.constant 0 : index
    %c0_119 = arith.constant 0 : index
    %341 = vector.load %arg11[%c0_118, %c0_119] : memref<1x32xf32, #tpu.memory_space<vmem>>, vector<1x32xf32>
    %cst_120 = arith.constant dense<0.000000e+00> : vector<16xf32>
    %342 = vector.multi_reduction <add>, %339, %cst_120 [1] : vector<16x32xf32> to vector<16xf32>
    %343 = vector.shape_cast %342 : vector<16xf32> to vector<16x1xf32>
    %cst_121 = arith.constant 3.200000e+01 : f32
    %344 = vector.broadcast %cst_121 : f32 to vector<16x1xf32>
    %345 = arith.divf %343, %344 : vector<16x1xf32>
    %346 = vector.broadcast %345 : vector<16x1xf32> to vector<16x32xf32>
    %347 = arith.subf %339, %346 : vector<16x32xf32>
    %348 = arith.mulf %347, %347 : vector<16x32xf32>
    %cst_122 = arith.constant dense<0.000000e+00> : vector<16xf32>
    %349 = vector.multi_reduction <add>, %348, %cst_122 [1] : vector<16x32xf32> to vector<16xf32>
    %350 = vector.shape_cast %349 : vector<16xf32> to vector<16x1xf32>
    %cst_123 = arith.constant 3.200000e+01 : f32
    %351 = vector.broadcast %cst_123 : f32 to vector<16x1xf32>
    %352 = arith.divf %350, %351 : vector<16x1xf32>
    %353 = vector.broadcast %345 : vector<16x1xf32> to vector<16x32xf32>
    %354 = arith.subf %339, %353 : vector<16x32xf32>
    %cst_124 = arith.constant 9.99999974E-6 : f32
    %355 = vector.broadcast %cst_124 : f32 to vector<16x1xf32>
    %356 = arith.addf %352, %355 : vector<16x1xf32>
    %357 = math.rsqrt %356 : vector<16x1xf32>
    %358 = vector.broadcast %357 : vector<16x1xf32> to vector<16x32xf32>
    %359 = arith.mulf %354, %358 : vector<16x32xf32>
    %360 = vector.broadcast %340 : vector<1x32xf32> to vector<16x32xf32>
    %361 = arith.mulf %359, %360 : vector<16x32xf32>
    %362 = vector.broadcast %341 : vector<1x32xf32> to vector<16x32xf32>
    %363 = arith.addf %361, %362 : vector<16x32xf32>
    %364 = arith.truncf %363 : vector<16x32xf32> to vector<16x32xbf16>
    %c0_125 = arith.constant 0 : index
    %c0_126 = arith.constant 0 : index
    %365 = vector.load %arg12[%c0_125, %c0_126] : memref<32x128xbf16, #tpu.memory_space<vmem>>, vector<32x128xbf16>
    %cst_127 = arith.constant dense<0.000000e+00> : vector<16x128xf32>
    %366 = tpu.matmul %364, %365, %cst_127 {dimension_numbers = #tpu.dot_dimension_numbers<[1], [0], [0], [1], [0, 0, 1, 1], [], []>} : vector<16x32xbf16>, vector<32x128xbf16>, vector<16x128xf32> -> vector<16x128xf32>
    %c0_128 = arith.constant 0 : index
    %c0_129 = arith.constant 0 : index
    %367 = vector.load %arg13[%c0_128, %c0_129] : memref<1x128xf32, #tpu.memory_space<vmem>>, vector<1x128xf32>
    %368 = vector.broadcast %367 : vector<1x128xf32> to vector<16x128xf32>
    %369 = arith.addf %366, %368 : vector<16x128xf32>
    %c0_130 = arith.constant 0 : index
    %c0_131 = arith.constant 0 : index
    %370 = vector.load %arg14[%c0_130, %c0_131] : memref<16x128xf32, #tpu.memory_space<vmem>>, vector<16x128xf32>
    tpu.vector_store %arg14[%c0_130, %c0_131], %369 {strides = array<i32>} : memref<16x128xf32, #tpu.memory_space<vmem>>, vector<16x128xf32>,
    return
  }
}

</mosaic_0001>

<llo_original>
// kernel: gpt2_forward.1
$region0: #{gpt2_forward.1}
  #allocation0 [shape = 'u32[]', space=smem, size = 0x4, offset = 0x4, fixed_abs, tag = 'smem constant byte address 0x4 - core index']
  #allocation1 [shape = 'u32[144,128]{1,0:T(1,128)}', space=vmem, size = 0x12000, scoped, tag = 'internal scratch']
  %s0 = inlined_call_operand.vmem [shape: f32[16,32], index: 0, kind: input, shape index: {}]
  %s1 = inlined_call_operand.vmem [shape: bf16[2,32,96], index: 1, kind: input, shape index: {}]
  %s2 = inlined_call_operand.vmem [shape: bf16[2,32,32], index: 2, kind: input, shape index: {}]
  %s3 = inlined_call_operand.vmem [shape: f32[2,1,32], index: 3, kind: input, shape index: {}]
  %s4 = inlined_call_operand.vmem [shape: f32[2,1,32], index: 4, kind: input, shape index: {}]
  %s5 = inlined_call_operand.vmem [shape: f32[2,1,32], index: 5, kind: input, shape index: {}]
  %s6 = inlined_call_operand.vmem [shape: bf16[2,32,128], index: 6, kind: input, shape index: {}]
  %s7 = inlined_call_operand.vmem [shape: f32[2,1,128], index: 7, kind: input, shape index: {}]
  %s8 = inlined_call_operand.vmem [shape: bf16[2,128,32], index: 8, kind: input, shape index: {}]
  %s9 = inlined_call_operand.vmem [shape: f32[2,1,32], index: 9, kind: input, shape index: {}]
  %s10 = inlined_call_operand.vmem [shape: f32[1,32], index: 10, kind: input, shape index: {}]
  %s11 = inlined_call_operand.vmem [shape: f32[1,32], index: 11, kind: input, shape index: {}]
  %s12 = inlined_call_operand.vmem [shape: bf16[32,128], index: 12, kind: input, shape index: {}]
  %s13 = inlined_call_operand.vmem [shape: f32[1,128], index: 13, kind: input, shape index: {}]
  %s14 = inlined_call_operand.vmem [shape: f32[16,128], index: 14, kind: output, shape index: {}]
  %s15 = sld [smem:[#allocation0]]
  $region66: #{gpt2_forward.1} parent=0
    _
  %s17 = ssub.s32 1, %s15
  %s18 = scalar_select 0, %s17, %s15
  // Predicated region
  $region2: #{gpt2_forward.1} parent=0 // pred_check
    _
  $region3: #{gpt2_forward.1} parent=0 // pred_check_branch
    %20 = sbr.rel (0) target = $region5
  $region4: #{gpt2_forward.1} parent=0 // pred_region
    _
  $region5: #{gpt2_forward.1} parent=0 // pred_fallthru
    _
  // Predicated region
  $region6: #{gpt2_forward.1} parent=0 // pred_check
    _
  $region7: #{gpt2_forward.1} parent=0 // pred_check_branch
    %22 = sbr.rel (0) target = $region9
  $region8: #{gpt2_forward.1} parent=0 // pred_region
    _
  $region9: #{gpt2_forward.1} parent=0 // pred_fallthru
    _
  // Predicated region
  $region10: #{gpt2_forward.1} parent=0 // pred_check
    _
  $region11: #{gpt2_forward.1} parent=0 // pred_check_branch
    %24 = sbr.rel (0) target = $region13
  $region12: #{gpt2_forward.1} parent=0 // pred_region
    _
  $region13: #{gpt2_forward.1} parent=0 // pred_fallthru
    _
  // Predicated region
  $region14: #{gpt2_forward.1} parent=0 // pred_check
    _
  $region15: #{gpt2_forward.1} parent=0 // pred_check_branch
    %26 = sbr.rel (0) target = $region17
  $region16: #{gpt2_forward.1} parent=0 // pred_region
    _
  $region17: #{gpt2_forward.1} parent=0 // pred_fallthru
    _
  // Predicated region
  $region18: #{gpt2_forward.1} parent=0 // pred_check
    _
  $region19: #{gpt2_forward.1} parent=0 // pred_check_branch
    %28 = sbr.rel (0) target = $region21
  $region20: #{gpt2_forward.1} parent=0 // pred_region
    _
  $region21: #{gpt2_forward.1} parent=0 // pred_fallthru
    _
  // Predicated region
  $region22: #{gpt2_forward.1} parent=0 // pred_check
    _
  $region23: #{gpt2_forward.1} parent=0 // pred_check_branch
    %30 = sbr.rel (0) target = $region25
  $region24: #{gpt2_forward.1} parent=0 // pred_region
    _
  $region25: #{gpt2_forward.1} parent=0 // pred_fallthru
    _
  // Predicated region
  $region26: #{gpt2_forward.1} parent=0 // pred_check
    _
  $region27: #{gpt2_forward.1} parent=0 // pred_check_branch
    %32 = sbr.rel (0) target = $region29
  $region28: #{gpt2_forward.1} parent=0 // pred_region
    _
  $region29: #{gpt2_forward.1} parent=0 // pred_fallthru
    _
  // Predicated region
  $region30: #{gpt2_forward.1} parent=0 // pred_check
    _
  $region31: #{gpt2_forward.1} parent=0 // pred_check_branch
    %34 = sbr.rel (0) target = $region33
  $region32: #{gpt2_forward.1} parent=0 // pred_region
    _
  $region33: #{gpt2_forward.1} parent=0 // pred_fallthru
    _
  // Predicated region
  $region34: #{gpt2_forward.1} parent=0 // pred_check
    _
  $region35: #{gpt2_forward.1} parent=0 // pred_check_branch
    %36 = sbr.rel (0) target = $region37
  $region36: #{gpt2_forward.1} parent=0 // pred_region
    _
  $region37: #{gpt2_forward.1} parent=0 // pred_fallthru
    _
  // Predicated region
  $region38: #{gpt2_forward.1} parent=0 // pred_check
    _
  $region39: #{gpt2_forward.1} parent=0 // pred_check_branch
    %38 = sbr.rel (0) target = $region41
  $region40: #{gpt2_forward.1} parent=0 // pred_region
    _
  $region41: #{gpt2_forward.1} parent=0 // pred_fallthru
    _
  // Predicated region
  $region42: #{gpt2_forward.1} parent=0 // pred_check
    _
  $region43: #{gpt2_forward.1} parent=0 // pred_check_branch
    %40 = sbr.rel (0) target = $region45
  $region44: #{gpt2_forward.1} parent=0 // pred_region
    _
  $region45: #{gpt2_forward.1} parent=0 // pred_fallthru
    _
  // Predicated region
  $region46: #{gpt2_forward.1} parent=0 // pred_check
    _
  $region47: #{gpt2_forward.1} parent=0 // pred_check_branch
    %42 = sbr.rel (0) target = $region49
  $region48: #{gpt2_forward.1} parent=0 // pred_region
    _
  $region49: #{gpt2_forward.1} parent=0 // pred_fallthru
    _
  // Predicated region
  $region50: #{gpt2_forward.1} parent=0 // pred_check
    _
  $region51: #{gpt2_forward.1} parent=0 // pred_check_branch
    %44 = sbr.rel (0) target = $region53
  $region52: #{gpt2_forward.1} parent=0 // pred_region
    _
  $region53: #{gpt2_forward.1} parent=0 // pred_fallthru
    _
  // Predicated region
  $region54: #{gpt2_forward.1} parent=0 // pred_check
    _
  $region55: #{gpt2_forward.1} parent=0 // pred_check_branch
    %46 = sbr.rel (0) target = $region57
  $region56: #{gpt2_forward.1} parent=0 // pred_region
    _
  $region57: #{gpt2_forward.1} parent=0 // pred_fallthru
    _
  %v48 = vld [vmem:[%s0] sm:$0xff]
  %v49 = vld [vmem:[%s0 + $0x8] sm:$0xff]
  %v50 = vlaneseq
  %v51 = vshrl.u32 %v50, 7
  %v52 = vadd.s32 %v51, 8
  %v53 = vadd.s32 %v51, 16
  %v54 = vadd.s32 %v51, 24
  %v55 = vlaneseq
  %v56 = vand.u32 %v55, 127
  %vm57 = vcmp.lt.s32.totalorder %v51, 0
  %v58 = vsub.s32 0, %v51
  %v59 = vsel %vm57, %v58, %v51
  %v60 = vshrl.u32 %v59, 3
  %v61 = vand.u32 %v59, 7
  %v62 = vsub.s32 0, %v61
  %v63 = vsel %vm57, %v62, %v61
  %vm64 = vcmp.lt.s32.totalorder %v52, 0
  %v65 = vsub.s32 0, %v52
  %v66 = vsel %vm64, %v65, %v52
  %v67 = vshrl.u32 %v66, 3
  %v68 = vand.u32 %v66, 7
  %v69 = vsub.s32 0, %v68
  %v70 = vsel %vm64, %v69, %v68
  %vm71 = vcmp.lt.s32.totalorder %v53, 0
  %v72 = vsub.s32 0, %v53
  %v73 = vsel %vm71, %v72, %v53
  %v74 = vshrl.u32 %v73, 3
  %v75 = vand.u32 %v73, 7
  %v76 = vsub.s32 0, %v75
  %v77 = vsel %vm71, %v76, %v75
  %vm78 = vcmp.lt.s32.totalorder %v54, 0
  %v79 = vsub.s32 0, %v54
  %v80 = vsel %vm78, %v79, %v54
  %v81 = vshrl.u32 %v80, 3
  %v82 = vand.u32 %v80, 7
  %v83 = vsub.s32 0, %v82
  %v84 = vsel %vm78, %v83, %v82
  %vm85 = vcmp.ne.s32.totalorder %v63, 0
  %vm86 = vcmp.ne.s32.totalorder %v70, 0
  %vm87 = vcmp.ne.s32.totalorder %v77, 0
  %vm88 = vcmp.ne.s32.totalorder %v84, 0
  %vm89 = vcmp.lt.s32.totalorder %v63, 0
  %vm90 = vcmp.lt.s32.totalorder %v70, 0
  %vm91 = vcmp.lt.s32.totalorder %v77, 0
  %vm92 = vcmp.lt.s32.totalorder %v84, 0
  %vm93 = vmand %vm89, %vm85
  %vm94 = vmand %vm90, %vm86
  %vm95 = vmand %vm91, %vm87
  %vm96 = vmand %vm92, %vm88
  %v97 = vadd.s32 %v63, 8
  %v98 = vadd.s32 %v70, 8
  %v99 = vadd.s32 %v77, 8
  %v100 = vadd.s32 %v84, 8
  %v101 = vsel %vm93, %v97, %v63
  %v102 = vsel %vm94, %v98, %v70
  %v103 = vsel %vm95, %v99, %v77
  %v104 = vsel %vm96, %v100, %v84
  %vm105 = vcmp.le.s32.totalorder %v56, %v101
  %vm106 = vcmp.le.s32.totalorder %v56, %v102
  %vm107 = vcmp.le.s32.totalorder %v56, %v103
  %vm108 = vcmp.le.s32.totalorder %v56, %v104
  %v109 = vsel %vm105, 0.0, -1e+09
  %v110 = vsel %vm106, 0.0, -1e+09
  %v111 = vsel %vm107, 0.0, -1e+09
  %v112 = vsel %vm108, 0.0, -1e+09
  %v113 = vld [vmem:[%s4] sm:$0x1]
  %v114 = vld [vmem:[%s5] sm:$0x1]
  %vm115 = vcmask 261120
  %v116 = vsel %vm115, %v48, 0.0
  %117 = vadd.xlane.f32.xlu0 %v116
  %v118 = vpop.xlane.xlu0 %117
  %v119 = vsel %vm115, %v49, 0.0
  %120 = vadd.xlane.f32.xlu0 %v119
  %v121 = vpop.xlane.xlu0 %120
  %v122 = vrcp.pop 32.0
  %v123 = vmul.f32 %v118, %v122
  %v124 = vmul.f32 %v121, %v122
  %v125 = vsub.f32 %v48, %v123
  %v126 = vsub.f32 %v49, %v124
  %v127 = vmul.f32 %v125, %v125
  %v128 = vmul.f32 %v126, %v126
  %v129 = vsel %vm115, %v127, 0.0
  %130 = vadd.xlane.f32.xlu0 %v129
  %v131 = vpop.xlane.xlu0 %130
  %v132 = vsel %vm115, %v128, 0.0
  %133 = vadd.xlane.f32.xlu0 %v132
  %v134 = vpop.xlane.xlu0 %133
  %v135 = vmul.f32 %v131, %v122
  %v136 = vmul.f32 %v134, %v122
  %v137 = vadd.f32 %v135, 1e-05
  %v138 = vadd.f32 %v136, 1e-05
  %v139 = vrsqrt.pop %v137
  %v140 = vrsqrt.pop %v138
  %v141 = vmul.f32 %v125, %v139
  %v142 = vmul.f32 %v126, %v140
  %v144 = vlaneseq
  %v145 = vshrl.u32 %v144, 7
  %v146 = vsub.s32 0, %v145
  %v147 = vrot.slane %v113, %v146
  %v149 = vmul.f32 %v141, %v147
  %v150 = vmul.f32 %v142, %v147
  %v152 = vlaneseq
  %v153 = vshrl.u32 %v152, 7
  %v154 = vsub.s32 0, %v153
  %v155 = vrot.slane %v114, %v154
  %v157 = vadd.f32 %v149, %v155
  %v158 = vadd.f32 %v150, %v155
  %v159 = vpack.c.bf16 %v158, %v157
  %v160 = vld [vmem:[%s1] sm:$0xf]
  %v161 = vld [vmem:[%s1 + $0x4] sm:$0xf]
  %v162 = vld [vmem:[%s1 + $0x8] sm:$0xf]
  %v163 = vld [vmem:[%s1 + $0xc] sm:$0xf]
  %v168 = vunpack.c.l.b16 %v160
  %v169 = vunpack.c.l.b16 %v161
  %v170 = vunpack.c.l.b16 %v162
  %v171 = vunpack.c.l.b16 %v163
  %v172 = vpack.c.b16 %v169, %v168
  %v173 = vpack.c.b16 %v171, %v170
  %v177 = vsel %vm115, %v159, 0
  %179 = vmatprep.subr.bf16.mxu0 0
  %180 = vmatpush1.bf16.msra.mxu0 %v172
  %181 = vmatprep.subr.bf16.mxu0 0
  %182 = vmatpush1.bf16.msra.mxu0 %v173
  %183 = vmatprep.subr.bf16.mxu0 0
  %184 = vmatpush1.bf16.msra.mxu0 0
  %185 = vmatprep.subr.bf16.mxu0 0
  %186 = vmatpush1.bf16.msra.mxu0 0
  %187 = vmatprep.subr.bf16.mxu0 0
  %188 = vmatpush1.bf16.msra.mxu0 0
  %189 = vmatprep.subr.bf16.mxu0 0
  %190 = vmatpush1.bf16.msra.mxu0 0
  %191 = vmatprep.subr.bf16.mxu0 0
  %192 = vmatpush1.bf16.msra.mxu0 0
  %193 = vmatprep.subr.bf16.mxu0 0
  %194 = vmatpush1.bf16.msra.mxu0 0
  %195 = vmatprep.subr.bf16.mxu0 0
  %196 = vmatpush1.bf16.msra.mxu0 0
  %197 = vmatprep.subr.bf16.mxu0 0
  %198 = vmatpush1.bf16.msra.mxu0 0
  %199 = vmatprep.subr.bf16.mxu0 0
  %200 = vmatpush1.bf16.msra.mxu0 0
  %201 = vmatprep.subr.bf16.mxu0 0
  %202 = vmatpush1.bf16.msra.mxu0 0
  %203 = vmatprep.subr.bf16.mxu0 0
  %204 = vmatpush1.bf16.msra.mxu0 0
  %205 = vmatprep.subr.bf16.mxu0 0
  %206 = vmatpush1.bf16.msra.mxu0 0
  %207 = vmatprep.subr.bf16.mxu0 0
  %208 = vmatpush1.bf16.msra.mxu0 0
  %209 = vmatprep.subr.bf16.mxu0 0
  %210 = vmatpush1.bf16.msra.mxu0 0
  %211 = vmatprep.mubr.bf16.mxu0 0
  %212 = vmatmul.mubr.bf16.gmra.mrb[0].mxu0 %v177
  %v213 = vpop.f32.mrb[0].mxu0
  %v214 = vadd.f32 0.0, %v213
  %v215 = vpop.f32.mrb[0].mxu0
  %v216 = vpop.f32.mrb[0].mxu0
  %v217 = vadd.f32 0.0, %v216
  %v218 = vpop.f32.mrb[0].mxu0
  %219 = vdwg.mxu0
  %v220 = vpack.c.bf16 %v214, %v214
  %v221 = vpack.c.bf16 %v217, %v217
  %223 = vrot.lane.b32.xlu0 %v220, 96
  %v224 = vpop.permute.xlu0 %223
  %vm225 = vcmask 64512
  %v227 = vsel %vm225, %v220, 0
  %v230 = vsel %vm225, %v224, 0
  %232 = vmatprep.subr.bf16.mxu0 0
  %233 = vmatpush1.bf16.xpose.msra.mxu0 %v230
  %234 = vmatprep.subr.bf16.mxu0 0
  %235 = vmatpush1.bf16.xpose.msra.mxu0 0
  %236 = vmatprep.subr.bf16.mxu0 0
  %237 = vmatpush1.bf16.xpose.msra.mxu0 0
  %238 = vmatprep.subr.bf16.mxu0 0
  %239 = vmatpush1.bf16.xpose.msra.mxu0 0
  %240 = vmatprep.subr.bf16.mxu0 0
  %241 = vmatpush1.bf16.xpose.msra.mxu0 0
  %242 = vmatprep.subr.bf16.mxu0 0
  %243 = vmatpush1.bf16.xpose.msra.mxu0 0
  %244 = vmatprep.subr.bf16.mxu0 0
  %245 = vmatpush1.bf16.xpose.msra.mxu0 0
  %246 = vmatprep.subr.bf16.mxu0 0
  %247 = vmatpush1.bf16.xpose.msra.mxu0 0
  %248 = vmatprep.subr.bf16.mxu0 0
  %249 = vmatpush1.bf16.xpose.msra.mxu0 0
  %250 = vmatprep.subr.bf16.mxu0 0
  %251 = vmatpush1.bf16.xpose.msra.mxu0 0
  %252 = vmatprep.subr.bf16.mxu0 0
  %253 = vmatpush1.bf16.xpose.msra.mxu0 0
  %254 = vmatprep.subr.bf16.mxu0 0
  %255 = vmatpush1.bf16.xpose.msra.mxu0 0
  %256 = vmatprep.subr.bf16.mxu0 0
  %257 = vmatpush1.bf16.xpose.msra.mxu0 0
  %258 = vmatprep.subr.bf16.mxu0 0
  %259 = vmatpush1.bf16.xpose.msra.mxu0 0
  %260 = vmatprep.subr.bf16.mxu0 0
  %261 = vmatpush1.bf16.xpose.msra.mxu0 0
  %262 = vmatprep.subr.bf16.mxu0 0
  %263 = vmatpush1.bf16.xpose.msra.mxu0 0
  %264 = vmatprep.mubr.bf16.mxu0 0
  %265 = vmatmul.mubr.bf16.gmra.mrb[0].mxu0 %v227
  %v266 = vpop.f32.mrb[0].mxu0
  %v267 = vadd.f32 0.0, %v266
  %v268 = vpop.f32.mrb[0].mxu0
  %v269 = vpop.f32.mrb[0].mxu0
  %v270 = vpop.f32.mrb[0].mxu0
  %271 = vdwg.mxu0
  %273 = vrot.lane.b32.xlu0 %v221, 96
  %v274 = vpop.permute.xlu0 %273
  %v276 = vsel %vm225, %v221, 0
  %v279 = vsel %vm225, %v274, 0
  %281 = vmatprep.subr.bf16.mxu0 0
  %282 = vmatpush1.bf16.xpose.msra.mxu0 %v279
  %283 = vmatprep.subr.bf16.mxu0 0
  %284 = vmatpush1.bf16.xpose.msra.mxu0 0
  %285 = vmatprep.subr.bf16.mxu0 0
  %286 = vmatpush1.bf16.xpose.msra.mxu0 0
  %287 = vmatprep.subr.bf16.mxu0 0
  %288 = vmatpush1.bf16.xpose.msra.mxu0 0
  %289 = vmatprep.subr.bf16.mxu0 0
  %290 = vmatpush1.bf16.xpose.msra.mxu0 0
  %291 = vmatprep.subr.bf16.mxu0 0
  %292 = vmatpush1.bf16.xpose.msra.mxu0 0
  %293 = vmatprep.subr.bf16.mxu0 0
  %294 = vmatpush1.bf16.xpose.msra.mxu0 0
  %295 = vmatprep.subr.bf16.mxu0 0
  %296 = vmatpush1.bf16.xpose.msra.mxu0 0
  %297 = vmatprep.subr.bf16.mxu0 0
  %298 = vmatpush1.bf16.xpose.msra.mxu0 0
  %299 = vmatprep.subr.bf16.mxu0 0
  %300 = vmatpush1.bf16.xpose.msra.mxu0 0
  %301 = vmatprep.subr.bf16.mxu0 0
  %302 = vmatpush1.bf16.xpose.msra.mxu0 0
  %303 = vmatprep.subr.bf16.mxu0 0
  %304 = vmatpush1.bf16.xpose.msra.mxu0 0
  %305 = vmatprep.subr.bf16.mxu0 0
  %306 = vmatpush1.bf16.xpose.msra.mxu0 0
  %307 = vmatprep.subr.bf16.mxu0 0
  %308 = vmatpush1.bf16.xpose.msra.mxu0 0
  %309 = vmatprep.subr.bf16.mxu0 0
  %310 = vmatpush1.bf16.xpose.msra.mxu0 0
  %311 = vmatprep.subr.bf16.mxu0 0
  %312 = vmatpush1.bf16.xpose.msra.mxu0 0
  %313 = vmatprep.mubr.bf16.mxu0 0
  %314 = vmatmul.mubr.bf16.gmra.mrb[0].mxu0 %v276
  %v315 = vpop.f32.mrb[0].mxu0
  %v316 = vadd.f32 0.0, %v315
  %v317 = vpop.f32.mrb[0].mxu0
  %v318 = vpop.f32.mrb[0].mxu0
  %v319 = vpop.f32.mrb[0].mxu0
  %320 = vdwg.mxu0
  %321 = vrot.lane.b32.xlu0 %v220, 120
  %v322 = vpop.permute.xlu0 %321
  %323 = vrot.lane.b32.xlu0 %v220, 88
  %v324 = vpop.permute.xlu0 %323
  %v326 = vsel %vm225, %v322, 0
  %v329 = vsel %vm225, %v324, 0
  %331 = vmatprep.subr.bf16.mxu0 0
  %332 = vmatpush1.bf16.xpose.msra.mxu0 %v329
  %333 = vmatprep.subr.bf16.mxu0 0
  %334 = vmatpush1.bf16.xpose.msra.mxu0 0
  %335 = vmatprep.subr.bf16.mxu0 0
  %336 = vmatpush1.bf16.xpose.msra.mxu0 0
  %337 = vmatprep.subr.bf16.mxu0 0
  %338 = vmatpush1.bf16.xpose.msra.mxu0 0
  %339 = vmatprep.subr.bf16.mxu0 0
  %340 = vmatpush1.bf16.xpose.msra.mxu0 0
  %341 = vmatprep.subr.bf16.mxu0 0
  %342 = vmatpush1.bf16.xpose.msra.mxu0 0
  %343 = vmatprep.subr.bf16.mxu0 0
  %344 = vmatpush1.bf16.xpose.msra.mxu0 0
  %345 = vmatprep.subr.bf16.mxu0 0
  %346 = vmatpush1.bf16.xpose.msra.mxu0 0
  %347 = vmatprep.subr.bf16.mxu0 0
  %348 = vmatpush1.bf16.xpose.msra.mxu0 0
  %349 = vmatprep.subr.bf16.mxu0 0
  %350 = vmatpush1.bf16.xpose.msra.mxu0 0
  %351 = vmatprep.subr.bf16.mxu0 0
  %352 = vmatpush1.bf16.xpose.msra.mxu0 0
  %353 = vmatprep.subr.bf16.mxu0 0
  %354 = vmatpush1.bf16.xpose.msra.mxu0 0
  %355 = vmatprep.subr.bf16.mxu0 0
  %356 = vmatpush1.bf16.xpose.msra.mxu0 0
  %357 = vmatprep.subr.bf16.mxu0 0
  %358 = vmatpush1.bf16.xpose.msra.mxu0 0
  %359 = vmatprep.subr.bf16.mxu0 0
  %360 = vmatpush1.bf16.xpose.msra.mxu0 0
  %361 = vmatprep.subr.bf16.mxu0 0
  %362 = vmatpush1.bf16.xpose.msra.mxu0 0
  %363 = vmatprep.mubr.bf16.mxu0 0
  %364 = vmatmul.mubr.bf16.gmra.mrb[0].mxu0 %v326
  %v365 = vpop.f32.mrb[0].mxu0
  %v366 = vadd.f32 0.0, %v365
  %v367 = vpop.f32.mrb[0].mxu0
  %v368 = vpop.f32.mrb[0].mxu0
  %v369 = vpop.f32.mrb[0].mxu0
  %370 = vdwg.mxu0
  %371 = vrot.lane.b32.xlu0 %v221, 120
  %v372 = vpop.permute.xlu0 %371
  %373 = vrot.lane.b32.xlu0 %v221, 88
  %v374 = vpop.permute.xlu0 %373
  %v376 = vsel %vm225, %v372, 0
  %v379 = vsel %vm225, %v374, 0
  %381 = vmatprep.subr.bf16.mxu0 0
  %382 = vmatpush1.bf16.xpose.msra.mxu0 %v379
  %383 = vmatprep.subr.bf16.mxu0 0
  %384 = vmatpush1.bf16.xpose.msra.mxu0 0
  %385 = vmatprep.subr.bf16.mxu0 0
  %386 = vmatpush1.bf16.xpose.msra.mxu0 0
  %387 = vmatprep.subr.bf16.mxu0 0
  %388 = vmatpush1.bf16.xpose.msra.mxu0 0
  %389 = vmatprep.subr.bf16.mxu0 0
  %390 = vmatpush1.bf16.xpose.msra.mxu0 0
  %391 = vmatprep.subr.bf16.mxu0 0
  %392 = vmatpush1.bf16.xpose.msra.mxu0 0
  %393 = vmatprep.subr.bf16.mxu0 0
  %394 = vmatpush1.bf16.xpose.msra.mxu0 0
  %395 = vmatprep.subr.bf16.mxu0 0
  %396 = vmatpush1.bf16.xpose.msra.mxu0 0
  %397 = vmatprep.subr.bf16.mxu0 0
  %398 = vmatpush1.bf16.xpose.msra.mxu0 0
  %399 = vmatprep.subr.bf16.mxu0 0
  %400 = vmatpush1.bf16.xpose.msra.mxu0 0
  %401 = vmatprep.subr.bf16.mxu0 0
  %402 = vmatpush1.bf16.xpose.msra.mxu0 0
  %403 = vmatprep.subr.bf16.mxu0 0
  %404 = vmatpush1.bf16.xpose.msra.mxu0 0
  %405 = vmatprep.subr.bf16.mxu0 0
  %406 = vmatpush1.bf16.xpose.msra.mxu0 0
  %407 = vmatprep.subr.bf16.mxu0 0
  %408 = vmatpush1.bf16.xpose.msra.mxu0 0
  %409 = vmatprep.subr.bf16.mxu0 0
  %410 = vmatpush1.bf16.xpose.msra.mxu0 0
  %411 = vmatprep.subr.bf16.mxu0 0
  %412 = vmatpush1.bf16.xpose.msra.mxu0 0
  %413 = vmatprep.mubr.bf16.mxu0 0
  %414 = vmatmul.mubr.bf16.gmra.mrb[0].mxu0 %v376
  %v415 = vpop.f32.mrb[0].mxu0
  %v416 = vadd.f32 0.0, %v415
  %v417 = vpop.f32.mrb[0].mxu0
  %v418 = vpop.f32.mrb[0].mxu0
  %v419 = vpop.f32.mrb[0].mxu0
  %420 = vdwg.mxu0
  %421 = vrot.lane.b32.xlu0 %v220, 112
  %v422 = vpop.permute.xlu0 %421
  %423 = vrot.lane.b32.xlu0 %v220, 80
  %v424 = vpop.permute.xlu0 %423
  %v426 = vsel %vm225, %v422, 0
  %v429 = vsel %vm225, %v424, 0
  %431 = vmatprep.subr.bf16.mxu0 0
  %432 = vmatpush1.bf16.xpose.msra.mxu0 %v429
  %433 = vmatprep.subr.bf16.mxu0 0
  %434 = vmatpush1.bf16.xpose.msra.mxu0 0
  %435 = vmatprep.subr.bf16.mxu0 0
  %436 = vmatpush1.bf16.xpose.msra.mxu0 0
  %437 = vmatprep.subr.bf16.mxu0 0
  %438 = vmatpush1.bf16.xpose.msra.mxu0 0
  %439 = vmatprep.subr.bf16.mxu0 0
  %440 = vmatpush1.bf16.xpose.msra.mxu0 0
  %441 = vmatprep.subr.bf16.mxu0 0
  %442 = vmatpush1.bf16.xpose.msra.mxu0 0
  %443 = vmatprep.subr.bf16.mxu0 0
  %444 = vmatpush1.bf16.xpose.msra.mxu0 0
  %445 = vmatprep.subr.bf16.mxu0 0
  %446 = vmatpush1.bf16.xpose.msra.mxu0 0
  %447 = vmatprep.subr.bf16.mxu0 0
  %448 = vmatpush1.bf16.xpose.msra.mxu0 0
  %449 = vmatprep.subr.bf16.mxu0 0
  %450 = vmatpush1.bf16.xpose.msra.mxu0 0
  %451 = vmatprep.subr.bf16.mxu0 0
  %452 = vmatpush1.bf16.xpose.msra.mxu0 0
  %453 = vmatprep.subr.bf16.mxu0 0
  %454 = vmatpush1.bf16.xpose.msra.mxu0 0
  %455 = vmatprep.subr.bf16.mxu0 0
  %456 = vmatpush1.bf16.xpose.msra.mxu0 0
  %457 = vmatprep.subr.bf16.mxu0 0
  %458 = vmatpush1.bf16.xpose.msra.mxu0 0
  %459 = vmatprep.subr.bf16.mxu0 0
  %460 = vmatpush1.bf16.xpose.msra.mxu0 0
  %461 = vmatprep.subr.bf16.mxu0 0
  %462 = vmatpush1.bf16.xpose.msra.mxu0 0
  %463 = vmatprep.mubr.bf16.mxu0 0
  %464 = vmatmul.mubr.bf16.gmra.mrb[0].mxu0 %v426
  %v465 = vpop.f32.mrb[0].mxu0
  %v466 = vadd.f32 0.0, %v465
  %v467 = vpop.f32.mrb[0].mxu0
  %v468 = vpop.f32.mrb[0].mxu0
  %v469 = vpop.f32.mrb[0].mxu0
  %470 = vdwg.mxu0
  %471 = vrot.lane.b32.xlu0 %v221, 112
  %v472 = vpop.permute.xlu0 %471
  %473 = vrot.lane.b32.xlu0 %v221, 80
  %v474 = vpop.permute.xlu0 %473
  %v476 = vsel %vm225, %v472, 0
  %v479 = vsel %vm225, %v474, 0
  %481 = vmatprep.subr.bf16.mxu0 0
  %482 = vmatpush1.bf16.xpose.msra.mxu0 %v479
  %483 = vmatprep.subr.bf16.mxu0 0
  %484 = vmatpush1.bf16.xpose.msra.mxu0 0
  %485 = vmatprep.subr.bf16.mxu0 0
  %486 = vmatpush1.bf16.xpose.msra.mxu0 0
  %487 = vmatprep.subr.bf16.mxu0 0
  %488 = vmatpush1.bf16.xpose.msra.mxu0 0
  %489 = vmatprep.subr.bf16.mxu0 0
  %490 = vmatpush1.bf16.xpose.msra.mxu0 0
  %491 = vmatprep.subr.bf16.mxu0 0
  %492 = vmatpush1.bf16.xpose.msra.mxu0 0
  %493 = vmatprep.subr.bf16.mxu0 0
  %494 = vmatpush1.bf16.xpose.msra.mxu0 0
  %495 = vmatprep.subr.bf16.mxu0 0
  %496 = vmatpush1.bf16.xpose.msra.mxu0 0
  %497 = vmatprep.subr.bf16.mxu0 0
  %498 = vmatpush1.bf16.xpose.msra.mxu0 0
  %499 = vmatprep.subr.bf16.mxu0 0
  %500 = vmatpush1.bf16.xpose.msra.mxu0 0
  %501 = vmatprep.subr.bf16.mxu0 0
  %502 = vmatpush1.bf16.xpose.msra.mxu0 0
  %503 = vmatprep.subr.bf16.mxu0 0
  %504 = vmatpush1.bf16.xpose.msra.mxu0 0
  %505 = vmatprep.subr.bf16.mxu0 0
  %506 = vmatpush1.bf16.xpose.msra.mxu0 0
  %507 = vmatprep.subr.bf16.mxu0 0
  %508 = vmatpush1.bf16.xpose.msra.mxu0 0
  %509 = vmatprep.subr.bf16.mxu0 0
  %510 = vmatpush1.bf16.xpose.msra.mxu0 0
  %511 = vmatprep.subr.bf16.mxu0 0
  %512 = vmatpush1.bf16.xpose.msra.mxu0 0
  %513 = vmatprep.mubr.bf16.mxu0 0
  %514 = vmatmul.mubr.bf16.gmra.mrb[0].mxu0 %v476
  %v515 = vpop.f32.mrb[0].mxu0
  %v516 = vadd.f32 0.0, %v515
  %v517 = vpop.f32.mrb[0].mxu0
  %v518 = vpop.f32.mrb[0].mxu0
  %v519 = vpop.f32.mrb[0].mxu0
  %520 = vdwg.mxu0
  %521 = vrot.lane.b32.xlu0 %v220, 104
  %v522 = vpop.permute.xlu0 %521
  %523 = vrot.lane.b32.xlu0 %v220, 72
  %v524 = vpop.permute.xlu0 %523
  %v526 = vsel %vm225, %v522, 0
  %v529 = vsel %vm225, %v524, 0
  %531 = vmatprep.subr.bf16.mxu0 0
  %532 = vmatpush1.bf16.xpose.msra.mxu0 %v529
  %533 = vmatprep.subr.bf16.mxu0 0
  %534 = vmatpush1.bf16.xpose.msra.mxu0 0
  %535 = vmatprep.subr.bf16.mxu0 0
  %536 = vmatpush1.bf16.xpose.msra.mxu0 0
  %537 = vmatprep.subr.bf16.mxu0 0
  %538 = vmatpush1.bf16.xpose.msra.mxu0 0
  %539 = vmatprep.subr.bf16.mxu0 0
  %540 = vmatpush1.bf16.xpose.msra.mxu0 0
  %541 = vmatprep.subr.bf16.mxu0 0
  %542 = vmatpush1.bf16.xpose.msra.mxu0 0
  %543 = vmatprep.subr.bf16.mxu0 0
  %544 = vmatpush1.bf16.xpose.msra.mxu0 0
  %545 = vmatprep.subr.bf16.mxu0 0
  %546 = vmatpush1.bf16.xpose.msra.mxu0 0
  %547 = vmatprep.subr.bf16.mxu0 0
  %548 = vmatpush1.bf16.xpose.msra.mxu0 0
  %549 = vmatprep.subr.bf16.mxu0 0
  %550 = vmatpush1.bf16.xpose.msra.mxu0 0
  %551 = vmatprep.subr.bf16.mxu0 0
  %552 = vmatpush1.bf16.xpose.msra.mxu0 0
  %553 = vmatprep.subr.bf16.mxu0 0
  %554 = vmatpush1.bf16.xpose.msra.mxu0 0
  %555 = vmatprep.subr.bf16.mxu0 0
  %556 = vmatpush1.bf16.xpose.msra.mxu0 0
  %557 = vmatprep.subr.bf16.mxu0 0
  %558 = vmatpush1.bf16.xpose.msra.mxu0 0
  %559 = vmatprep.subr.bf16.mxu0 0
  %560 = vmatpush1.bf16.xpose.msra.mxu0 0
  %561 = vmatprep.subr.bf16.mxu0 0
  %562 = vmatpush1.bf16.xpose.msra.mxu0 0
  %563 = vmatprep.mubr.bf16.mxu0 0
  %564 = vmatmul.mubr.bf16.gmra.mrb[0].mxu0 %v526
  %v565 = vpop.f32.mrb[0].mxu0
  %v566 = vadd.f32 0.0, %v565
  %v567 = vpop.f32.mrb[0].mxu0
  %v568 = vpop.f32.mrb[0].mxu0
  %v569 = vpop.f32.mrb[0].mxu0
  %570 = vdwg.mxu0
  %571 = vrot.lane.b32.xlu0 %v221, 104
  %v572 = vpop.permute.xlu0 %571
  %573 = vrot.lane.b32.xlu0 %v221, 72
  %v574 = vpop.permute.xlu0 %573
  %v576 = vsel %vm225, %v572, 0
  %v579 = vsel %vm225, %v574, 0
  %581 = vmatprep.subr.bf16.mxu0 0
  %582 = vmatpush1.bf16.xpose.msra.mxu0 %v579
  %583 = vmatprep.subr.bf16.mxu0 0
  %584 = vmatpush1.bf16.xpose.msra.mxu0 0
  %585 = vmatprep.subr.bf16.mxu0 0
  %586 = vmatpush1.bf16.xpose.msra.mxu0 0
  %587 = vmatprep.subr.bf16.mxu0 0
  %588 = vmatpush1.bf16.xpose.msra.mxu0 0
  %589 = vmatprep.subr.bf16.mxu0 0
  %590 = vmatpush1.bf16.xpose.msra.mxu0 0
  %591 = vmatprep.subr.bf16.mxu0 0
  %592 = vmatpush1.bf16.xpose.msra.mxu0 0
  %593 = vmatprep.subr.bf16.mxu0 0
  %594 = vmatpush1.bf16.xpose.msra.mxu0 0
  %595 = vmatprep.subr.bf16.mxu0 0
  %596 = vmatpush1.bf16.xpose.msra.mxu0 0
  %597 = vmatprep.subr.bf16.mxu0 0
  %598 = vmatpush1.bf16.xpose.msra.mxu0 0
  %599 = vmatprep.subr.bf16.mxu0 0
  %600 = vmatpush1.bf16.xpose.msra.mxu0 0
  %601 = vmatprep.subr.bf16.mxu0 0
  %602 = vmatpush1.bf16.xpose.msra.mxu0 0
  %603 = vmatprep.subr.bf16.mxu0 0
  %604 = vmatpush1.bf16.xpose.msra.mxu0 0
  %605 = vmatprep.subr.bf16.mxu0 0
  %606 = vmatpush1.bf16.xpose.msra.mxu0 0
  %607 = vmatprep.subr.bf16.mxu0 0
  %608 = vmatpush1.bf16.xpose.msra.mxu0 0
  %609 = vmatprep.subr.bf16.mxu0 0
  %610 = vmatpush1.bf16.xpose.msra.mxu0 0
  %611 = vmatprep.subr.bf16.mxu0 0
  %612 = vmatpush1.bf16.xpose.msra.mxu0 0
  %613 = vmatprep.mubr.bf16.mxu0 0
  %614 = vmatmul.mubr.bf16.gmra.mrb[0].mxu0 %v576
  %v615 = vpop.f32.mrb[0].mxu0
  %v616 = vadd.f32 0.0, %v615
  %v617 = vpop.f32.mrb[0].mxu0
  %v618 = vpop.f32.mrb[0].mxu0
  %v619 = vpop.f32.mrb[0].mxu0
  %620 = vdwg.mxu0
  %v621 = vadd.f32 %v267, %v109
  %v622 = vadd.f32 %v366, %v110
  %v623 = vadd.f32 %v466, %v111
  %v624 = vadd.f32 %v566, %v112
  %v625 = vadd.f32 %v316, %v109
  %v626 = vadd.f32 %v416, %v110
  %v627 = vadd.f32 %v516, %v111
  %v628 = vadd.f32 %v616, %v112
  %v629 = vsel %vm225, %v621, -inf
  %630 = vmax.xlane.f32.xlu0 %v629
  %v631 = vpop.xlane.xlu0 %630
  %v632 = vsel %vm225, %v622, -inf
  %633 = vmax.xlane.f32.xlu0 %v632
  %v634 = vpop.xlane.xlu0 %633
  %v635 = vsel %vm225, %v623, -inf
  %636 = vmax.xlane.f32.xlu0 %v635
  %v637 = vpop.xlane.xlu0 %636
  %v638 = vsel %vm225, %v624, -inf
  %639 = vmax.xlane.f32.xlu0 %v638
  %v640 = vpop.xlane.xlu0 %639
  %v641 = vsel %vm225, %v625, -inf
  %642 = vmax.xlane.f32.xlu0 %v641
  %v643 = vpop.xlane.xlu0 %642
  %v644 = vsel %vm225, %v626, -inf
  %645 = vmax.xlane.f32.xlu0 %v644
  %v646 = vpop.xlane.xlu0 %645
  %v647 = vsel %vm225, %v627, -inf
  %648 = vmax.xlane.f32.xlu0 %v647
  %v649 = vpop.xlane.xlu0 %648
  %v650 = vsel %vm225, %v628, -inf
  %651 = vmax.xlane.f32.xlu0 %v650
  %v652 = vpop.xlane.xlu0 %651
  %v653 = vsub.f32 %v621, %v631
  %v654 = vsub.f32 %v622, %v634
  %v655 = vsub.f32 %v623, %v637
  %v656 = vsub.f32 %v624, %v640
  %v657 = vsub.f32 %v625, %v643
  %v658 = vsub.f32 %v626, %v646
  %v659 = vsub.f32 %v627, %v649
  %v660 = vsub.f32 %v628, %v652
  %v661 = vmul.f32 %v653, 1.442695
  %v662 = vpow.pop %v661
  %v663 = vmul.f32 %v654, 1.442695
  %v664 = vpow.pop %v663
  %v665 = vmul.f32 %v655, 1.442695
  %v666 = vpow.pop %v665
  %v667 = vmul.f32 %v656, 1.442695
  %v668 = vpow.pop %v667
  %v669 = vmul.f32 %v657, 1.442695
  %v670 = vpow.pop %v669
  %v671 = vmul.f32 %v658, 1.442695
  %v672 = vpow.pop %v671
  %v673 = vmul.f32 %v659, 1.442695
  %v674 = vpow.pop %v673
  %v675 = vmul.f32 %v660, 1.442695
  %v676 = vpow.pop %v675
  %v677 = vsel %vm225, %v662, 0.0
  %678 = vadd.xlane.f32.xlu0 %v677
  %v679 = vpop.xlane.xlu0 %678
  %v680 = vsel %vm225, %v664, 0.0
  %681 = vadd.xlane.f32.xlu0 %v680
  %v682 = vpop.xlane.xlu0 %681
  %v683 = vsel %vm225, %v666, 0.0
  %684 = vadd.xlane.f32.xlu0 %v683
  %v685 = vpop.xlane.xlu0 %684
  %v686 = vsel %vm225, %v668, 0.0
  %687 = vadd.xlane.f32.xlu0 %v686
  %v688 = vpop.xlane.xlu0 %687
  %v689 = vsel %vm225, %v670, 0.0
  %690 = vadd.xlane.f32.xlu0 %v689
  %v691 = vpop.xlane.xlu0 %690
  %v692 = vsel %vm225, %v672, 0.0
  %693 = vadd.xlane.f32.xlu0 %v692
  %v694 = vpop.xlane.xlu0 %693
  %v695 = vsel %vm225, %v674, 0.0
  %696 = vadd.xlane.f32.xlu0 %v695
  %v697 = vpop.xlane.xlu0 %696
  %v698 = vsel %vm225, %v676, 0.0
  %699 = vadd.xlane.f32.xlu0 %v698
  %v700 = vpop.xlane.xlu0 %699
  %v701 = vrcp.pop %v679
  %v702 = vrcp.pop %v682
  %v703 = vrcp.pop %v685
  %v704 = vrcp.pop %v688
  %v705 = vrcp.pop %v691
  %v706 = vrcp.pop %v694
  %v707 = vrcp.pop %v697
  %v708 = vrcp.pop %v700
  %v709 = vmul.f32 %v662, %v701
  %v710 = vmul.f32 %v664, %v702
  %v711 = vmul.f32 %v666, %v703
  %v712 = vmul.f32 %v668, %v704
  %v713 = vmul.f32 %v670, %v705
  %v714 = vmul.f32 %v672, %v706
  %v715 = vmul.f32 %v674, %v707
  %v716 = vmul.f32 %v676, %v708
  %v717 = vld [vmem:[%s2] sm:$0xf]
  %v718 = vld [vmem:[%s2 + $0x4] sm:$0xf]
  %v719 = vld [vmem:[%s2 + $0x8] sm:$0xf]
  %v720 = vld [vmem:[%s2 + $0xc] sm:$0xf]
  %v721 = vpack.c.bf16 %v709, %v709
  %v722 = vpack.c.bf16 %v713, %v713
  %723 = vrot.lane.b32.xlu0 %v220, 64
  %v724 = vpop.permute.xlu0 %723
  %v726 = vsel %vm225, %v721, 0
  %vm728 = vcmask 1043456
  %v730 = vsel %vm728, %v724, 0
  %732 = vmatprep.subr.bf16.mxu0 0
  %733 = vmatpush1.bf16.msra.mxu0 %v730
  %734 = vmatprep.subr.bf16.mxu0 0
  %735 = vmatpush1.bf16.msra.mxu0 0
  %736 = vmatprep.subr.bf16.mxu0 0
  %737 = vmatpush1.bf16.msra.mxu0 0
  %738 = vmatprep.subr.bf16.mxu0 0
  %739 = vmatpush1.bf16.msra.mxu0 0
  %740 = vmatprep.subr.bf16.mxu0 0
  %741 = vmatpush1.bf16.msra.mxu0 0
  %742 = vmatprep.subr.bf16.mxu0 0
  %743 = vmatpush1.bf16.msra.mxu0 0
  %744 = vmatprep.subr.bf16.mxu0 0
  %745 = vmatpush1.bf16.msra.mxu0 0
  %746 = vmatprep.subr.bf16.mxu0 0
  %747 = vmatpush1.bf16.msra.mxu0 0
  %748 = vmatprep.subr.bf16.mxu0 0
  %749 = vmatpush1.bf16.msra.mxu0 0
  %750 = vmatprep.subr.bf16.mxu0 0
  %751 = vmatpush1.bf16.msra.mxu0 0
  %752 = vmatprep.subr.bf16.mxu0 0
  %753 = vmatpush1.bf16.msra.mxu0 0
  %754 = vmatprep.subr.bf16.mxu0 0
  %755 = vmatpush1.bf16.msra.mxu0 0
  %756 = vmatprep.subr.bf16.mxu0 0
  %757 = vmatpush1.bf16.msra.mxu0 0
  %758 = vmatprep.subr.bf16.mxu0 0
  %759 = vmatpush1.bf16.msra.mxu0 0
  %760 = vmatprep.subr.bf16.mxu0 0
  %761 = vmatpush1.bf16.msra.mxu0 0
  %762 = vmatprep.subr.bf16.mxu0 0
  %763 = vmatpush1.bf16.msra.mxu0 0
  %764 = vmatprep.mubr.bf16.mxu0 0
  %765 = vmatmul.mubr.bf16.gmra.mrb[0].mxu0 %v726
  %v766 = vpop.f32.mrb[0].mxu0
  %v767 = vadd.f32 0.0, %v766
  %v768 = vpop.f32.mrb[0].mxu0
  %v769 = vpop.f32.mrb[0].mxu0
  %v770 = vpop.f32.mrb[0].mxu0
  %771 = vdwg.mxu0
  %772 = vrot.lane.b32.xlu0 %v221, 64
  %v773 = vpop.permute.xlu0 %772
  %v775 = vsel %vm225, %v722, 0
  %v778 = vsel %vm728, %v773, 0
  %780 = vmatprep.subr.bf16.mxu0 0
  %781 = vmatpush1.bf16.msra.mxu0 %v778
  %782 = vmatprep.subr.bf16.mxu0 0
  %783 = vmatpush1.bf16.msra.mxu0 0
  %784 = vmatprep.subr.bf16.mxu0 0
  %785 = vmatpush1.bf16.msra.mxu0 0
  %786 = vmatprep.subr.bf16.mxu0 0
  %787 = vmatpush1.bf16.msra.mxu0 0
  %788 = vmatprep.subr.bf16.mxu0 0
  %789 = vmatpush1.bf16.msra.mxu0 0
  %790 = vmatprep.subr.bf16.mxu0 0
  %791 = vmatpush1.bf16.msra.mxu0 0
  %792 = vmatprep.subr.bf16.mxu0 0
  %793 = vmatpush1.bf16.msra.mxu0 0
  %794 = vmatprep.subr.bf16.mxu0 0
  %795 = vmatpush1.bf16.msra.mxu0 0
  %796 = vmatprep.subr.bf16.mxu0 0
  %797 = vmatpush1.bf16.msra.mxu0 0
  %798 = vmatprep.subr.bf16.mxu0 0
  %799 = vmatpush1.bf16.msra.mxu0 0
  %800 = vmatprep.subr.bf16.mxu0 0
  %801 = vmatpush1.bf16.msra.mxu0 0
  %802 = vmatprep.subr.bf16.mxu0 0
  %803 = vmatpush1.bf16.msra.mxu0 0
  %804 = vmatprep.subr.bf16.mxu0 0
  %805 = vmatpush1.bf16.msra.mxu0 0
  %806 = vmatprep.subr.bf16.mxu0 0
  %807 = vmatpush1.bf16.msra.mxu0 0
  %808 = vmatprep.subr.bf16.mxu0 0
  %809 = vmatpush1.bf16.msra.mxu0 0
  %810 = vmatprep.subr.bf16.mxu0 0
  %811 = vmatpush1.bf16.msra.mxu0 0
  %812 = vmatprep.mubr.bf16.mxu0 0
  %813 = vmatmul.mubr.bf16.gmra.mrb[0].mxu0 %v775
  %v814 = vpop.f32.mrb[0].mxu0
  %v815 = vadd.f32 0.0, %v814
  %v816 = vpop.f32.mrb[0].mxu0
  %v817 = vpop.f32.mrb[0].mxu0
  %v818 = vpop.f32.mrb[0].mxu0
  %819 = vdwg.mxu0
  %v820 = vpack.c.bf16 %v815, %v767
  %v821 = vpack.c.bf16 %v710, %v710
  %v822 = vpack.c.bf16 %v714, %v714
  %823 = vrot.lane.b32.xlu0 %v220, 56
  %v824 = vpop.permute.xlu0 %823
  %v826 = vsel %vm225, %v821, 0
  %v829 = vsel %vm728, %v824, 0
  %831 = vmatprep.subr.bf16.mxu0 0
  %832 = vmatpush1.bf16.msra.mxu0 %v829
  %833 = vmatprep.subr.bf16.mxu0 0
  %834 = vmatpush1.bf16.msra.mxu0 0
  %835 = vmatprep.subr.bf16.mxu0 0
  %836 = vmatpush1.bf16.msra.mxu0 0
  %837 = vmatprep.subr.bf16.mxu0 0
  %838 = vmatpush1.bf16.msra.mxu0 0
  %839 = vmatprep.subr.bf16.mxu0 0
  %840 = vmatpush1.bf16.msra.mxu0 0
  %841 = vmatprep.subr.bf16.mxu0 0
  %842 = vmatpush1.bf16.msra.mxu0 0
  %843 = vmatprep.subr.bf16.mxu0 0
  %844 = vmatpush1.bf16.msra.mxu0 0
  %845 = vmatprep.subr.bf16.mxu0 0
  %846 = vmatpush1.bf16.msra.mxu0 0
  %847 = vmatprep.subr.bf16.mxu0 0
  %848 = vmatpush1.bf16.msra.mxu0 0
  %849 = vmatprep.subr.bf16.mxu0 0
  %850 = vmatpush1.bf16.msra.mxu0 0
  %851 = vmatprep.subr.bf16.mxu0 0
  %852 = vmatpush1.bf16.msra.mxu0 0
  %853 = vmatprep.subr.bf16.mxu0 0
  %854 = vmatpush1.bf16.msra.mxu0 0
  %855 = vmatprep.subr.bf16.mxu0 0
  %856 = vmatpush1.bf16.msra.mxu0 0
  %857 = vmatprep.subr.bf16.mxu0 0
  %858 = vmatpush1.bf16.msra.mxu0 0
  %859 = vmatprep.subr.bf16.mxu0 0
  %860 = vmatpush1.bf16.msra.mxu0 0
  %861 = vmatprep.subr.bf16.mxu0 0
  %862 = vmatpush1.bf16.msra.mxu0 0
  %863 = vmatprep.mubr.bf16.mxu0 0
  %864 = vmatmul.mubr.bf16.gmra.mrb[0].mxu0 %v826
  %v865 = vpop.f32.mrb[0].mxu0
  %v866 = vadd.f32 0.0, %v865
  %v867 = vpop.f32.mrb[0].mxu0
  %v868 = vpop.f32.mrb[0].mxu0
  %v869 = vpop.f32.mrb[0].mxu0
  %870 = vdwg.mxu0
  %871 = vrot.lane.b32.xlu0 %v221, 56
  %v872 = vpop.permute.xlu0 %871
  %v874 = vsel %vm225, %v822, 0
  %v877 = vsel %vm728, %v872, 0
  %879 = vmatprep.subr.bf16.mxu0 0
  %880 = vmatpush1.bf16.msra.mxu0 %v877
  %881 = vmatprep.subr.bf16.mxu0 0
  %882 = vmatpush1.bf16.msra.mxu0 0
  %883 = vmatprep.subr.bf16.mxu0 0
  %884 = vmatpush1.bf16.msra.mxu0 0
  %885 = vmatprep.subr.bf16.mxu0 0
  %886 = vmatpush1.bf16.msra.mxu0 0
  %887 = vmatprep.subr.bf16.mxu0 0
  %888 = vmatpush1.bf16.msra.mxu0 0
  %889 = vmatprep.subr.bf16.mxu0 0
  %890 = vmatpush1.bf16.msra.mxu0 0
  %891 = vmatprep.subr.bf16.mxu0 0
  %892 = vmatpush1.bf16.msra.mxu0 0
  %893 = vmatprep.subr.bf16.mxu0 0
  %894 = vmatpush1.bf16.msra.mxu0 0
  %895 = vmatprep.subr.bf16.mxu0 0
  %896 = vmatpush1.bf16.msra.mxu0 0
  %897 = vmatprep.subr.bf16.mxu0 0
  %898 = vmatpush1.bf16.msra.mxu0 0
  %899 = vmatprep.subr.bf16.mxu0 0
  %900 = vmatpush1.bf16.msra.mxu0 0
  %901 = vmatprep.subr.bf16.mxu0 0
  %902 = vmatpush1.bf16.msra.mxu0 0
  %903 = vmatprep.subr.bf16.mxu0 0
  %904 = vmatpush1.bf16.msra.mxu0 0
  %905 = vmatprep.subr.bf16.mxu0 0
  %906 = vmatpush1.bf16.msra.mxu0 0
  %907 = vmatprep.subr.bf16.mxu0 0
  %908 = vmatpush1.bf16.msra.mxu0 0
  %909 = vmatprep.subr.bf16.mxu0 0
  %910 = vmatpush1.bf16.msra.mxu0 0
  %911 = vmatprep.mubr.bf16.mxu0 0
  %912 = vmatmul.mubr.bf16.gmra.mrb[0].mxu0 %v874
  %v913 = vpop.f32.mrb[0].mxu0
  %v914 = vadd.f32 0.0, %v913
  %v915 = vpop.f32.mrb[0].mxu0
  %v916 = vpop.f32.mrb[0].mxu0
  %v917 = vpop.f32.mrb[0].mxu0
  %918 = vdwg.mxu0
  %v919 = vpack.c.bf16 %v914, %v866
  %v921 = vsel %vm225, %v919, 0
  %v924 = vsel %vm728, %v718, 0
  %926 = vmatprep.subr.bf16.mxu0 0
  %927 = vmatpush1.bf16.msra.mxu0 %v924
  %928 = vmatprep.subr.bf16.mxu0 0
  %929 = vmatpush1.bf16.msra.mxu0 0
  %930 = vmatprep.subr.bf16.mxu0 0
  %931 = vmatpush1.bf16.msra.mxu0 0
  %932 = vmatprep.subr.bf16.mxu0 0
  %933 = vmatpush1.bf16.msra.mxu0 0
  %934 = vmatprep.subr.bf16.mxu0 0
  %935 = vmatpush1.bf16.msra.mxu0 0
  %936 = vmatprep.subr.bf16.mxu0 0
  %937 = vmatpush1.bf16.msra.mxu0 0
  %938 = vmatprep.subr.bf16.mxu0 0
  %939 = vmatpush1.bf16.msra.mxu0 0
  %940 = vmatprep.subr.bf16.mxu0 0
  %941 = vmatpush1.bf16.msra.mxu0 0
  %942 = vmatprep.subr.bf16.mxu0 0
  %943 = vmatpush1.bf16.msra.mxu0 0
  %944 = vmatprep.subr.bf16.mxu0 0
  %945 = vmatpush1.bf16.msra.mxu0 0
  %946 = vmatprep.subr.bf16.mxu0 0
  %947 = vmatpush1.bf16.msra.mxu0 0
  %948 = vmatprep.subr.bf16.mxu0 0
  %949 = vmatpush1.bf16.msra.mxu0 0
  %950 = vmatprep.subr.bf16.mxu0 0
  %951 = vmatpush1.bf16.msra.mxu0 0
  %952 = vmatprep.subr.bf16.mxu0 0
  %953 = vmatpush1.bf16.msra.mxu0 0
  %954 = vmatprep.subr.bf16.mxu0 0
  %955 = vmatpush1.bf16.msra.mxu0 0
  %956 = vmatprep.subr.bf16.mxu0 0
  %957 = vmatpush1.bf16.msra.mxu0 0
  %958 = vmatprep.mubr.bf16.mxu0 0
  %959 = vmatmul.mubr.bf16.gmra.mrb[0].mxu0 %v921
  %v960 = vpop.f32.mrb[0].mxu0
  %v961 = vadd.f32 0.0, %v960
  %v962 = vpop.f32.mrb[0].mxu0
  %v963 = vpop.f32.mrb[0].mxu0
  %v964 = vadd.f32 0.0, %v963
  %v965 = vpop.f32.mrb[0].mxu0
  %966 = vdwg.mxu0
  %v968 = vsel %vm225, %v820, 0
  %v971 = vsel %vm728, %v717, 0
  %973 = vmatprep.subr.bf16.mxu0 0
  %974 = vmatpush1.bf16.msra.mxu0 %v971
  %975 = vmatprep.subr.bf16.mxu0 0
  %976 = vmatpush1.bf16.msra.mxu0 0
  %977 = vmatprep.subr.bf16.mxu0 0
  %978 = vmatpush1.bf16.msra.mxu0 0
  %979 = vmatprep.subr.bf16.mxu0 0
  %980 = vmatpush1.bf16.msra.mxu0 0
  %981 = vmatprep.subr.bf16.mxu0 0
  %982 = vmatpush1.bf16.msra.mxu0 0
  %983 = vmatprep.subr.bf16.mxu0 0
  %984 = vmatpush1.bf16.msra.mxu0 0
  %985 = vmatprep.subr.bf16.mxu0 0
  %986 = vmatpush1.bf16.msra.mxu0 0
  %987 = vmatprep.subr.bf16.mxu0 0
  %988 = vmatpush1.bf16.msra.mxu0 0
  %989 = vmatprep.subr.bf16.mxu0 0
  %990 = vmatpush1.bf16.msra.mxu0 0
  %991 = vmatprep.subr.bf16.mxu0 0
  %992 = vmatpush1.bf16.msra.mxu0 0
  %993 = vmatprep.subr.bf16.mxu0 0
  %994 = vmatpush1.bf16.msra.mxu0 0
  %995 = vmatprep.subr.bf16.mxu0 0
  %996 = vmatpush1.bf16.msra.mxu0 0
  %997 = vmatprep.subr.bf16.mxu0 0
  %998 = vmatpush1.bf16.msra.mxu0 0
  %999 = vmatprep.subr.bf16.mxu0 0
  %1000 = vmatpush1.bf16.msra.mxu0 0
  %1001 = vmatprep.subr.bf16.mxu0 0
  %1002 = vmatpush1.bf16.msra.mxu0 0
  %1003 = vmatprep.subr.bf16.mxu0 0
  %1004 = vmatpush1.bf16.msra.mxu0 0
  %1005 = vmatprep.mubr.bf16.mxu0 0
  %1006 = vmatmul.mubr.bf16.gmra.mrb[0].mxu0 %v968
  %v1007 = vpop.f32.mrb[0].mxu0
  %v1008 = vadd.f32 %v961, %v1007
  %v1009 = vpop.f32.mrb[0].mxu0
  %v1010 = vpop.f32.mrb[0].mxu0
  %v1011 = vadd.f32 %v964, %v1010
  %v1012 = vpop.f32.mrb[0].mxu0
  %1013 = vdwg.mxu0
  %v1014 = vpack.c.bf16 %v711, %v711
  %v1015 = vpack.c.bf16 %v715, %v715
  %1016 = vrot.lane.b32.xlu0 %v220, 48
  %v1017 = vpop.permute.xlu0 %1016
  %v1019 = vsel %vm225, %v1014, 0
  %v1022 = vsel %vm728, %v1017, 0
  %1024 = vmatprep.subr.bf16.mxu0 0
  %1025 = vmatpush1.bf16.msra.mxu0 %v1022
  %1026 = vmatprep.subr.bf16.mxu0 0
  %1027 = vmatpush1.bf16.msra.mxu0 0
  %1028 = vmatprep.subr.bf16.mxu0 0
  %1029 = vmatpush1.bf16.msra.mxu0 0
  %1030 = vmatprep.subr.bf16.mxu0 0
  %1031 = vmatpush1.bf16.msra.mxu0 0
  %1032 = vmatprep.subr.bf16.mxu0 0
  %1033 = vmatpush1.bf16.msra.mxu0 0
  %1034 = vmatprep.subr.bf16.mxu0 0
  %1035 = vmatpush1.bf16.msra.mxu0 0
  %1036 = vmatprep.subr.bf16.mxu0 0
  %1037 = vmatpush1.bf16.msra.mxu0 0
  %1038 = vmatprep.subr.bf16.mxu0 0
  %1039 = vmatpush1.bf16.msra.mxu0 0
  %1040 = vmatprep.subr.bf16.mxu0 0
  %1041 = vmatpush1.bf16.msra.mxu0 0
  %1042 = vmatprep.subr.bf16.mxu0 0
  %1043 = vmatpush1.bf16.msra.mxu0 0
  %1044 = vmatprep.subr.bf16.mxu0 0
  %1045 = vmatpush1.bf16.msra.mxu0 0
  %1046 = vmatprep.subr.bf16.mxu0 0
  %1047 = vmatpush1.bf16.msra.mxu0 0
  %1048 = vmatprep.subr.bf16.mxu0 0
  %1049 = vmatpush1.bf16.msra.mxu0 0
  %1050 = vmatprep.subr.bf16.mxu0 0
  %1051 = vmatpush1.bf16.msra.mxu0 0
  %1052 = vmatprep.subr.bf16.mxu0 0
  %1053 = vmatpush1.bf16.msra.mxu0 0
  %1054 = vmatprep.subr.bf16.mxu0 0
  %1055 = vmatpush1.bf16.msra.mxu0 0
  %1056 = vmatprep.mubr.bf16.mxu0 0
  %1057 = vmatmul.mubr.bf16.gmra.mrb[0].mxu0 %v1019
  %v1058 = vpop.f32.mrb[0].mxu0
  %v1059 = vadd.f32 0.0, %v1058
  %v1060 = vpop.f32.mrb[0].mxu0
  %v1061 = vpop.f32.mrb[0].mxu0
  %v1062 = vpop.f32.mrb[0].mxu0
  %1063 = vdwg.mxu0
  %1064 = vrot.lane.b32.xlu0 %v221, 48
  %v1065 = vpop.permute.xlu0 %1064
  %v1067 = vsel %vm225, %v1015, 0
  %v1070 = vsel %vm728, %v1065, 0
  %1072 = vmatprep.subr.bf16.mxu0 0
  %1073 = vmatpush1.bf16.msra.mxu0 %v1070
  %1074 = vmatprep.subr.bf16.mxu0 0
  %1075 = vmatpush1.bf16.msra.mxu0 0
  %1076 = vmatprep.subr.bf16.mxu0 0
  %1077 = vmatpush1.bf16.msra.mxu0 0
  %1078 = vmatprep.subr.bf16.mxu0 0
  %1079 = vmatpush1.bf16.msra.mxu0 0
  %1080 = vmatprep.subr.bf16.mxu0 0
  %1081 = vmatpush1.bf16.msra.mxu0 0
  %1082 = vmatprep.subr.bf16.mxu0 0
  %1083 = vmatpush1.bf16.msra.mxu0 0
  %1084 = vmatprep.subr.bf16.mxu0 0
  %1085 = vmatpush1.bf16.msra.mxu0 0
  %1086 = vmatprep.subr.bf16.mxu0 0
  %1087 = vmatpush1.bf16.msra.mxu0 0
  %1088 = vmatprep.subr.bf16.mxu0 0
  %1089 = vmatpush1.bf16.msra.mxu0 0
  %1090 = vmatprep.subr.bf16.mxu0 0
  %1091 = vmatpush1.bf16.msra.mxu0 0
  %1092 = vmatprep.subr.bf16.mxu0 0
  %1093 = vmatpush1.bf16.msra.mxu0 0
  %1094 = vmatprep.subr.bf16.mxu0 0
  %1095 = vmatpush1.bf16.msra.mxu0 0
  %1096 = vmatprep.subr.bf16.mxu0 0
  %1097 = vmatpush1.bf16.msra.mxu0 0
  %1098 = vmatprep.subr.bf16.mxu0 0
  %1099 = vmatpush1.bf16.msra.mxu0 0
  %1100 = vmatprep.subr.bf16.mxu0 0
  %1101 = vmatpush1.bf16.msra.mxu0 0
  %1102 = vmatprep.subr.bf16.mxu0 0
  %1103 = vmatpush1.bf16.msra.mxu0 0
  %1104 = vmatprep.mubr.bf16.mxu0 0
  %1105 = vmatmul.mubr.bf16.gmra.mrb[0].mxu0 %v1067
  %v1106 = vpop.f32.mrb[0].mxu0
  %v1107 = vadd.f32 0.0, %v1106
  %v1108 = vpop.f32.mrb[0].mxu0
  %v1109 = vpop.f32.mrb[0].mxu0
  %v1110 = vpop.f32.mrb[0].mxu0
  %1111 = vdwg.mxu0
  %v1112 = vpack.c.bf16 %v1107, %v1059
  %v1114 = vsel %vm225, %v1112, 0
  %v1117 = vsel %vm728, %v719, 0
  %1119 = vmatprep.subr.bf16.mxu0 0
  %1120 = vmatpush1.bf16.msra.mxu0 %v1117
  %1121 = vmatprep.subr.bf16.mxu0 0
  %1122 = vmatpush1.bf16.msra.mxu0 0
  %1123 = vmatprep.subr.bf16.mxu0 0
  %1124 = vmatpush1.bf16.msra.mxu0 0
  %1125 = vmatprep.subr.bf16.mxu0 0
  %1126 = vmatpush1.bf16.msra.mxu0 0
  %1127 = vmatprep.subr.bf16.mxu0 0
  %1128 = vmatpush1.bf16.msra.mxu0 0
  %1129 = vmatprep.subr.bf16.mxu0 0
  %1130 = vmatpush1.bf16.msra.mxu0 0
  %1131 = vmatprep.subr.bf16.mxu0 0
  %1132 = vmatpush1.bf16.msra.mxu0 0
  %1133 = vmatprep.subr.bf16.mxu0 0
  %1134 = vmatpush1.bf16.msra.mxu0 0
  %1135 = vmatprep.subr.bf16.mxu0 0
  %1136 = vmatpush1.bf16.msra.mxu0 0
  %1137 = vmatprep.subr.bf16.mxu0 0
  %1138 = vmatpush1.bf16.msra.mxu0 0
  %1139 = vmatprep.subr.bf16.mxu0 0
  %1140 = vmatpush1.bf16.msra.mxu0 0
  %1141 = vmatprep.subr.bf16.mxu0 0
  %1142 = vmatpush1.bf16.msra.mxu0 0
  %1143 = vmatprep.subr.bf16.mxu0 0
  %1144 = vmatpush1.bf16.msra.mxu0 0
  %1145 = vmatprep.subr.bf16.mxu0 0
  %1146 = vmatpush1.bf16.msra.mxu0 0
  %1147 = vmatprep.subr.bf16.mxu0 0
  %1148 = vmatpush1.bf16.msra.mxu0 0
  %1149 = vmatprep.subr.bf16.mxu0 0
  %1150 = vmatpush1.bf16.msra.mxu0 0
  %1151 = vmatprep.mubr.bf16.mxu0 0
  %1152 = vmatmul.mubr.bf16.gmra.mrb[0].mxu0 %v1114
  %v1153 = vpop.f32.mrb[0].mxu0
  %v1154 = vadd.f32 0.0, %v1153
  %v1155 = vpop.f32.mrb[0].mxu0
  %v1156 = vpop.f32.mrb[0].mxu0
  %v1157 = vadd.f32 0.0, %v1156
  %v1158 = vpop.f32.mrb[0].mxu0
  %1159 = vdwg.mxu0
  %v1160 = vadd.f32 %v1008, %v1154
  %v1161 = vadd.f32 %v1011, %v1157
  %v1162 = vpack.c.bf16 %v712, %v712
  %v1163 = vpack.c.bf16 %v716, %v716
  %1164 = vrot.lane.b32.xlu0 %v220, 40
  %v1165 = vpop.permute.xlu0 %1164
  %v1167 = vsel %vm225, %v1162, 0
  %v1170 = vsel %vm728, %v1165, 0
  %1172 = vmatprep.subr.bf16.mxu0 0
  %1173 = vmatpush1.bf16.msra.mxu0 %v1170
  %1174 = vmatprep.subr.bf16.mxu0 0
  %1175 = vmatpush1.bf16.msra.mxu0 0
  %1176 = vmatprep.subr.bf16.mxu0 0
  %1177 = vmatpush1.bf16.msra.mxu0 0
  %1178 = vmatprep.subr.bf16.mxu0 0
  %1179 = vmatpush1.bf16.msra.mxu0 0
  %1180 = vmatprep.subr.bf16.mxu0 0
  %1181 = vmatpush1.bf16.msra.mxu0 0
  %1182 = vmatprep.subr.bf16.mxu0 0
  %1183 = vmatpush1.bf16.msra.mxu0 0
  %1184 = vmatprep.subr.bf16.mxu0 0
  %1185 = vmatpush1.bf16.msra.mxu0 0
  %1186 = vmatprep.subr.bf16.mxu0 0
  %1187 = vmatpush1.bf16.msra.mxu0 0
  %1188 = vmatprep.subr.bf16.mxu0 0
  %1189 = vmatpush1.bf16.msra.mxu0 0
  %1190 = vmatprep.subr.bf16.mxu0 0
  %1191 = vmatpush1.bf16.msra.mxu0 0
  %1192 = vmatprep.subr.bf16.mxu0 0
  %1193 = vmatpush1.bf16.msra.mxu0 0
  %1194 = vmatprep.subr.bf16.mxu0 0
  %1195 = vmatpush1.bf16.msra.mxu0 0
  %1196 = vmatprep.subr.bf16.mxu0 0
  %1197 = vmatpush1.bf16.msra.mxu0 0
  %1198 = vmatprep.subr.bf16.mxu0 0
  %1199 = vmatpush1.bf16.msra.mxu0 0
  %1200 = vmatprep.subr.bf16.mxu0 0
  %1201 = vmatpush1.bf16.msra.mxu0 0
  %1202 = vmatprep.subr.bf16.mxu0 0
  %1203 = vmatpush1.bf16.msra.mxu0 0
  %1204 = vmatprep.mubr.bf16.mxu0 0
  %1205 = vmatmul.mubr.bf16.gmra.mrb[0].mxu0 %v1167
  %v1206 = vpop.f32.mrb[0].mxu0
  %v1207 = vadd.f32 0.0, %v1206
  %v1208 = vpop.f32.mrb[0].mxu0
  %v1209 = vpop.f32.mrb[0].mxu0
  %v1210 = vpop.f32.mrb[0].mxu0
  %1211 = vdwg.mxu0
  %1212 = vrot.lane.b32.xlu0 %v221, 40
  %v1213 = vpop.permute.xlu0 %1212
  %v1215 = vsel %vm225, %v1163, 0
  %v1218 = vsel %vm728, %v1213, 0
  %1220 = vmatprep.subr.bf16.mxu0 0
  %1221 = vmatpush1.bf16.msra.mxu0 %v1218
  %1222 = vmatprep.subr.bf16.mxu0 0
  %1223 = vmatpush1.bf16.msra.mxu0 0
  %1224 = vmatprep.subr.bf16.mxu0 0
  %1225 = vmatpush1.bf16.msra.mxu0 0
  %1226 = vmatprep.subr.bf16.mxu0 0
  %1227 = vmatpush1.bf16.msra.mxu0 0
  %1228 = vmatprep.subr.bf16.mxu0 0
  %1229 = vmatpush1.bf16.msra.mxu0 0
  %1230 = vmatprep.subr.bf16.mxu0 0
  %1231 = vmatpush1.bf16.msra.mxu0 0
  %1232 = vmatprep.subr.bf16.mxu0 0
  %1233 = vmatpush1.bf16.msra.mxu0 0
  %1234 = vmatprep.subr.bf16.mxu0 0
  %1235 = vmatpush1.bf16.msra.mxu0 0
  %1236 = vmatprep.subr.bf16.mxu0 0
  %1237 = vmatpush1.bf16.msra.mxu0 0
  %1238 = vmatprep.subr.bf16.mxu0 0
  %1239 = vmatpush1.bf16.msra.mxu0 0
  %1240 = vmatprep.subr.bf16.mxu0 0
  %1241 = vmatpush1.bf16.msra.mxu0 0
  %1242 = vmatprep.subr.bf16.mxu0 0
  %1243 = vmatpush1.bf16.msra.mxu0 0
  %1244 = vmatprep.subr.bf16.mxu0 0
  %1245 = vmatpush1.bf16.msra.mxu0 0
  %1246 = vmatprep.subr.bf16.mxu0 0
  %1247 = vmatpush1.bf16.msra.mxu0 0
  %1248 = vmatprep.subr.bf16.mxu0 0
  %1249 = vmatpush1.bf16.msra.mxu0 0
  %1250 = vmatprep.subr.bf16.mxu0 0
  %1251 = vmatpush1.bf16.msra.mxu0 0
  %1252 = vmatprep.mubr.bf16.mxu0 0
  %1253 = vmatmul.mubr.bf16.gmra.mrb[0].mxu0 %v1215
  %v1254 = vpop.f32.mrb[0].mxu0
  %v1255 = vadd.f32 0.0, %v1254
  %v1256 = vpop.f32.mrb[0].mxu0
  %v1257 = vpop.f32.mrb[0].mxu0
  %v1258 = vpop.f32.mrb[0].mxu0
  %1259 = vdwg.mxu0
  %v1260 = vpack.c.bf16 %v1255, %v1207
  %v1262 = vsel %vm225, %v1260, 0
  %v1265 = vsel %vm728, %v720, 0
  %1267 = vmatprep.subr.bf16.mxu0 0
  %1268 = vmatpush1.bf16.msra.mxu0 %v1265
  %1269 = vmatprep.subr.bf16.mxu0 0
  %1270 = vmatpush1.bf16.msra.mxu0 0
  %1271 = vmatprep.subr.bf16.mxu0 0
  %1272 = vmatpush1.bf16.msra.mxu0 0
  %1273 = vmatprep.subr.bf16.mxu0 0
  %1274 = vmatpush1.bf16.msra.mxu0 0
  %1275 = vmatprep.subr.bf16.mxu0 0
  %1276 = vmatpush1.bf16.msra.mxu0 0
  %1277 = vmatprep.subr.bf16.mxu0 0
  %1278 = vmatpush1.bf16.msra.mxu0 0
  %1279 = vmatprep.subr.bf16.mxu0 0
  %1280 = vmatpush1.bf16.msra.mxu0 0
  %1281 = vmatprep.subr.bf16.mxu0 0
  %1282 = vmatpush1.bf16.msra.mxu0 0
  %1283 = vmatprep.subr.bf16.mxu0 0
  %1284 = vmatpush1.bf16.msra.mxu0 0
  %1285 = vmatprep.subr.bf16.mxu0 0
  %1286 = vmatpush1.bf16.msra.mxu0 0
  %1287 = vmatprep.subr.bf16.mxu0 0
  %1288 = vmatpush1.bf16.msra.mxu0 0
  %1289 = vmatprep.subr.bf16.mxu0 0
  %1290 = vmatpush1.bf16.msra.mxu0 0
  %1291 = vmatprep.subr.bf16.mxu0 0
  %1292 = vmatpush1.bf16.msra.mxu0 0
  %1293 = vmatprep.subr.bf16.mxu0 0
  %1294 = vmatpush1.bf16.msra.mxu0 0
  %1295 = vmatprep.subr.bf16.mxu0 0
  %1296 = vmatpush1.bf16.msra.mxu0 0
  %1297 = vmatprep.subr.bf16.mxu0 0
  %1298 = vmatpush1.bf16.msra.mxu0 0
  %1299 = vmatprep.mubr.bf16.mxu0 0
  %1300 = vmatmul.mubr.bf16.gmra.mrb[0].mxu0 %v1262
  %v1301 = vpop.f32.mrb[0].mxu0
  %v1302 = vadd.f32 0.0, %v1301
  %v1303 = vpop.f32.mrb[0].mxu0
  %v1304 = vpop.f32.mrb[0].mxu0
  %v1305 = vadd.f32 0.0, %v1304
  %v1306 = vpop.f32.mrb[0].mxu0
  %1307 = vdwg.mxu0
  %v1308 = vadd.f32 %v1160, %v1302
  %v1309 = vadd.f32 %v1161, %v1305
  %v1310 = vadd.f32 %v48, %v1308
  %v1311 = vadd.f32 %v49, %v1309
  %v1312 = vld [vmem:[%s3] sm:$0x1]
  %v1314 = vlaneseq
  %v1315 = vshrl.u32 %v1314, 7
  %v1316 = vsub.s32 0, %v1315
  %v1317 = vrot.slane %v1312, %v1316
  %v1319 = vadd.f32 %v1310, %v1317
  %v1320 = vadd.f32 %v1311, %v1317
  %v1321 = vsel %vm115, %v1319, 0.0
  %1322 = vadd.xlane.f32.xlu0 %v1321
  %v1323 = vpop.xlane.xlu0 %1322
  %v1324 = vsel %vm115, %v1320, 0.0
  %1325 = vadd.xlane.f32.xlu0 %v1324
  %v1326 = vpop.xlane.xlu0 %1325
  %v1327 = vmul.f32 %v1323, %v122
  %v1328 = vmul.f32 %v1326, %v122
  %v1329 = vsub.f32 %v1319, %v1327
  %v1330 = vsub.f32 %v1320, %v1328
  %v1331 = vmul.f32 %v1329, %v1329
  %v1332 = vmul.f32 %v1330, %v1330
  %v1333 = vsel %vm115, %v1331, 0.0
  %1334 = vadd.xlane.f32.xlu0 %v1333
  %v1335 = vpop.xlane.xlu0 %1334
  %v1336 = vsel %vm115, %v1332, 0.0
  %1337 = vadd.xlane.f32.xlu0 %v1336
  %v1338 = vpop.xlane.xlu0 %1337
  %v1339 = vmul.f32 %v1335, %v122
  %v1340 = vmul.f32 %v1338, %v122
  %v1341 = vadd.f32 %v1339, 1e-05
  %v1342 = vadd.f32 %v1340, 1e-05
  %v1343 = vrsqrt.pop %v1341
  %v1344 = vrsqrt.pop %v1342
  %v1345 = vmul.f32 %v1329, %v1343
  %v1346 = vmul.f32 %v1330, %v1344
  %v1347 = vmul.f32 %v1345, %v147
  %v1348 = vmul.f32 %v1346, %v147
  %v1349 = vadd.f32 %v1347, %v155
  %v1350 = vadd.f32 %v1348, %v155
  %v1351 = vpack.c.bf16 %v1350, %v1349
  %v1352 = vld [vmem:[%s6] sm:$0xf]
  %v1353 = vld [vmem:[%s6 + $0x4] sm:$0xf]
  %v1354 = vld [vmem:[%s6 + $0x8] sm:$0xf]
  %v1355 = vld [vmem:[%s6 + $0xc] sm:$0xf]
  %v1356 = vld [vmem:[%s7] sm:$0x1]
  %v1358 = vlaneseq
  %v1359 = vshrl.u32 %v1358, 7
  %v1360 = vsub.s32 0, %v1359
  %v1361 = vrot.slane %v1356, %v1360
  %v1367 = vunpack.c.l.b16 %v1352
  %v1368 = vunpack.c.l.b16 %v1353
  %v1369 = vunpack.c.l.b16 %v1354
  %v1370 = vunpack.c.l.b16 %v1355
  %v1371 = vpack.c.b16 %v1368, %v1367
  %v1372 = vpack.c.b16 %v1370, %v1369
  %v1376 = vsel %vm115, %v1351, 0
  %1378 = vmatprep.subr.bf16.mxu0 0
  %1379 = vmatpush1.bf16.msra.mxu0 %v1371
  %1380 = vmatprep.subr.bf16.mxu0 0
  %1381 = vmatpush1.bf16.msra.mxu0 %v1372
  %1382 = vmatprep.subr.bf16.mxu0 0
  %1383 = vmatpush1.bf16.msra.mxu0 0
  %1384 = vmatprep.subr.bf16.mxu0 0
  %1385 = vmatpush1.bf16.msra.mxu0 0
  %1386 = vmatprep.subr.bf16.mxu0 0
  %1387 = vmatpush1.bf16.msra.mxu0 0
  %1388 = vmatprep.subr.bf16.mxu0 0
  %1389 = vmatpush1.bf16.msra.mxu0 0
  %1390 = vmatprep.subr.bf16.mxu0 0
  %1391 = vmatpush1.bf16.msra.mxu0 0
  %1392 = vmatprep.subr.bf16.mxu0 0
  %1393 = vmatpush1.bf16.msra.mxu0 0
  %1394 = vmatprep.subr.bf16.mxu0 0
  %1395 = vmatpush1.bf16.msra.mxu0 0
  %1396 = vmatprep.subr.bf16.mxu0 0
  %1397 = vmatpush1.bf16.msra.mxu0 0
  %1398 = vmatprep.subr.bf16.mxu0 0
  %1399 = vmatpush1.bf16.msra.mxu0 0
  %1400 = vmatprep.subr.bf16.mxu0 0
  %1401 = vmatpush1.bf16.msra.mxu0 0
  %1402 = vmatprep.subr.bf16.mxu0 0
  %1403 = vmatpush1.bf16.msra.mxu0 0
  %1404 = vmatprep.subr.bf16.mxu0 0
  %1405 = vmatpush1.bf16.msra.mxu0 0
  %1406 = vmatprep.subr.bf16.mxu0 0
  %1407 = vmatpush1.bf16.msra.mxu0 0
  %1408 = vmatprep.subr.bf16.mxu0 0
  %1409 = vmatpush1.bf16.msra.mxu0 0
  %1410 = vmatprep.mubr.bf16.mxu0 0
  %1411 = vmatmul.mubr.bf16.gmra.mrb[0].mxu0 %v1376
  %v1412 = vpop.f32.mrb[0].mxu0
  %v1413 = vadd.f32 %v1361, %v1412
  %v1414 = vpop.f32.mrb[0].mxu0
  %v1415 = vpop.f32.mrb[0].mxu0
  %v1416 = vadd.f32 %v1361, %v1415
  %v1417 = vpop.f32.mrb[0].mxu0
  %1418 = vdwg.mxu0
  %v1419 = vmax.f32 %v1413, 0.0
  %v1420 = vmax.f32 %v1416, 0.0
  %v1421 = vpack.c.bf16 %v1420, %v1419
  %v1422 = vld [vmem:[%s8] sm:$0xf]
  %v1423 = vld [vmem:[%s8 + $0x4] sm:$0xf]
  %v1424 = vld [vmem:[%s8 + $0x8] sm:$0xf]
  %v1425 = vld [vmem:[%s8 + $0xc] sm:$0xf]
  %v1426 = vld [vmem:[%s8 + $0x10] sm:$0xf]
  %v1427 = vld [vmem:[%s8 + $0x14] sm:$0xf]
  %v1428 = vld [vmem:[%s8 + $0x18] sm:$0xf]
  %v1429 = vld [vmem:[%s8 + $0x1c] sm:$0xf]
  %v1430 = vld [vmem:[%s8 + $0x20] sm:$0xf]
  %v1431 = vld [vmem:[%s8 + $0x24] sm:$0xf]
  %v1432 = vld [vmem:[%s8 + $0x28] sm:$0xf]
  %v1433 = vld [vmem:[%s8 + $0x2c] sm:$0xf]
  %v1434 = vld [vmem:[%s8 + $0x30] sm:$0xf]
  %v1435 = vld [vmem:[%s8 + $0x34] sm:$0xf]
  %v1436 = vld [vmem:[%s8 + $0x38] sm:$0xf]
  %v1437 = vld [vmem:[%s8 + $0x3c] sm:$0xf]
  %v1438 = vld [vmem:[%s9] sm:$0x1]
  %v1440 = vlaneseq
  %v1441 = vshrl.u32 %v1440, 7
  %v1442 = vsub.s32 0, %v1441
  %v1443 = vrot.slane %v1438, %v1442
  %v1461 = vunpack.c.l.b16 %v1422
  %v1462 = vunpack.c.l.b16 %v1423
  %v1463 = vunpack.c.l.b16 %v1424
  %v1464 = vunpack.c.l.b16 %v1425
  %v1465 = vunpack.c.l.b16 %v1426
  %v1466 = vunpack.c.l.b16 %v1427
  %v1467 = vunpack.c.l.b16 %v1428
  %v1468 = vunpack.c.l.b16 %v1429
  %v1469 = vunpack.c.l.b16 %v1430
  %v1470 = vunpack.c.l.b16 %v1431
  %v1471 = vunpack.c.l.b16 %v1432
  %v1472 = vunpack.c.l.b16 %v1433
  %v1473 = vunpack.c.l.b16 %v1434
  %v1474 = vunpack.c.l.b16 %v1435
  %v1475 = vunpack.c.l.b16 %v1436
  %v1476 = vunpack.c.l.b16 %v1437
  %v1477 = vpack.c.b16 %v1462, %v1461
  %v1478 = vpack.c.b16 %v1464, %v1463
  %v1479 = vpack.c.b16 %v1466, %v1465
  %v1480 = vpack.c.b16 %v1468, %v1467
  %v1481 = vpack.c.b16 %v1470, %v1469
  %v1482 = vpack.c.b16 %v1472, %v1471
  %v1483 = vpack.c.b16 %v1474, %v1473
  %v1484 = vpack.c.b16 %v1476, %v1475
  %1493 = vmatprep.subr.bf16.mxu0 0
  %1494 = vmatpush1.bf16.msra.mxu0 %v1477
  %1495 = vmatprep.subr.bf16.mxu0 0
  %1496 = vmatpush1.bf16.msra.mxu0 %v1478
  %1497 = vmatprep.subr.bf16.mxu0 0
  %1498 = vmatpush1.bf16.msra.mxu0 %v1479
  %1499 = vmatprep.subr.bf16.mxu0 0
  %1500 = vmatpush1.bf16.msra.mxu0 %v1480
  %1501 = vmatprep.subr.bf16.mxu0 0
  %1502 = vmatpush1.bf16.msra.mxu0 %v1481
  %1503 = vmatprep.subr.bf16.mxu0 0
  %1504 = vmatpush1.bf16.msra.mxu0 %v1482
  %1505 = vmatprep.subr.bf16.mxu0 0
  %1506 = vmatpush1.bf16.msra.mxu0 %v1483
  %1507 = vmatprep.subr.bf16.mxu0 0
  %1508 = vmatpush1.bf16.msra.mxu0 %v1484
  %1509 = vmatprep.subr.bf16.mxu0 0
  %1510 = vmatpush1.bf16.msra.mxu0 0
  %1511 = vmatprep.subr.bf16.mxu0 0
  %1512 = vmatpush1.bf16.msra.mxu0 0
  %1513 = vmatprep.subr.bf16.mxu0 0
  %1514 = vmatpush1.bf16.msra.mxu0 0
  %1515 = vmatprep.subr.bf16.mxu0 0
  %1516 = vmatpush1.bf16.msra.mxu0 0
  %1517 = vmatprep.subr.bf16.mxu0 0
  %1518 = vmatpush1.bf16.msra.mxu0 0
  %1519 = vmatprep.subr.bf16.mxu0 0
  %1520 = vmatpush1.bf16.msra.mxu0 0
  %1521 = vmatprep.subr.bf16.mxu0 0
  %1522 = vmatpush1.bf16.msra.mxu0 0
  %1523 = vmatprep.subr.bf16.mxu0 0
  %1524 = vmatpush1.bf16.msra.mxu0 0
  %1525 = vmatprep.mubr.bf16.mxu0 0
  %1526 = vmatmul.mubr.bf16.gmra.mrb[0].mxu0 %v1421
  %v1527 = vpop.f32.mrb[0].mxu0
  %v1528 = vadd.f32 %v1443, %v1527
  %v1529 = vpop.f32.mrb[0].mxu0
  %v1530 = vpop.f32.mrb[0].mxu0
  %v1531 = vadd.f32 %v1443, %v1530
  %v1532 = vpop.f32.mrb[0].mxu0
  %1533 = vdwg.mxu0
  %v1534 = vadd.f32 %v1319, %v1528
  %v1535 = vadd.f32 %v1320, %v1531
  %s1536 = scalar_lea.vmem %s4, 1
  %v1537 = vld [vmem:[%s1536] sm:$0x1]
  %s1538 = scalar_lea.vmem %s5, 1
  %v1539 = vld [vmem:[%s1538] sm:$0x1]
  %v1540 = vsel %vm115, %v1534, 0.0
  %1541 = vadd.xlane.f32.xlu0 %v1540
  %v1542 = vpop.xlane.xlu0 %1541
  %v1543 = vsel %vm115, %v1535, 0.0
  %1544 = vadd.xlane.f32.xlu0 %v1543
  %v1545 = vpop.xlane.xlu0 %1544
  %v1546 = vmul.f32 %v1542, %v122
  %v1547 = vmul.f32 %v1545, %v122
  %v1548 = vsub.f32 %v1534, %v1546
  %v1549 = vsub.f32 %v1535, %v1547
  %v1550 = vmul.f32 %v1548, %v1548
  %v1551 = vmul.f32 %v1549, %v1549
  %v1552 = vsel %vm115, %v1550, 0.0
  %1553 = vadd.xlane.f32.xlu0 %v1552
  %v1554 = vpop.xlane.xlu0 %1553
  %v1555 = vsel %vm115, %v1551, 0.0
  %1556 = vadd.xlane.f32.xlu0 %v1555
  %v1557 = vpop.xlane.xlu0 %1556
  %v1558 = vmul.f32 %v1554, %v122
  %v1559 = vmul.f32 %v1557, %v122
  %v1560 = vadd.f32 %v1558, 1e-05
  %v1561 = vadd.f32 %v1559, 1e-05
  %v1562 = vrsqrt.pop %v1560
  %v1563 = vrsqrt.pop %v1561
  %v1564 = vmul.f32 %v1548, %v1562
  %v1565 = vmul.f32 %v1549, %v1563
  %v1567 = vlaneseq
  %v1568 = vshrl.u32 %v1567, 7
  %v1569 = vsub.s32 0, %v1568
  %v1570 = vrot.slane %v1537, %v1569
  %v1572 = vmul.f32 %v1564, %v1570
  %v1573 = vmul.f32 %v1565, %v1570
  %v1575 = vlaneseq
  %v1576 = vshrl.u32 %v1575, 7
  %v1577 = vsub.s32 0, %v1576
  %v1578 = vrot.slane %v1539, %v1577
  %v1580 = vadd.f32 %v1572, %v1578
  %v1581 = vadd.f32 %v1573, %v1578
  %v1582 = vpack.c.bf16 %v1581, %v1580
  %s1583 = scalar_lea.vmem %s1, 16
  %v1584 = vld [vmem:[%s1583] sm:$0xf]
  %v1585 = vld [vmem:[%s1583 + $0x4] sm:$0xf]
  %v1586 = vld [vmem:[%s1583 + $0x8] sm:$0xf]
  %v1587 = vld [vmem:[%s1583 + $0xc] sm:$0xf]
  %v1592 = vunpack.c.l.b16 %v1584
  %v1593 = vunpack.c.l.b16 %v1585
  %v1594 = vunpack.c.l.b16 %v1586
  %v1595 = vunpack.c.l.b16 %v1587
  %v1596 = vpack.c.b16 %v1593, %v1592
  %v1597 = vpack.c.b16 %v1595, %v1594
  %v1601 = vsel %vm115, %v1582, 0
  %1603 = vmatprep.subr.bf16.mxu0 0
  %1604 = vmatpush1.bf16.msra.mxu0 %v1596
  %1605 = vmatprep.subr.bf16.mxu0 0
  %1606 = vmatpush1.bf16.msra.mxu0 %v1597
  %1607 = vmatprep.subr.bf16.mxu0 0
  %1608 = vmatpush1.bf16.msra.mxu0 0
  %1609 = vmatprep.subr.bf16.mxu0 0
  %1610 = vmatpush1.bf16.msra.mxu0 0
  %1611 = vmatprep.subr.bf16.mxu0 0
  %1612 = vmatpush1.bf16.msra.mxu0 0
  %1613 = vmatprep.subr.bf16.mxu0 0
  %1614 = vmatpush1.bf16.msra.mxu0 0
  %1615 = vmatprep.subr.bf16.mxu0 0
  %1616 = vmatpush1.bf16.msra.mxu0 0
  %1617 = vmatprep.subr.bf16.mxu0 0
  %1618 = vmatpush1.bf16.msra.mxu0 0
  %1619 = vmatprep.subr.bf16.mxu0 0
  %1620 = vmatpush1.bf16.msra.mxu0 0
  %1621 = vmatprep.subr.bf16.mxu0 0
  %1622 = vmatpush1.bf16.msra.mxu0 0
  %1623 = vmatprep.subr.bf16.mxu0 0
  %1624 = vmatpush1.bf16.msra.mxu0 0
  %1625 = vmatprep.subr.bf16.mxu0 0
  %1626 = vmatpush1.bf16.msra.mxu0 0
  %1627 = vmatprep.subr.bf16.mxu0 0
  %1628 = vmatpush1.bf16.msra.mxu0 0
  %1629 = vmatprep.subr.bf16.mxu0 0
  %1630 = vmatpush1.bf16.msra.mxu0 0
  %1631 = vmatprep.subr.bf16.mxu0 0
  %1632 = vmatpush1.bf16.msra.mxu0 0
  %1633 = vmatprep.subr.bf16.mxu0 0
  %1634 = vmatpush1.bf16.msra.mxu0 0
  %1635 = vmatprep.mubr.bf16.mxu0 0
  %1636 = vmatmul.mubr.bf16.gmra.mrb[0].mxu0 %v1601
  %v1637 = vpop.f32.mrb[0].mxu0
  %v1638 = vadd.f32 0.0, %v1637
  %v1639 = vpop.f32.mrb[0].mxu0
  %v1640 = vpop.f32.mrb[0].mxu0
  %v1641 = vadd.f32 0.0, %v1640
  %v1642 = vpop.f32.mrb[0].mxu0
  %1643 = vdwg.mxu0
  %v1644 = vpack.c.bf16 %v1638, %v1638
  %v1645 = vpack.c.bf16 %v1641, %v1641
  %1647 = vrot.lane.b32.xlu0 %v1644, 96
  %v1648 = vpop.permute.xlu0 %1647
  %v1650 = vsel %vm225, %v1644, 0
  %v1653 = vsel %vm225, %v1648, 0
  %1655 = vmatprep.subr.bf16.mxu0 0
  %1656 = vmatpush1.bf16.xpose.msra.mxu0 %v1653
  %1657 = vmatprep.subr.bf16.mxu0 0
  %1658 = vmatpush1.bf16.xpose.msra.mxu0 0
  %1659 = vmatprep.subr.bf16.mxu0 0
  %1660 = vmatpush1.bf16.xpose.msra.mxu0 0
  %1661 = vmatprep.subr.bf16.mxu0 0
  %1662 = vmatpush1.bf16.xpose.msra.mxu0 0
  %1663 = vmatprep.subr.bf16.mxu0 0
  %1664 = vmatpush1.bf16.xpose.msra.mxu0 0
  %1665 = vmatprep.subr.bf16.mxu0 0
  %1666 = vmatpush1.bf16.xpose.msra.mxu0 0
  %1667 = vmatprep.subr.bf16.mxu0 0
  %1668 = vmatpush1.bf16.xpose.msra.mxu0 0
  %1669 = vmatprep.subr.bf16.mxu0 0
  %1670 = vmatpush1.bf16.xpose.msra.mxu0 0
  %1671 = vmatprep.subr.bf16.mxu0 0
  %1672 = vmatpush1.bf16.xpose.msra.mxu0 0
  %1673 = vmatprep.subr.bf16.mxu0 0
  %1674 = vmatpush1.bf16.xpose.msra.mxu0 0
  %1675 = vmatprep.subr.bf16.mxu0 0
  %1676 = vmatpush1.bf16.xpose.msra.mxu0 0
  %1677 = vmatprep.subr.bf16.mxu0 0
  %1678 = vmatpush1.bf16.xpose.msra.mxu0 0
  %1679 = vmatprep.subr.bf16.mxu0 0
  %1680 = vmatpush1.bf16.xpose.msra.mxu0 0
  %1681 = vmatprep.subr.bf16.mxu0 0
  %1682 = vmatpush1.bf16.xpose.msra.mxu0 0
  %1683 = vmatprep.subr.bf16.mxu0 0
  %1684 = vmatpush1.bf16.xpose.msra.mxu0 0
  %1685 = vmatprep.subr.bf16.mxu0 0
  %1686 = vmatpush1.bf16.xpose.msra.mxu0 0
  %1687 = vmatprep.mubr.bf16.mxu0 0
  %1688 = vmatmul.mubr.bf16.gmra.mrb[0].mxu0 %v1650
  %v1689 = vpop.f32.mrb[0].mxu0
  %v1690 = vadd.f32 0.0, %v1689
  %v1691 = vpop.f32.mrb[0].mxu0
  %v1692 = vpop.f32.mrb[0].mxu0
  %v1693 = vpop.f32.mrb[0].mxu0
  %1694 = vdwg.mxu0
  %1696 = vrot.lane.b32.xlu0 %v1645, 96
  %v1697 = vpop.permute.xlu0 %1696
  %v1699 = vsel %vm225, %v1645, 0
  %v1702 = vsel %vm225, %v1697, 0
  %1704 = vmatprep.subr.bf16.mxu0 0
  %1705 = vmatpush1.bf16.xpose.msra.mxu0 %v1702
  %1706 = vmatprep.subr.bf16.mxu0 0
  %1707 = vmatpush1.bf16.xpose.msra.mxu0 0
  %1708 = vmatprep.subr.bf16.mxu0 0
  %1709 = vmatpush1.bf16.xpose.msra.mxu0 0
  %1710 = vmatprep.subr.bf16.mxu0 0
  %1711 = vmatpush1.bf16.xpose.msra.mxu0 0
  %1712 = vmatprep.subr.bf16.mxu0 0
  %1713 = vmatpush1.bf16.xpose.msra.mxu0 0
  %1714 = vmatprep.subr.bf16.mxu0 0
  %1715 = vmatpush1.bf16.xpose.msra.mxu0 0
  %1716 = vmatprep.subr.bf16.mxu0 0
  %1717 = vmatpush1.bf16.xpose.msra.mxu0 0
  %1718 = vmatprep.subr.bf16.mxu0 0
  %1719 = vmatpush1.bf16.xpose.msra.mxu0 0
  %1720 = vmatprep.subr.bf16.mxu0 0
  %1721 = vmatpush1.bf16.xpose.msra.mxu0 0
  %1722 = vmatprep.subr.bf16.mxu0 0
  %1723 = vmatpush1.bf16.xpose.msra.mxu0 0
  %1724 = vmatprep.subr.bf16.mxu0 0
  %1725 = vmatpush1.bf16.xpose.msra.mxu0 0
  %1726 = vmatprep.subr.bf16.mxu0 0
  %1727 = vmatpush1.bf16.xpose.msra.mxu0 0
  %1728 = vmatprep.subr.bf16.mxu0 0
  %1729 = vmatpush1.bf16.xpose.msra.mxu0 0
  %1730 = vmatprep.subr.bf16.mxu0 0
  %1731 = vmatpush1.bf16.xpose.msra.mxu0 0
  %1732 = vmatprep.subr.bf16.mxu0 0
  %1733 = vmatpush1.bf16.xpose.msra.mxu0 0
  %1734 = vmatprep.subr.bf16.mxu0 0
  %1735 = vmatpush1.bf16.xpose.msra.mxu0 0
  %1736 = vmatprep.mubr.bf16.mxu0 0
  %1737 = vmatmul.mubr.bf16.gmra.mrb[0].mxu0 %v1699
  %v1738 = vpop.f32.mrb[0].mxu0
  %v1739 = vadd.f32 0.0, %v1738
  %v1740 = vpop.f32.mrb[0].mxu0
  %v1741 = vpop.f32.mrb[0].mxu0
  %v1742 = vpop.f32.mrb[0].mxu0
  %1743 = vdwg.mxu0
  %1744 = vrot.lane.b32.xlu0 %v1644, 120
  %v1745 = vpop.permute.xlu0 %1744
  %1746 = vrot.lane.b32.xlu0 %v1644, 88
  %v1747 = vpop.permute.xlu0 %1746
  %v1749 = vsel %vm225, %v1745, 0
  %v1752 = vsel %vm225, %v1747, 0
  %1754 = vmatprep.subr.bf16.mxu0 0
  %1755 = vmatpush1.bf16.xpose.msra.mxu0 %v1752
  %1756 = vmatprep.subr.bf16.mxu0 0
  %1757 = vmatpush1.bf16.xpose.msra.mxu0 0
  %1758 = vmatprep.subr.bf16.mxu0 0
  %1759 = vmatpush1.bf16.xpose.msra.mxu0 0
  %1760 = vmatprep.subr.bf16.mxu0 0
  %1761 = vmatpush1.bf16.xpose.msra.mxu0 0
  %1762 = vmatprep.subr.bf16.mxu0 0
  %1763 = vmatpush1.bf16.xpose.msra.mxu0 0
  %1764 = vmatprep.subr.bf16.mxu0 0
  %1765 = vmatpush1.bf16.xpose.msra.mxu0 0
  %1766 = vmatprep.subr.bf16.mxu0 0
  %1767 = vmatpush1.bf16.xpose.msra.mxu0 0
  %1768 = vmatprep.subr.bf16.mxu0 0
  %1769 = vmatpush1.bf16.xpose.msra.mxu0 0
  %1770 = vmatprep.subr.bf16.mxu0 0
  %1771 = vmatpush1.bf16.xpose.msra.mxu0 0
  %1772 = vmatprep.subr.bf16.mxu0 0
  %1773 = vmatpush1.bf16.xpose.msra.mxu0 0
  %1774 = vmatprep.subr.bf16.mxu0 0
  %1775 = vmatpush1.bf16.xpose.msra.mxu0 0
  %1776 = vmatprep.subr.bf16.mxu0 0
  %1777 = vmatpush1.bf16.xpose.msra.mxu0 0
  %1778 = vmatprep.subr.bf16.mxu0 0
  %1779 = vmatpush1.bf16.xpose.msra.mxu0 0
  %1780 = vmatprep.subr.bf16.mxu0 0
  %1781 = vmatpush1.bf16.xpose.msra.mxu0 0
  %1782 = vmatprep.subr.bf16.mxu0 0
  %1783 = vmatpush1.bf16.xpose.msra.mxu0 0
  %1784 = vmatprep.subr.bf16.mxu0 0
  %1785 = vmatpush1.bf16.xpose.msra.mxu0 0
  %1786 = vmatprep.mubr.bf16.mxu0 0
  %1787 = vmatmul.mubr.bf16.gmra.mrb[0].mxu0 %v1749
  %v1788 = vpop.f32.mrb[0].mxu0
  %v1789 = vadd.f32 0.0, %v1788
  %v1790 = vpop.f32.mrb[0].mxu0
  %v1791 = vpop.f32.mrb[0].mxu0
  %v1792 = vpop.f32.mrb[0].mxu0
  %1793 = vdwg.mxu0
  %1794 = vrot.lane.b32.xlu0 %v1645, 120
  %v1795 = vpop.permute.xlu0 %1794
  %1796 = vrot.lane.b32.xlu0 %v1645, 88
  %v1797 = vpop.permute.xlu0 %1796
  %v1799 = vsel %vm225, %v1795, 0
  %v1802 = vsel %vm225, %v1797, 0
  %1804 = vmatprep.subr.bf16.mxu0 0
  %1805 = vmatpush1.bf16.xpose.msra.mxu0 %v1802
  %1806 = vmatprep.subr.bf16.mxu0 0
  %1807 = vmatpush1.bf16.xpose.msra.mxu0 0
  %1808 = vmatprep.subr.bf16.mxu0 0
  %1809 = vmatpush1.bf16.xpose.msra.mxu0 0
  %1810 = vmatprep.subr.bf16.mxu0 0
  %1811 = vmatpush1.bf16.xpose.msra.mxu0 0
  %1812 = vmatprep.subr.bf16.mxu0 0
  %1813 = vmatpush1.bf16.xpose.msra.mxu0 0
  %1814 = vmatprep.subr.bf16.mxu0 0
  %1815 = vmatpush1.bf16.xpose.msra.mxu0 0
  %1816 = vmatprep.subr.bf16.mxu0 0
  %1817 = vmatpush1.bf16.xpose.msra.mxu0 0
  %1818 = vmatprep.subr.bf16.mxu0 0
  %1819 = vmatpush1.bf16.xpose.msra.mxu0 0
  %1820 = vmatprep.subr.bf16.mxu0 0
  %1821 = vmatpush1.bf16.xpose.msra.mxu0 0
  %1822 = vmatprep.subr.bf16.mxu0 0
  %1823 = vmatpush1.bf16.xpose.msra.mxu0 0
  %1824 = vmatprep.subr.bf16.mxu0 0
  %1825 = vmatpush1.bf16.xpose.msra.mxu0 0
  %1826 = vmatprep.subr.bf16.mxu0 0
  %1827 = vmatpush1.bf16.xpose.msra.mxu0 0
  %1828 = vmatprep.subr.bf16.mxu0 0
  %1829 = vmatpush1.bf16.xpose.msra.mxu0 0
  %1830 = vmatprep.subr.bf16.mxu0 0
  %1831 = vmatpush1.bf16.xpose.msra.mxu0 0
  %1832 = vmatprep.subr.bf16.mxu0 0
  %1833 = vmatpush1.bf16.xpose.msra.mxu0 0
  %1834 = vmatprep.subr.bf16.mxu0 0
  %1835 = vmatpush1.bf16.xpose.msra.mxu0 0
  %1836 = vmatprep.mubr.bf16.mxu0 0
  %1837 = vmatmul.mubr.bf16.gmra.mrb[0].mxu0 %v1799
  %v1838 = vpop.f32.mrb[0].mxu0
  %v1839 = vadd.f32 0.0, %v1838
  %v1840 = vpop.f32.mrb[0].mxu0
  %v1841 = vpop.f32.mrb[0].mxu0
  %v1842 = vpop.f32.mrb[0].mxu0
  %1843 = vdwg.mxu0
  %1844 = vrot.lane.b32.xlu0 %v1644, 112
  %v1845 = vpop.permute.xlu0 %1844
  %1846 = vrot.lane.b32.xlu0 %v1644, 80
  %v1847 = vpop.permute.xlu0 %1846
  %v1849 = vsel %vm225, %v1845, 0
  %v1852 = vsel %vm225, %v1847, 0
  %1854 = vmatprep.subr.bf16.mxu0 0
  %1855 = vmatpush1.bf16.xpose.msra.mxu0 %v1852
  %1856 = vmatprep.subr.bf16.mxu0 0
  %1857 = vmatpush1.bf16.xpose.msra.mxu0 0
  %1858 = vmatprep.subr.bf16.mxu0 0
  %1859 = vmatpush1.bf16.xpose.msra.mxu0 0
  %1860 = vmatprep.subr.bf16.mxu0 0
  %1861 = vmatpush1.bf16.xpose.msra.mxu0 0
  %1862 = vmatprep.subr.bf16.mxu0 0
  %1863 = vmatpush1.bf16.xpose.msra.mxu0 0
  %1864 = vmatprep.subr.bf16.mxu0 0
  %1865 = vmatpush1.bf16.xpose.msra.mxu0 0
  %1866 = vmatprep.subr.bf16.mxu0 0
  %1867 = vmatpush1.bf16.xpose.msra.mxu0 0
  %1868 = vmatprep.subr.bf16.mxu0 0
  %1869 = vmatpush1.bf16.xpose.msra.mxu0 0
  %1870 = vmatprep.subr.bf16.mxu0 0
  %1871 = vmatpush1.bf16.xpose.msra.mxu0 0
  %1872 = vmatprep.subr.bf16.mxu0 0
  %1873 = vmatpush1.bf16.xpose.msra.mxu0 0
  %1874 = vmatprep.subr.bf16.mxu0 0
  %1875 = vmatpush1.bf16.xpose.msra.mxu0 0
  %1876 = vmatprep.subr.bf16.mxu0 0
  %1877 = vmatpush1.bf16.xpose.msra.mxu0 0
  %1878 = vmatprep.subr.bf16.mxu0 0
  %1879 = vmatpush1.bf16.xpose.msra.mxu0 0
  %1880 = vmatprep.subr.bf16.mxu0 0
  %1881 = vmatpush1.bf16.xpose.msra.mxu0 0
  %1882 = vmatprep.subr.bf16.mxu0 0
  %1883 = vmatpush1.bf16.xpose.msra.mxu0 0
  %1884 = vmatprep.subr.bf16.mxu0 0
  %1885 = vmatpush1.bf16.xpose.msra.mxu0 0
  %1886 = vmatprep.mubr.bf16.mxu0 0
  %1887 = vmatmul.mubr.bf16.gmra.mrb[0].mxu0 %v1849
  %v1888 = vpop.f32.mrb[0].mxu0
  %v1889 = vadd.f32 0.0, %v1888
  %v1890 = vpop.f32.mrb[0].mxu0
  %v1891 = vpop.f32.mrb[0].mxu0
  %v1892 = vpop.f32.mrb[0].mxu0
  %1893 = vdwg.mxu0
  %1894 = vrot.lane.b32.xlu0 %v1645, 112
  %v1895 = vpop.permute.xlu0 %1894
  %1896 = vrot.lane.b32.xlu0 %v1645, 80
  %v1897 = vpop.permute.xlu0 %1896
  %v1899 = vsel %vm225, %v1895, 0
  %v1902 = vsel %vm225, %v1897, 0
  %1904 = vmatprep.subr.bf16.mxu0 0
  %1905 = vmatpush1.bf16.xpose.msra.mxu0 %v1902
  %1906 = vmatprep.subr.bf16.mxu0 0
  %1907 = vmatpush1.bf16.xpose.msra.mxu0 0
  %1908 = vmatprep.subr.bf16.mxu0 0
  %1909 = vmatpush1.bf16.xpose.msra.mxu0 0
  %1910 = vmatprep.subr.bf16.mxu0 0
  %1911 = vmatpush1.bf16.xpose.msra.mxu0 0
  %1912 = vmatprep.subr.bf16.mxu0 0
  %1913 = vmatpush1.bf16.xpose.msra.mxu0 0
  %1914 = vmatprep.subr.bf16.mxu0 0
  %1915 = vmatpush1.bf16.xpose.msra.mxu0 0
  %1916 = vmatprep.subr.bf16.mxu0 0
  %1917 = vmatpush1.bf16.xpose.msra.mxu0 0
  %1918 = vmatprep.subr.bf16.mxu0 0
  %1919 = vmatpush1.bf16.xpose.msra.mxu0 0
  %1920 = vmatprep.subr.bf16.mxu0 0
  %1921 = vmatpush1.bf16.xpose.msra.mxu0 0
  %1922 = vmatprep.subr.bf16.mxu0 0
  %1923 = vmatpush1.bf16.xpose.msra.mxu0 0
  %1924 = vmatprep.subr.bf16.mxu0 0
  %1925 = vmatpush1.bf16.xpose.msra.mxu0 0
  %1926 = vmatprep.subr.bf16.mxu0 0
  %1927 = vmatpush1.bf16.xpose.msra.mxu0 0
  %1928 = vmatprep.subr.bf16.mxu0 0
  %1929 = vmatpush1.bf16.xpose.msra.mxu0 0
  %1930 = vmatprep.subr.bf16.mxu0 0
  %1931 = vmatpush1.bf16.xpose.msra.mxu0 0
  %1932 = vmatprep.subr.bf16.mxu0 0
  %1933 = vmatpush1.bf16.xpose.msra.mxu0 0
  %1934 = vmatprep.subr.bf16.mxu0 0
  %1935 = vmatpush1.bf16.xpose.msra.mxu0 0
  %1936 = vmatprep.mubr.bf16.mxu0 0
  %1937 = vmatmul.mubr.bf16.gmra.mrb[0].mxu0 %v1899
  %v1938 = vpop.f32.mrb[0].mxu0
  %v1939 = vadd.f32 0.0, %v1938
  %v1940 = vpop.f32.mrb[0].mxu0
  %v1941 = vpop.f32.mrb[0].mxu0
  %v1942 = vpop.f32.mrb[0].mxu0
  %1943 = vdwg.mxu0
  %1944 = vrot.lane.b32.xlu0 %v1644, 104
  %v1945 = vpop.permute.xlu0 %1944
  %1946 = vrot.lane.b32.xlu0 %v1644, 72
  %v1947 = vpop.permute.xlu0 %1946
  %v1949 = vsel %vm225, %v1945, 0
  %v1952 = vsel %vm225, %v1947, 0
  %1954 = vmatprep.subr.bf16.mxu0 0
  %1955 = vmatpush1.bf16.xpose.msra.mxu0 %v1952
  %1956 = vmatprep.subr.bf16.mxu0 0
  %1957 = vmatpush1.bf16.xpose.msra.mxu0 0
  %1958 = vmatprep.subr.bf16.mxu0 0
  %1959 = vmatpush1.bf16.xpose.msra.mxu0 0
  %1960 = vmatprep.subr.bf16.mxu0 0
  %1961 = vmatpush1.bf16.xpose.msra.mxu0 0
  %1962 = vmatprep.subr.bf16.mxu0 0
  %1963 = vmatpush1.bf16.xpose.msra.mxu0 0
  %1964 = vmatprep.subr.bf16.mxu0 0
  %1965 = vmatpush1.bf16.xpose.msra.mxu0 0
  %1966 = vmatprep.subr.bf16.mxu0 0
  %1967 = vmatpush1.bf16.xpose.msra.mxu0 0
  %1968 = vmatprep.subr.bf16.mxu0 0
  %1969 = vmatpush1.bf16.xpose.msra.mxu0 0
  %1970 = vmatprep.subr.bf16.mxu0 0
  %1971 = vmatpush1.bf16.xpose.msra.mxu0 0
  %1972 = vmatprep.subr.bf16.mxu0 0
  %1973 = vmatpush1.bf16.xpose.msra.mxu0 0
  %1974 = vmatprep.subr.bf16.mxu0 0
  %1975 = vmatpush1.bf16.xpose.msra.mxu0 0
  %1976 = vmatprep.subr.bf16.mxu0 0
  %1977 = vmatpush1.bf16.xpose.msra.mxu0 0
  %1978 = vmatprep.subr.bf16.mxu0 0
  %1979 = vmatpush1.bf16.xpose.msra.mxu0 0
  %1980 = vmatprep.subr.bf16.mxu0 0
  %1981 = vmatpush1.bf16.xpose.msra.mxu0 0
  %1982 = vmatprep.subr.bf16.mxu0 0
  %1983 = vmatpush1.bf16.xpose.msra.mxu0 0
  %1984 = vmatprep.subr.bf16.mxu0 0
  %1985 = vmatpush1.bf16.xpose.msra.mxu0 0
  %1986 = vmatprep.mubr.bf16.mxu0 0
  %1987 = vmatmul.mubr.bf16.gmra.mrb[0].mxu0 %v1949
  %v1988 = vpop.f32.mrb[0].mxu0
  %v1989 = vadd.f32 0.0, %v1988
  %v1990 = vpop.f32.mrb[0].mxu0
  %v1991 = vpop.f32.mrb[0].mxu0
  %v1992 = vpop.f32.mrb[0].mxu0
  %1993 = vdwg.mxu0
  %1994 = vrot.lane.b32.xlu0 %v1645, 104
  %v1995 = vpop.permute.xlu0 %1994
  %1996 = vrot.lane.b32.xlu0 %v1645, 72
  %v1997 = vpop.permute.xlu0 %1996
  %v1999 = vsel %vm225, %v1995, 0
  %v2002 = vsel %vm225, %v1997, 0
  %2004 = vmatprep.subr.bf16.mxu0 0
  %2005 = vmatpush1.bf16.xpose.msra.mxu0 %v2002
  %2006 = vmatprep.subr.bf16.mxu0 0
  %2007 = vmatpush1.bf16.xpose.msra.mxu0 0
  %2008 = vmatprep.subr.bf16.mxu0 0
  %2009 = vmatpush1.bf16.xpose.msra.mxu0 0
  %2010 = vmatprep.subr.bf16.mxu0 0
  %2011 = vmatpush1.bf16.xpose.msra.mxu0 0
  %2012 = vmatprep.subr.bf16.mxu0 0
  %2013 = vmatpush1.bf16.xpose.msra.mxu0 0
  %2014 = vmatprep.subr.bf16.mxu0 0
  %2015 = vmatpush1.bf16.xpose.msra.mxu0 0
  %2016 = vmatprep.subr.bf16.mxu0 0
  %2017 = vmatpush1.bf16.xpose.msra.mxu0 0
  %2018 = vmatprep.subr.bf16.mxu0 0
  %2019 = vmatpush1.bf16.xpose.msra.mxu0 0
  %2020 = vmatprep.subr.bf16.mxu0 0
  %2021 = vmatpush1.bf16.xpose.msra.mxu0 0
  %2022 = vmatprep.subr.bf16.mxu0 0
  %2023 = vmatpush1.bf16.xpose.msra.mxu0 0
  %2024 = vmatprep.subr.bf16.mxu0 0
  %2025 = vmatpush1.bf16.xpose.msra.mxu0 0
  %2026 = vmatprep.subr.bf16.mxu0 0
  %2027 = vmatpush1.bf16.xpose.msra.mxu0 0
  %2028 = vmatprep.subr.bf16.mxu0 0
  %2029 = vmatpush1.bf16.xpose.msra.mxu0 0
  %2030 = vmatprep.subr.bf16.mxu0 0
  %2031 = vmatpush1.bf16.xpose.msra.mxu0 0
  %2032 = vmatprep.subr.bf16.mxu0 0
  %2033 = vmatpush1.bf16.xpose.msra.mxu0 0
  %2034 = vmatprep.subr.bf16.mxu0 0
  %2035 = vmatpush1.bf16.xpose.msra.mxu0 0
  %2036 = vmatprep.mubr.bf16.mxu0 0
  %2037 = vmatmul.mubr.bf16.gmra.mrb[0].mxu0 %v1999
  %v2038 = vpop.f32.mrb[0].mxu0
  %v2039 = vadd.f32 0.0, %v2038
  %v2040 = vpop.f32.mrb[0].mxu0
  %v2041 = vpop.f32.mrb[0].mxu0
  %v2042 = vpop.f32.mrb[0].mxu0
  %2043 = vdwg.mxu0
  %v2044 = vadd.f32 %v1690, %v109
  %v2045 = vadd.f32 %v1789, %v110
  %v2046 = vadd.f32 %v1889, %v111
  %v2047 = vadd.f32 %v1989, %v112
  %v2048 = vadd.f32 %v1739, %v109
  %v2049 = vadd.f32 %v1839, %v110
  %v2050 = vadd.f32 %v1939, %v111
  %v2051 = vadd.f32 %v2039, %v112
  %v2052 = vsel %vm225, %v2044, -inf
  %2053 = vmax.xlane.f32.xlu0 %v2052
  %v2054 = vpop.xlane.xlu0 %2053
  %v2055 = vsel %vm225, %v2045, -inf
  %2056 = vmax.xlane.f32.xlu0 %v2055
  %v2057 = vpop.xlane.xlu0 %2056
  %v2058 = vsel %vm225, %v2046, -inf
  %2059 = vmax.xlane.f32.xlu0 %v2058
  %v2060 = vpop.xlane.xlu0 %2059
  %v2061 = vsel %vm225, %v2047, -inf
  %2062 = vmax.xlane.f32.xlu0 %v2061
  %v2063 = vpop.xlane.xlu0 %2062
  %v2064 = vsel %vm225, %v2048, -inf
  %2065 = vmax.xlane.f32.xlu0 %v2064
  %v2066 = vpop.xlane.xlu0 %2065
  %v2067 = vsel %vm225, %v2049, -inf
  %2068 = vmax.xlane.f32.xlu0 %v2067
  %v2069 = vpop.xlane.xlu0 %2068
  %v2070 = vsel %vm225, %v2050, -inf
  %2071 = vmax.xlane.f32.xlu0 %v2070
  %v2072 = vpop.xlane.xlu0 %2071
  %v2073 = vsel %vm225, %v2051, -inf
  %2074 = vmax.xlane.f32.xlu0 %v2073
  %v2075 = vpop.xlane.xlu0 %2074
  %v2076 = vsub.f32 %v2044, %v2054
  %v2077 = vsub.f32 %v2045, %v2057
  %v2078 = vsub.f32 %v2046, %v2060
  %v2079 = vsub.f32 %v2047, %v2063
  %v2080 = vsub.f32 %v2048, %v2066
  %v2081 = vsub.f32 %v2049, %v2069
  %v2082 = vsub.f32 %v2050, %v2072
  %v2083 = vsub.f32 %v2051, %v2075
  %v2084 = vmul.f32 %v2076, 1.442695
  %v2085 = vpow.pop %v2084
  %v2086 = vmul.f32 %v2077, 1.442695
  %v2087 = vpow.pop %v2086
  %v2088 = vmul.f32 %v2078, 1.442695
  %v2089 = vpow.pop %v2088
  %v2090 = vmul.f32 %v2079, 1.442695
  %v2091 = vpow.pop %v2090
  %v2092 = vmul.f32 %v2080, 1.442695
  %v2093 = vpow.pop %v2092
  %v2094 = vmul.f32 %v2081, 1.442695
  %v2095 = vpow.pop %v2094
  %v2096 = vmul.f32 %v2082, 1.442695
  %v2097 = vpow.pop %v2096
  %v2098 = vmul.f32 %v2083, 1.442695
  %v2099 = vpow.pop %v2098
  %v2100 = vsel %vm225, %v2085, 0.0
  %2101 = vadd.xlane.f32.xlu0 %v2100
  %v2102 = vpop.xlane.xlu0 %2101
  %v2103 = vsel %vm225, %v2087, 0.0
  %2104 = vadd.xlane.f32.xlu0 %v2103
  %v2105 = vpop.xlane.xlu0 %2104
  %v2106 = vsel %vm225, %v2089, 0.0
  %2107 = vadd.xlane.f32.xlu0 %v2106
  %v2108 = vpop.xlane.xlu0 %2107
  %v2109 = vsel %vm225, %v2091, 0.0
  %2110 = vadd.xlane.f32.xlu0 %v2109
  %v2111 = vpop.xlane.xlu0 %2110
  %v2112 = vsel %vm225, %v2093, 0.0
  %2113 = vadd.xlane.f32.xlu0 %v2112
  %v2114 = vpop.xlane.xlu0 %2113
  %v2115 = vsel %vm225, %v2095, 0.0
  %2116 = vadd.xlane.f32.xlu0 %v2115
  %v2117 = vpop.xlane.xlu0 %2116
  %v2118 = vsel %vm225, %v2097, 0.0
  %2119 = vadd.xlane.f32.xlu0 %v2118
  %v2120 = vpop.xlane.xlu0 %2119
  %v2121 = vsel %vm225, %v2099, 0.0
  %2122 = vadd.xlane.f32.xlu0 %v2121
  %v2123 = vpop.xlane.xlu0 %2122
  %v2124 = vrcp.pop %v2102
  %v2125 = vrcp.pop %v2105
  %v2126 = vrcp.pop %v2108
  %v2127 = vrcp.pop %v2111
  %v2128 = vrcp.pop %v2114
  %v2129 = vrcp.pop %v2117
  %v2130 = vrcp.pop %v2120
  %v2131 = vrcp.pop %v2123
  %v2132 = vmul.f32 %v2085, %v2124
  %v2133 = vmul.f32 %v2087, %v2125
  %v2134 = vmul.f32 %v2089, %v2126
  %v2135 = vmul.f32 %v2091, %v2127
  %v2136 = vmul.f32 %v2093, %v2128
  %v2137 = vmul.f32 %v2095, %v2129
  %v2138 = vmul.f32 %v2097, %v2130
  %v2139 = vmul.f32 %v2099, %v2131
  %s2140 = scalar_lea.vmem %s2, 16
  %v2141 = vld [vmem:[%s2140] sm:$0xf]
  %v2142 = vld [vmem:[%s2140 + $0x4] sm:$0xf]
  %v2143 = vld [vmem:[%s2140 + $0x8] sm:$0xf]
  %v2144 = vld [vmem:[%s2140 + $0xc] sm:$0xf]
  %v2145 = vpack.c.bf16 %v2132, %v2132
  %v2146 = vpack.c.bf16 %v2136, %v2136
  %2147 = vrot.lane.b32.xlu0 %v1644, 64
  %v2148 = vpop.permute.xlu0 %2147
  %v2150 = vsel %vm225, %v2145, 0
  %v2153 = vsel %vm728, %v2148, 0
  %2155 = vmatprep.subr.bf16.mxu0 0
  %2156 = vmatpush1.bf16.msra.mxu0 %v2153
  %2157 = vmatprep.subr.bf16.mxu0 0
  %2158 = vmatpush1.bf16.msra.mxu0 0
  %2159 = vmatprep.subr.bf16.mxu0 0
  %2160 = vmatpush1.bf16.msra.mxu0 0
  %2161 = vmatprep.subr.bf16.mxu0 0
  %2162 = vmatpush1.bf16.msra.mxu0 0
  %2163 = vmatprep.subr.bf16.mxu0 0
  %2164 = vmatpush1.bf16.msra.mxu0 0
  %2165 = vmatprep.subr.bf16.mxu0 0
  %2166 = vmatpush1.bf16.msra.mxu0 0
  %2167 = vmatprep.subr.bf16.mxu0 0
  %2168 = vmatpush1.bf16.msra.mxu0 0
  %2169 = vmatprep.subr.bf16.mxu0 0
  %2170 = vmatpush1.bf16.msra.mxu0 0
  %2171 = vmatprep.subr.bf16.mxu0 0
  %2172 = vmatpush1.bf16.msra.mxu0 0
  %2173 = vmatprep.subr.bf16.mxu0 0
  %2174 = vmatpush1.bf16.msra.mxu0 0
  %2175 = vmatprep.subr.bf16.mxu0 0
  %2176 = vmatpush1.bf16.msra.mxu0 0
  %2177 = vmatprep.subr.bf16.mxu0 0
  %2178 = vmatpush1.bf16.msra.mxu0 0
  %2179 = vmatprep.subr.bf16.mxu0 0
  %2180 = vmatpush1.bf16.msra.mxu0 0
  %2181 = vmatprep.subr.bf16.mxu0 0
  %2182 = vmatpush1.bf16.msra.mxu0 0
  %2183 = vmatprep.subr.bf16.mxu0 0
  %2184 = vmatpush1.bf16.msra.mxu0 0
  %2185 = vmatprep.subr.bf16.mxu0 0
  %2186 = vmatpush1.bf16.msra.mxu0 0
  %2187 = vmatprep.mubr.bf16.mxu0 0
  %2188 = vmatmul.mubr.bf16.gmra.mrb[0].mxu0 %v2150
  %v2189 = vpop.f32.mrb[0].mxu0
  %v2190 = vadd.f32 0.0, %v2189
  %v2191 = vpop.f32.mrb[0].mxu0
  %v2192 = vpop.f32.mrb[0].mxu0
  %v2193 = vpop.f32.mrb[0].mxu0
  %2194 = vdwg.mxu0
  %2195 = vrot.lane.b32.xlu0 %v1645, 64
  %v2196 = vpop.permute.xlu0 %2195
  %v2198 = vsel %vm225, %v2146, 0
  %v2201 = vsel %vm728, %v2196, 0
  %2203 = vmatprep.subr.bf16.mxu0 0
  %2204 = vmatpush1.bf16.msra.mxu0 %v2201
  %2205 = vmatprep.subr.bf16.mxu0 0
  %2206 = vmatpush1.bf16.msra.mxu0 0
  %2207 = vmatprep.subr.bf16.mxu0 0
  %2208 = vmatpush1.bf16.msra.mxu0 0
  %2209 = vmatprep.subr.bf16.mxu0 0
  %2210 = vmatpush1.bf16.msra.mxu0 0
  %2211 = vmatprep.subr.bf16.mxu0 0
  %2212 = vmatpush1.bf16.msra.mxu0 0
  %2213 = vmatprep.subr.bf16.mxu0 0
  %2214 = vmatpush1.bf16.msra.mxu0 0
  %2215 = vmatprep.subr.bf16.mxu0 0
  %2216 = vmatpush1.bf16.msra.mxu0 0
  %2217 = vmatprep.subr.bf16.mxu0 0
  %2218 = vmatpush1.bf16.msra.mxu0 0
  %2219 = vmatprep.subr.bf16.mxu0 0
  %2220 = vmatpush1.bf16.msra.mxu0 0
  %2221 = vmatprep.subr.bf16.mxu0 0
  %2222 = vmatpush1.bf16.msra.mxu0 0
  %2223 = vmatprep.subr.bf16.mxu0 0
  %2224 = vmatpush1.bf16.msra.mxu0 0
  %2225 = vmatprep.subr.bf16.mxu0 0
  %2226 = vmatpush1.bf16.msra.mxu0 0
  %2227 = vmatprep.subr.bf16.mxu0 0
  %2228 = vmatpush1.bf16.msra.mxu0 0
  %2229 = vmatprep.subr.bf16.mxu0 0
  %2230 = vmatpush1.bf16.msra.mxu0 0
  %2231 = vmatprep.subr.bf16.mxu0 0
  %2232 = vmatpush1.bf16.msra.mxu0 0
  %2233 = vmatprep.subr.bf16.mxu0 0
  %2234 = vmatpush1.bf16.msra.mxu0 0
  %2235 = vmatprep.mubr.bf16.mxu0 0
  %2236 = vmatmul.mubr.bf16.gmra.mrb[0].mxu0 %v2198
  %v2237 = vpop.f32.mrb[0].mxu0
  %v2238 = vadd.f32 0.0, %v2237
  %v2239 = vpop.f32.mrb[0].mxu0
  %v2240 = vpop.f32.mrb[0].mxu0
  %v2241 = vpop.f32.mrb[0].mxu0
  %2242 = vdwg.mxu0
  %v2243 = vpack.c.bf16 %v2238, %v2190
  %v2244 = vpack.c.bf16 %v2133, %v2133
  %v2245 = vpack.c.bf16 %v2137, %v2137
  %2246 = vrot.lane.b32.xlu0 %v1644, 56
  %v2247 = vpop.permute.xlu0 %2246
  %v2249 = vsel %vm225, %v2244, 0
  %v2252 = vsel %vm728, %v2247, 0
  %2254 = vmatprep.subr.bf16.mxu0 0
  %2255 = vmatpush1.bf16.msra.mxu0 %v2252
  %2256 = vmatprep.subr.bf16.mxu0 0
  %2257 = vmatpush1.bf16.msra.mxu0 0
  %2258 = vmatprep.subr.bf16.mxu0 0
  %2259 = vmatpush1.bf16.msra.mxu0 0
  %2260 = vmatprep.subr.bf16.mxu0 0
  %2261 = vmatpush1.bf16.msra.mxu0 0
  %2262 = vmatprep.subr.bf16.mxu0 0
  %2263 = vmatpush1.bf16.msra.mxu0 0
  %2264 = vmatprep.subr.bf16.mxu0 0
  %2265 = vmatpush1.bf16.msra.mxu0 0
  %2266 = vmatprep.subr.bf16.mxu0 0
  %2267 = vmatpush1.bf16.msra.mxu0 0
  %2268 = vmatprep.subr.bf16.mxu0 0
  %2269 = vmatpush1.bf16.msra.mxu0 0
  %2270 = vmatprep.subr.bf16.mxu0 0
  %2271 = vmatpush1.bf16.msra.mxu0 0
  %2272 = vmatprep.subr.bf16.mxu0 0
  %2273 = vmatpush1.bf16.msra.mxu0 0
  %2274 = vmatprep.subr.bf16.mxu0 0
  %2275 = vmatpush1.bf16.msra.mxu0 0
  %2276 = vmatprep.subr.bf16.mxu0 0
  %2277 = vmatpush1.bf16.msra.mxu0 0
  %2278 = vmatprep.subr.bf16.mxu0 0
  %2279 = vmatpush1.bf16.msra.mxu0 0
  %2280 = vmatprep.subr.bf16.mxu0 0
  %2281 = vmatpush1.bf16.msra.mxu0 0
  %2282 = vmatprep.subr.bf16.mxu0 0
  %2283 = vmatpush1.bf16.msra.mxu0 0
  %2284 = vmatprep.subr.bf16.mxu0 0
  %2285 = vmatpush1.bf16.msra.mxu0 0
  %2286 = vmatprep.mubr.bf16.mxu0 0
  %2287 = vmatmul.mubr.bf16.gmra.mrb[0].mxu0 %v2249
  %v2288 = vpop.f32.mrb[0].mxu0
  %v2289 = vadd.f32 0.0, %v2288
  %v2290 = vpop.f32.mrb[0].mxu0
  %v2291 = vpop.f32.mrb[0].mxu0
  %v2292 = vpop.f32.mrb[0].mxu0
  %2293 = vdwg.mxu0
  %2294 = vrot.lane.b32.xlu0 %v1645, 56
  %v2295 = vpop.permute.xlu0 %2294
  %v2297 = vsel %vm225, %v2245, 0
  %v2300 = vsel %vm728, %v2295, 0
  %2302 = vmatprep.subr.bf16.mxu0 0
  %2303 = vmatpush1.bf16.msra.mxu0 %v2300
  %2304 = vmatprep.subr.bf16.mxu0 0
  %2305 = vmatpush1.bf16.msra.mxu0 0
  %2306 = vmatprep.subr.bf16.mxu0 0
  %2307 = vmatpush1.bf16.msra.mxu0 0
  %2308 = vmatprep.subr.bf16.mxu0 0
  %2309 = vmatpush1.bf16.msra.mxu0 0
  %2310 = vmatprep.subr.bf16.mxu0 0
  %2311 = vmatpush1.bf16.msra.mxu0 0
  %2312 = vmatprep.subr.bf16.mxu0 0
  %2313 = vmatpush1.bf16.msra.mxu0 0
  %2314 = vmatprep.subr.bf16.mxu0 0
  %2315 = vmatpush1.bf16.msra.mxu0 0
  %2316 = vmatprep.subr.bf16.mxu0 0
  %2317 = vmatpush1.bf16.msra.mxu0 0
  %2318 = vmatprep.subr.bf16.mxu0 0
  %2319 = vmatpush1.bf16.msra.mxu0 0
  %2320 = vmatprep.subr.bf16.mxu0 0
  %2321 = vmatpush1.bf16.msra.mxu0 0
  %2322 = vmatprep.subr.bf16.mxu0 0
  %2323 = vmatpush1.bf16.msra.mxu0 0
  %2324 = vmatprep.subr.bf16.mxu0 0
  %2325 = vmatpush1.bf16.msra.mxu0 0
  %2326 = vmatprep.subr.bf16.mxu0 0
  %2327 = vmatpush1.bf16.msra.mxu0 0
  %2328 = vmatprep.subr.bf16.mxu0 0
  %2329 = vmatpush1.bf16.msra.mxu0 0
  %2330 = vmatprep.subr.bf16.mxu0 0
  %2331 = vmatpush1.bf16.msra.mxu0 0
  %2332 = vmatprep.subr.bf16.mxu0 0
  %2333 = vmatpush1.bf16.msra.mxu0 0
  %2334 = vmatprep.mubr.bf16.mxu0 0
  %2335 = vmatmul.mubr.bf16.gmra.mrb[0].mxu0 %v2297
  %v2336 = vpop.f32.mrb[0].mxu0
  %v2337 = vadd.f32 0.0, %v2336
  %v2338 = vpop.f32.mrb[0].mxu0
  %v2339 = vpop.f32.mrb[0].mxu0
  %v2340 = vpop.f32.mrb[0].mxu0
  %2341 = vdwg.mxu0
  %v2342 = vpack.c.bf16 %v2337, %v2289
  %v2344 = vsel %vm225, %v2342, 0
  %v2347 = vsel %vm728, %v2142, 0
  %2349 = vmatprep.subr.bf16.mxu0 0
  %2350 = vmatpush1.bf16.msra.mxu0 %v2347
  %2351 = vmatprep.subr.bf16.mxu0 0
  %2352 = vmatpush1.bf16.msra.mxu0 0
  %2353 = vmatprep.subr.bf16.mxu0 0
  %2354 = vmatpush1.bf16.msra.mxu0 0
  %2355 = vmatprep.subr.bf16.mxu0 0
  %2356 = vmatpush1.bf16.msra.mxu0 0
  %2357 = vmatprep.subr.bf16.mxu0 0
  %2358 = vmatpush1.bf16.msra.mxu0 0
  %2359 = vmatprep.subr.bf16.mxu0 0
  %2360 = vmatpush1.bf16.msra.mxu0 0
  %2361 = vmatprep.subr.bf16.mxu0 0
  %2362 = vmatpush1.bf16.msra.mxu0 0
  %2363 = vmatprep.subr.bf16.mxu0 0
  %2364 = vmatpush1.bf16.msra.mxu0 0
  %2365 = vmatprep.subr.bf16.mxu0 0
  %2366 = vmatpush1.bf16.msra.mxu0 0
  %2367 = vmatprep.subr.bf16.mxu0 0
  %2368 = vmatpush1.bf16.msra.mxu0 0
  %2369 = vmatprep.subr.bf16.mxu0 0
  %2370 = vmatpush1.bf16.msra.mxu0 0
  %2371 = vmatprep.subr.bf16.mxu0 0
  %2372 = vmatpush1.bf16.msra.mxu0 0
  %2373 = vmatprep.subr.bf16.mxu0 0
  %2374 = vmatpush1.bf16.msra.mxu0 0
  %2375 = vmatprep.subr.bf16.mxu0 0
  %2376 = vmatpush1.bf16.msra.mxu0 0
  %2377 = vmatprep.subr.bf16.mxu0 0
  %2378 = vmatpush1.bf16.msra.mxu0 0
  %2379 = vmatprep.subr.bf16.mxu0 0
  %2380 = vmatpush1.bf16.msra.mxu0 0
  %2381 = vmatprep.mubr.bf16.mxu0 0
  %2382 = vmatmul.mubr.bf16.gmra.mrb[0].mxu0 %v2344
  %v2383 = vpop.f32.mrb[0].mxu0
  %v2384 = vadd.f32 0.0, %v2383
  %v2385 = vpop.f32.mrb[0].mxu0
  %v2386 = vpop.f32.mrb[0].mxu0
  %v2387 = vadd.f32 0.0, %v2386
  %v2388 = vpop.f32.mrb[0].mxu0
  %2389 = vdwg.mxu0
  %v2391 = vsel %vm225, %v2243, 0
  %v2394 = vsel %vm728, %v2141, 0
  %2396 = vmatprep.subr.bf16.mxu0 0
  %2397 = vmatpush1.bf16.msra.mxu0 %v2394
  %2398 = vmatprep.subr.bf16.mxu0 0
  %2399 = vmatpush1.bf16.msra.mxu0 0
  %2400 = vmatprep.subr.bf16.mxu0 0
  %2401 = vmatpush1.bf16.msra.mxu0 0
  %2402 = vmatprep.subr.bf16.mxu0 0
  %2403 = vmatpush1.bf16.msra.mxu0 0
  %2404 = vmatprep.subr.bf16.mxu0 0
  %2405 = vmatpush1.bf16.msra.mxu0 0
  %2406 = vmatprep.subr.bf16.mxu0 0
  %2407 = vmatpush1.bf16.msra.mxu0 0
  %2408 = vmatprep.subr.bf16.mxu0 0
  %2409 = vmatpush1.bf16.msra.mxu0 0
  %2410 = vmatprep.subr.bf16.mxu0 0
  %2411 = vmatpush1.bf16.msra.mxu0 0
  %2412 = vmatprep.subr.bf16.mxu0 0
  %2413 = vmatpush1.bf16.msra.mxu0 0
  %2414 = vmatprep.subr.bf16.mxu0 0
  %2415 = vmatpush1.bf16.msra.mxu0 0
  %2416 = vmatprep.subr.bf16.mxu0 0
  %2417 = vmatpush1.bf16.msra.mxu0 0
  %2418 = vmatprep.subr.bf16.mxu0 0
  %2419 = vmatpush1.bf16.msra.mxu0 0
  %2420 = vmatprep.subr.bf16.mxu0 0
  %2421 = vmatpush1.bf16.msra.mxu0 0
  %2422 = vmatprep.subr.bf16.mxu0 0
  %2423 = vmatpush1.bf16.msra.mxu0 0
  %2424 = vmatprep.subr.bf16.mxu0 0
  %2425 = vmatpush1.bf16.msra.mxu0 0
  %2426 = vmatprep.subr.bf16.mxu0 0
  %2427 = vmatpush1.bf16.msra.mxu0 0
  %2428 = vmatprep.mubr.bf16.mxu0 0
  %2429 = vmatmul.mubr.bf16.gmra.mrb[0].mxu0 %v2391
  %v2430 = vpop.f32.mrb[0].mxu0
  %v2431 = vadd.f32 %v2384, %v2430
  %v2432 = vpop.f32.mrb[0].mxu0
  %v2433 = vpop.f32.mrb[0].mxu0
  %v2434 = vadd.f32 %v2387, %v2433
  %v2435 = vpop.f32.mrb[0].mxu0
  %2436 = vdwg.mxu0
  %v2437 = vpack.c.bf16 %v2134, %v2134
  %v2438 = vpack.c.bf16 %v2138, %v2138
  %2439 = vrot.lane.b32.xlu0 %v1644, 48
  %v2440 = vpop.permute.xlu0 %2439
  %v2442 = vsel %vm225, %v2437, 0
  %v2445 = vsel %vm728, %v2440, 0
  %2447 = vmatprep.subr.bf16.mxu0 0
  %2448 = vmatpush1.bf16.msra.mxu0 %v2445
  %2449 = vmatprep.subr.bf16.mxu0 0
  %2450 = vmatpush1.bf16.msra.mxu0 0
  %2451 = vmatprep.subr.bf16.mxu0 0
  %2452 = vmatpush1.bf16.msra.mxu0 0
  %2453 = vmatprep.subr.bf16.mxu0 0
  %2454 = vmatpush1.bf16.msra.mxu0 0
  %2455 = vmatprep.subr.bf16.mxu0 0
  %2456 = vmatpush1.bf16.msra.mxu0 0
  %2457 = vmatprep.subr.bf16.mxu0 0
  %2458 = vmatpush1.bf16.msra.mxu0 0
  %2459 = vmatprep.subr.bf16.mxu0 0
  %2460 = vmatpush1.bf16.msra.mxu0 0
  %2461 = vmatprep.subr.bf16.mxu0 0
  %2462 = vmatpush1.bf16.msra.mxu0 0
  %2463 = vmatprep.subr.bf16.mxu0 0
  %2464 = vmatpush1.bf16.msra.mxu0 0
  %2465 = vmatprep.subr.bf16.mxu0 0
  %2466 = vmatpush1.bf16.msra.mxu0 0
  %2467 = vmatprep.subr.bf16.mxu0 0
  %2468 = vmatpush1.bf16.msra.mxu0 0
  %2469 = vmatprep.subr.bf16.mxu0 0
  %2470 = vmatpush1.bf16.msra.mxu0 0
  %2471 = vmatprep.subr.bf16.mxu0 0
  %2472 = vmatpush1.bf16.msra.mxu0 0
  %2473 = vmatprep.subr.bf16.mxu0 0
  %2474 = vmatpush1.bf16.msra.mxu0 0
  %2475 = vmatprep.subr.bf16.mxu0 0
  %2476 = vmatpush1.bf16.msra.mxu0 0
  %2477 = vmatprep.subr.bf16.mxu0 0
  %2478 = vmatpush1.bf16.msra.mxu0 0
  %2479 = vmatprep.mubr.bf16.mxu0 0
  %2480 = vmatmul.mubr.bf16.gmra.mrb[0].mxu0 %v2442
  %v2481 = vpop.f32.mrb[0].mxu0
  %v2482 = vadd.f32 0.0, %v2481
  %v2483 = vpop.f32.mrb[0].mxu0
  %v2484 = vpop.f32.mrb[0].mxu0
  %v2485 = vpop.f32.mrb[0].mxu0
  %2486 = vdwg.mxu0
  %2487 = vrot.lane.b32.xlu0 %v1645, 48
  %v2488 = vpop.permute.xlu0 %2487
  %v2490 = vsel %vm225, %v2438, 0
  %v2493 = vsel %vm728, %v2488, 0
  %2495 = vmatprep.subr.bf16.mxu0 0
  %2496 = vmatpush1.bf16.msra.mxu0 %v2493
  %2497 = vmatprep.subr.bf16.mxu0 0
  %2498 = vmatpush1.bf16.msra.mxu0 0
  %2499 = vmatprep.subr.bf16.mxu0 0
  %2500 = vmatpush1.bf16.msra.mxu0 0
  %2501 = vmatprep.subr.bf16.mxu0 0
  %2502 = vmatpush1.bf16.msra.mxu0 0
  %2503 = vmatprep.subr.bf16.mxu0 0
  %2504 = vmatpush1.bf16.msra.mxu0 0
  %2505 = vmatprep.subr.bf16.mxu0 0
  %2506 = vmatpush1.bf16.msra.mxu0 0
  %2507 = vmatprep.subr.bf16.mxu0 0
  %2508 = vmatpush1.bf16.msra.mxu0 0
  %2509 = vmatprep.subr.bf16.mxu0 0
  %2510 = vmatpush1.bf16.msra.mxu0 0
  %2511 = vmatprep.subr.bf16.mxu0 0
  %2512 = vmatpush1.bf16.msra.mxu0 0
  %2513 = vmatprep.subr.bf16.mxu0 0
  %2514 = vmatpush1.bf16.msra.mxu0 0
  %2515 = vmatprep.subr.bf16.mxu0 0
  %2516 = vmatpush1.bf16.msra.mxu0 0
  %2517 = vmatprep.subr.bf16.mxu0 0
  %2518 = vmatpush1.bf16.msra.mxu0 0
  %2519 = vmatprep.subr.bf16.mxu0 0
  %2520 = vmatpush1.bf16.msra.mxu0 0
  %2521 = vmatprep.subr.bf16.mxu0 0
  %2522 = vmatpush1.bf16.msra.mxu0 0
  %2523 = vmatprep.subr.bf16.mxu0 0
  %2524 = vmatpush1.bf16.msra.mxu0 0
  %2525 = vmatprep.subr.bf16.mxu0 0
  %2526 = vmatpush1.bf16.msra.mxu0 0
  %2527 = vmatprep.mubr.bf16.mxu0 0
  %2528 = vmatmul.mubr.bf16.gmra.mrb[0].mxu0 %v2490
  %v2529 = vpop.f32.mrb[0].mxu0
  %v2530 = vadd.f32 0.0, %v2529
  %v2531 = vpop.f32.mrb[0].mxu0
  %v2532 = vpop.f32.mrb[0].mxu0
  %v2533 = vpop.f32.mrb[0].mxu0
  %2534 = vdwg.mxu0
  %v2535 = vpack.c.bf16 %v2530, %v2482
  %v2537 = vsel %vm225, %v2535, 0
  %v2540 = vsel %vm728, %v2143, 0
  %2542 = vmatprep.subr.bf16.mxu0 0
  %2543 = vmatpush1.bf16.msra.mxu0 %v2540
  %2544 = vmatprep.subr.bf16.mxu0 0
  %2545 = vmatpush1.bf16.msra.mxu0 0
  %2546 = vmatprep.subr.bf16.mxu0 0
  %2547 = vmatpush1.bf16.msra.mxu0 0
  %2548 = vmatprep.subr.bf16.mxu0 0
  %2549 = vmatpush1.bf16.msra.mxu0 0
  %2550 = vmatprep.subr.bf16.mxu0 0
  %2551 = vmatpush1.bf16.msra.mxu0 0
  %2552 = vmatprep.subr.bf16.mxu0 0
  %2553 = vmatpush1.bf16.msra.mxu0 0
  %2554 = vmatprep.subr.bf16.mxu0 0
  %2555 = vmatpush1.bf16.msra.mxu0 0
  %2556 = vmatprep.subr.bf16.mxu0 0
  %2557 = vmatpush1.bf16.msra.mxu0 0
  %2558 = vmatprep.subr.bf16.mxu0 0
  %2559 = vmatpush1.bf16.msra.mxu0 0
  %2560 = vmatprep.subr.bf16.mxu0 0
  %2561 = vmatpush1.bf16.msra.mxu0 0
  %2562 = vmatprep.subr.bf16.mxu0 0
  %2563 = vmatpush1.bf16.msra.mxu0 0
  %2564 = vmatprep.subr.bf16.mxu0 0
  %2565 = vmatpush1.bf16.msra.mxu0 0
  %2566 = vmatprep.subr.bf16.mxu0 0
  %2567 = vmatpush1.bf16.msra.mxu0 0
  %2568 = vmatprep.subr.bf16.mxu0 0
  %2569 = vmatpush1.bf16.msra.mxu0 0
  %2570 = vmatprep.subr.bf16.mxu0 0
  %2571 = vmatpush1.bf16.msra.mxu0 0
  %2572 = vmatprep.subr.bf16.mxu0 0
  %2573 = vmatpush1.bf16.msra.mxu0 0
  %2574 = vmatprep.mubr.bf16.mxu0 0
  %2575 = vmatmul.mubr.bf16.gmra.mrb[0].mxu0 %v2537
  %v2576 = vpop.f32.mrb[0].mxu0
  %v2577 = vadd.f32 0.0, %v2576
  %v2578 = vpop.f32.mrb[0].mxu0
  %v2579 = vpop.f32.mrb[0].mxu0
  %v2580 = vadd.f32 0.0, %v2579
  %v2581 = vpop.f32.mrb[0].mxu0
  %2582 = vdwg.mxu0
  %v2583 = vadd.f32 %v2431, %v2577
  %v2584 = vadd.f32 %v2434, %v2580
  %v2585 = vpack.c.bf16 %v2135, %v2135
  %v2586 = vpack.c.bf16 %v2139, %v2139
  %2587 = vrot.lane.b32.xlu0 %v1644, 40
  %v2588 = vpop.permute.xlu0 %2587
  %v2590 = vsel %vm225, %v2585, 0
  %v2593 = vsel %vm728, %v2588, 0
  %2595 = vmatprep.subr.bf16.mxu0 0
  %2596 = vmatpush1.bf16.msra.mxu0 %v2593
  %2597 = vmatprep.subr.bf16.mxu0 0
  %2598 = vmatpush1.bf16.msra.mxu0 0
  %2599 = vmatprep.subr.bf16.mxu0 0
  %2600 = vmatpush1.bf16.msra.mxu0 0
  %2601 = vmatprep.subr.bf16.mxu0 0
  %2602 = vmatpush1.bf16.msra.mxu0 0
  %2603 = vmatprep.subr.bf16.mxu0 0
  %2604 = vmatpush1.bf16.msra.mxu0 0
  %2605 = vmatprep.subr.bf16.mxu0 0
  %2606 = vmatpush1.bf16.msra.mxu0 0
  %2607 = vmatprep.subr.bf16.mxu0 0
  %2608 = vmatpush1.bf16.msra.mxu0 0
  %2609 = vmatprep.subr.bf16.mxu0 0
  %2610 = vmatpush1.bf16.msra.mxu0 0
  %2611 = vmatprep.subr.bf16.mxu0 0
  %2612 = vmatpush1.bf16.msra.mxu0 0
  %2613 = vmatprep.subr.bf16.mxu0 0
  %2614 = vmatpush1.bf16.msra.mxu0 0
  %2615 = vmatprep.subr.bf16.mxu0 0
  %2616 = vmatpush1.bf16.msra.mxu0 0
  %2617 = vmatprep.subr.bf16.mxu0 0
  %2618 = vmatpush1.bf16.msra.mxu0 0
  %2619 = vmatprep.subr.bf16.mxu0 0
  %2620 = vmatpush1.bf16.msra.mxu0 0
  %2621 = vmatprep.subr.bf16.mxu0 0
  %2622 = vmatpush1.bf16.msra.mxu0 0
  %2623 = vmatprep.subr.bf16.mxu0 0
  %2624 = vmatpush1.bf16.msra.mxu0 0
  %2625 = vmatprep.subr.bf16.mxu0 0
  %2626 = vmatpush1.bf16.msra.mxu0 0
  %2627 = vmatprep.mubr.bf16.mxu0 0
  %2628 = vmatmul.mubr.bf16.gmra.mrb[0].mxu0 %v2590
  %v2629 = vpop.f32.mrb[0].mxu0
  %v2630 = vadd.f32 0.0, %v2629
  %v2631 = vpop.f32.mrb[0].mxu0
  %v2632 = vpop.f32.mrb[0].mxu0
  %v2633 = vpop.f32.mrb[0].mxu0
  %2634 = vdwg.mxu0
  %2635 = vrot.lane.b32.xlu0 %v1645, 40
  %v2636 = vpop.permute.xlu0 %2635
  %v2638 = vsel %vm225, %v2586, 0
  %v2641 = vsel %vm728, %v2636, 0
  %2643 = vmatprep.subr.bf16.mxu0 0
  %2644 = vmatpush1.bf16.msra.mxu0 %v2641
  %2645 = vmatprep.subr.bf16.mxu0 0
  %2646 = vmatpush1.bf16.msra.mxu0 0
  %2647 = vmatprep.subr.bf16.mxu0 0
  %2648 = vmatpush1.bf16.msra.mxu0 0
  %2649 = vmatprep.subr.bf16.mxu0 0
  %2650 = vmatpush1.bf16.msra.mxu0 0
  %2651 = vmatprep.subr.bf16.mxu0 0
  %2652 = vmatpush1.bf16.msra.mxu0 0
  %2653 = vmatprep.subr.bf16.mxu0 0
  %2654 = vmatpush1.bf16.msra.mxu0 0
  %2655 = vmatprep.subr.bf16.mxu0 0
  %2656 = vmatpush1.bf16.msra.mxu0 0
  %2657 = vmatprep.subr.bf16.mxu0 0
  %2658 = vmatpush1.bf16.msra.mxu0 0
  %2659 = vmatprep.subr.bf16.mxu0 0
  %2660 = vmatpush1.bf16.msra.mxu0 0
  %2661 = vmatprep.subr.bf16.mxu0 0
  %2662 = vmatpush1.bf16.msra.mxu0 0
  %2663 = vmatprep.subr.bf16.mxu0 0
  %2664 = vmatpush1.bf16.msra.mxu0 0
  %2665 = vmatprep.subr.bf16.mxu0 0
  %2666 = vmatpush1.bf16.msra.mxu0 0
  %2667 = vmatprep.subr.bf16.mxu0 0
  %2668 = vmatpush1.bf16.msra.mxu0 0
  %2669 = vmatprep.subr.bf16.mxu0 0
  %2670 = vmatpush1.bf16.msra.mxu0 0
  %2671 = vmatprep.subr.bf16.mxu0 0
  %2672 = vmatpush1.bf16.msra.mxu0 0
  %2673 = vmatprep.subr.bf16.mxu0 0
  %2674 = vmatpush1.bf16.msra.mxu0 0
  %2675 = vmatprep.mubr.bf16.mxu0 0
  %2676 = vmatmul.mubr.bf16.gmra.mrb[0].mxu0 %v2638
  %v2677 = vpop.f32.mrb[0].mxu0
  %v2678 = vadd.f32 0.0, %v2677
  %v2679 = vpop.f32.mrb[0].mxu0
  %v2680 = vpop.f32.mrb[0].mxu0
  %v2681 = vpop.f32.mrb[0].mxu0
  %2682 = vdwg.mxu0
  %v2683 = vpack.c.bf16 %v2678, %v2630
  %v2685 = vsel %vm225, %v2683, 0
  %v2688 = vsel %vm728, %v2144, 0
  %2690 = vmatprep.subr.bf16.mxu0 0
  %2691 = vmatpush1.bf16.msra.mxu0 %v2688
  %2692 = vmatprep.subr.bf16.mxu0 0
  %2693 = vmatpush1.bf16.msra.mxu0 0
  %2694 = vmatprep.subr.bf16.mxu0 0
  %2695 = vmatpush1.bf16.msra.mxu0 0
  %2696 = vmatprep.subr.bf16.mxu0 0
  %2697 = vmatpush1.bf16.msra.mxu0 0
  %2698 = vmatprep.subr.bf16.mxu0 0
  %2699 = vmatpush1.bf16.msra.mxu0 0
  %2700 = vmatprep.subr.bf16.mxu0 0
  %2701 = vmatpush1.bf16.msra.mxu0 0
  %2702 = vmatprep.subr.bf16.mxu0 0
  %2703 = vmatpush1.bf16.msra.mxu0 0
  %2704 = vmatprep.subr.bf16.mxu0 0
  %2705 = vmatpush1.bf16.msra.mxu0 0
  %2706 = vmatprep.subr.bf16.mxu0 0
  %2707 = vmatpush1.bf16.msra.mxu0 0
  %2708 = vmatprep.subr.bf16.mxu0 0
  %2709 = vmatpush1.bf16.msra.mxu0 0
  %2710 = vmatprep.subr.bf16.mxu0 0
  %2711 = vmatpush1.bf16.msra.mxu0 0
  %2712 = vmatprep.subr.bf16.mxu0 0
  %2713 = vmatpush1.bf16.msra.mxu0 0
  %2714 = vmatprep.subr.bf16.mxu0 0
  %2715 = vmatpush1.bf16.msra.mxu0 0
  %2716 = vmatprep.subr.bf16.mxu0 0
  %2717 = vmatpush1.bf16.msra.mxu0 0
  %2718 = vmatprep.subr.bf16.mxu0 0
  %2719 = vmatpush1.bf16.msra.mxu0 0
  %2720 = vmatprep.subr.bf16.mxu0 0
  %2721 = vmatpush1.bf16.msra.mxu0 0
  %2722 = vmatprep.mubr.bf16.mxu0 0
  %2723 = vmatmul.mubr.bf16.gmra.mrb[0].mxu0 %v2685
  %v2724 = vpop.f32.mrb[0].mxu0
  %v2725 = vadd.f32 0.0, %v2724
  %v2726 = vpop.f32.mrb[0].mxu0
  %v2727 = vpop.f32.mrb[0].mxu0
  %v2728 = vadd.f32 0.0, %v2727
  %v2729 = vpop.f32.mrb[0].mxu0
  %2730 = vdwg.mxu0
  %v2731 = vadd.f32 %v2583, %v2725
  %v2732 = vadd.f32 %v2584, %v2728
  %v2733 = vadd.f32 %v1534, %v2731
  %v2734 = vadd.f32 %v1535, %v2732
  %s2735 = scalar_lea.vmem %s3, 1
  %v2736 = vld [vmem:[%s2735] sm:$0x1]
  %v2738 = vlaneseq
  %v2739 = vshrl.u32 %v2738, 7
  %v2740 = vsub.s32 0, %v2739
  %v2741 = vrot.slane %v2736, %v2740
  %v2743 = vadd.f32 %v2733, %v2741
  %v2744 = vadd.f32 %v2734, %v2741
  %v2745 = vsel %vm115, %v2743, 0.0
  %2746 = vadd.xlane.f32.xlu0 %v2745
  %v2747 = vpop.xlane.xlu0 %2746
  %v2748 = vsel %vm115, %v2744, 0.0
  %2749 = vadd.xlane.f32.xlu0 %v2748
  %v2750 = vpop.xlane.xlu0 %2749
  %v2751 = vmul.f32 %v2747, %v122
  %v2752 = vmul.f32 %v2750, %v122
  %v2753 = vsub.f32 %v2743, %v2751
  %v2754 = vsub.f32 %v2744, %v2752
  %v2755 = vmul.f32 %v2753, %v2753
  %v2756 = vmul.f32 %v2754, %v2754
  %v2757 = vsel %vm115, %v2755, 0.0
  %2758 = vadd.xlane.f32.xlu0 %v2757
  %v2759 = vpop.xlane.xlu0 %2758
  %v2760 = vsel %vm115, %v2756, 0.0
  %2761 = vadd.xlane.f32.xlu0 %v2760
  %v2762 = vpop.xlane.xlu0 %2761
  %v2763 = vmul.f32 %v2759, %v122
  %v2764 = vmul.f32 %v2762, %v122
  %v2765 = vadd.f32 %v2763, 1e-05
  %v2766 = vadd.f32 %v2764, 1e-05
  %v2767 = vrsqrt.pop %v2765
  %v2768 = vrsqrt.pop %v2766
  %v2769 = vmul.f32 %v2753, %v2767
  %v2770 = vmul.f32 %v2754, %v2768
  %v2771 = vmul.f32 %v2769, %v1570
  %v2772 = vmul.f32 %v2770, %v1570
  %v2773 = vadd.f32 %v2771, %v1578
  %v2774 = vadd.f32 %v2772, %v1578
  %v2775 = vpack.c.bf16 %v2774, %v2773
  %s2776 = scalar_lea.vmem %s6, 16
  %v2777 = vld [vmem:[%s2776] sm:$0xf]
  %v2778 = vld [vmem:[%s2776 + $0x4] sm:$0xf]
  %v2779 = vld [vmem:[%s2776 + $0x8] sm:$0xf]
  %v2780 = vld [vmem:[%s2776 + $0xc] sm:$0xf]
  %s2781 = scalar_lea.vmem %s7, 1
  %v2782 = vld [vmem:[%s2781] sm:$0x1]
  %v2784 = vlaneseq
  %v2785 = vshrl.u32 %v2784, 7
  %v2786 = vsub.s32 0, %v2785
  %v2787 = vrot.slane %v2782, %v2786
  %v2793 = vunpack.c.l.b16 %v2777
  %v2794 = vunpack.c.l.b16 %v2778
  %v2795 = vunpack.c.l.b16 %v2779
  %v2796 = vunpack.c.l.b16 %v2780
  %v2797 = vpack.c.b16 %v2794, %v2793
  %v2798 = vpack.c.b16 %v2796, %v2795
  %v2802 = vsel %vm115, %v2775, 0
  %2804 = vmatprep.subr.bf16.mxu0 0
  %2805 = vmatpush1.bf16.msra.mxu0 %v2797
  %2806 = vmatprep.subr.bf16.mxu0 0
  %2807 = vmatpush1.bf16.msra.mxu0 %v2798
  %2808 = vmatprep.subr.bf16.mxu0 0
  %2809 = vmatpush1.bf16.msra.mxu0 0
  %2810 = vmatprep.subr.bf16.mxu0 0
  %2811 = vmatpush1.bf16.msra.mxu0 0
  %2812 = vmatprep.subr.bf16.mxu0 0
  %2813 = vmatpush1.bf16.msra.mxu0 0
  %2814 = vmatprep.subr.bf16.mxu0 0
  %2815 = vmatpush1.bf16.msra.mxu0 0
  %2816 = vmatprep.subr.bf16.mxu0 0
  %2817 = vmatpush1.bf16.msra.mxu0 0
  %2818 = vmatprep.subr.bf16.mxu0 0
  %2819 = vmatpush1.bf16.msra.mxu0 0
  %2820 = vmatprep.subr.bf16.mxu0 0
  %2821 = vmatpush1.bf16.msra.mxu0 0
  %2822 = vmatprep.subr.bf16.mxu0 0
  %2823 = vmatpush1.bf16.msra.mxu0 0
  %2824 = vmatprep.subr.bf16.mxu0 0
  %2825 = vmatpush1.bf16.msra.mxu0 0
  %2826 = vmatprep.subr.bf16.mxu0 0
  %2827 = vmatpush1.bf16.msra.mxu0 0
  %2828 = vmatprep.subr.bf16.mxu0 0
  %2829 = vmatpush1.bf16.msra.mxu0 0
  %2830 = vmatprep.subr.bf16.mxu0 0
  %2831 = vmatpush1.bf16.msra.mxu0 0
  %2832 = vmatprep.subr.bf16.mxu0 0
  %2833 = vmatpush1.bf16.msra.mxu0 0
  %2834 = vmatprep.subr.bf16.mxu0 0
  %2835 = vmatpush1.bf16.msra.mxu0 0
  %2836 = vmatprep.mubr.bf16.mxu0 0
  %2837 = vmatmul.mubr.bf16.gmra.mrb[0].mxu0 %v2802
  %v2838 = vpop.f32.mrb[0].mxu0
  %v2839 = vadd.f32 %v2787, %v2838
  %v2840 = vpop.f32.mrb[0].mxu0
  %v2841 = vpop.f32.mrb[0].mxu0
  %v2842 = vadd.f32 %v2787, %v2841
  %v2843 = vpop.f32.mrb[0].mxu0
  %2844 = vdwg.mxu0
  %v2845 = vmax.f32 %v2839, 0.0
  %v2846 = vmax.f32 %v2842, 0.0
  %v2847 = vpack.c.bf16 %v2846, %v2845
  %s2848 = scalar_lea.vmem %s8, 64
  %v2849 = vld [vmem:[%s2848] sm:$0xf]
  %v2850 = vld [vmem:[%s2848 + $0x4] sm:$0xf]
  %v2851 = vld [vmem:[%s2848 + $0x8] sm:$0xf]
  %v2852 = vld [vmem:[%s2848 + $0xc] sm:$0xf]
  %v2853 = vld [vmem:[%s2848 + $0x10] sm:$0xf]
  %v2854 = vld [vmem:[%s2848 + $0x14] sm:$0xf]
  %v2855 = vld [vmem:[%s2848 + $0x18] sm:$0xf]
  %v2856 = vld [vmem:[%s2848 + $0x1c] sm:$0xf]
  %v2857 = vld [vmem:[%s2848 + $0x20] sm:$0xf]
  %v2858 = vld [vmem:[%s2848 + $0x24] sm:$0xf]
  %v2859 = vld [vmem:[%s2848 + $0x28] sm:$0xf]
  %v2860 = vld [vmem:[%s2848 + $0x2c] sm:$0xf]
  %v2861 = vld [vmem:[%s2848 + $0x30] sm:$0xf]
  %v2862 = vld [vmem:[%s2848 + $0x34] sm:$0xf]
  %v2863 = vld [vmem:[%s2848 + $0x38] sm:$0xf]
  %v2864 = vld [vmem:[%s2848 + $0x3c] sm:$0xf]
  %s2865 = scalar_lea.vmem %s9, 1
  %v2866 = vld [vmem:[%s2865] sm:$0x1]
  %v2868 = vlaneseq
  %v2869 = vshrl.u32 %v2868, 7
  %v2870 = vsub.s32 0, %v2869
  %v2871 = vrot.slane %v2866, %v2870
  %v2889 = vunpack.c.l.b16 %v2849
  %v2890 = vunpack.c.l.b16 %v2850
  %v2891 = vunpack.c.l.b16 %v2851
  %v2892 = vunpack.c.l.b16 %v2852
  %v2893 = vunpack.c.l.b16 %v2853
  %v2894 = vunpack.c.l.b16 %v2854
  %v2895 = vunpack.c.l.b16 %v2855
  %v2896 = vunpack.c.l.b16 %v2856
  %v2897 = vunpack.c.l.b16 %v2857
  %v2898 = vunpack.c.l.b16 %v2858
  %v2899 = vunpack.c.l.b16 %v2859
  %v2900 = vunpack.c.l.b16 %v2860
  %v2901 = vunpack.c.l.b16 %v2861
  %v2902 = vunpack.c.l.b16 %v2862
  %v2903 = vunpack.c.l.b16 %v2863
  %v2904 = vunpack.c.l.b16 %v2864
  %v2905 = vpack.c.b16 %v2890, %v2889
  %v2906 = vpack.c.b16 %v2892, %v2891
  %v2907 = vpack.c.b16 %v2894, %v2893
  %v2908 = vpack.c.b16 %v2896, %v2895
  %v2909 = vpack.c.b16 %v2898, %v2897
  %v2910 = vpack.c.b16 %v2900, %v2899
  %v2911 = vpack.c.b16 %v2902, %v2901
  %v2912 = vpack.c.b16 %v2904, %v2903
  %2921 = vmatprep.subr.bf16.mxu0 0
  %2922 = vmatpush1.bf16.msra.mxu0 %v2905
  %2923 = vmatprep.subr.bf16.mxu0 0
  %2924 = vmatpush1.bf16.msra.mxu0 %v2906
  %2925 = vmatprep.subr.bf16.mxu0 0
  %2926 = vmatpush1.bf16.msra.mxu0 %v2907
  %2927 = vmatprep.subr.bf16.mxu0 0
  %2928 = vmatpush1.bf16.msra.mxu0 %v2908
  %2929 = vmatprep.subr.bf16.mxu0 0
  %2930 = vmatpush1.bf16.msra.mxu0 %v2909
  %2931 = vmatprep.subr.bf16.mxu0 0
  %2932 = vmatpush1.bf16.msra.mxu0 %v2910
  %2933 = vmatprep.subr.bf16.mxu0 0
  %2934 = vmatpush1.bf16.msra.mxu0 %v2911
  %2935 = vmatprep.subr.bf16.mxu0 0
  %2936 = vmatpush1.bf16.msra.mxu0 %v2912
  %2937 = vmatprep.subr.bf16.mxu0 0
  %2938 = vmatpush1.bf16.msra.mxu0 0
  %2939 = vmatprep.subr.bf16.mxu0 0
  %2940 = vmatpush1.bf16.msra.mxu0 0
  %2941 = vmatprep.subr.bf16.mxu0 0
  %2942 = vmatpush1.bf16.msra.mxu0 0
  %2943 = vmatprep.subr.bf16.mxu0 0
  %2944 = vmatpush1.bf16.msra.mxu0 0
  %2945 = vmatprep.subr.bf16.mxu0 0
  %2946 = vmatpush1.bf16.msra.mxu0 0
  %2947 = vmatprep.subr.bf16.mxu0 0
  %2948 = vmatpush1.bf16.msra.mxu0 0
  %2949 = vmatprep.subr.bf16.mxu0 0
  %2950 = vmatpush1.bf16.msra.mxu0 0
  %2951 = vmatprep.subr.bf16.mxu0 0
  %2952 = vmatpush1.bf16.msra.mxu0 0
  %2953 = vmatprep.mubr.bf16.mxu0 0
  %2954 = vmatmul.mubr.bf16.gmra.mrb[0].mxu0 %v2847
  %v2955 = vpop.f32.mrb[0].mxu0
  %v2956 = vadd.f32 %v2871, %v2955
  %v2957 = vpop.f32.mrb[0].mxu0
  %v2958 = vpop.f32.mrb[0].mxu0
  %v2959 = vadd.f32 %v2871, %v2958
  %v2960 = vpop.f32.mrb[0].mxu0
  %2961 = vdwg.mxu0
  %v2962 = vadd.f32 %v2743, %v2956
  %v2963 = vadd.f32 %v2744, %v2959
  %v2964 = vld [vmem:[%s10] sm:$0x1]
  %v2965 = vld [vmem:[%s11] sm:$0x1]
  %v2966 = vsel %vm115, %v2962, 0.0
  %2967 = vadd.xlane.f32.xlu0 %v2966
  %v2968 = vpop.xlane.xlu0 %2967
  %v2969 = vsel %vm115, %v2963, 0.0
  %2970 = vadd.xlane.f32.xlu0 %v2969
  %v2971 = vpop.xlane.xlu0 %2970
  %v2972 = vmul.f32 %v2968, %v122
  %v2973 = vmul.f32 %v2971, %v122
  %v2974 = vsub.f32 %v2962, %v2972
  %v2975 = vsub.f32 %v2963, %v2973
  %v2976 = vmul.f32 %v2974, %v2974
  %v2977 = vmul.f32 %v2975, %v2975
  %v2978 = vsel %vm115, %v2976, 0.0
  %2979 = vadd.xlane.f32.xlu0 %v2978
  %v2980 = vpop.xlane.xlu0 %2979
  %v2981 = vsel %vm115, %v2977, 0.0
  %2982 = vadd.xlane.f32.xlu0 %v2981
  %v2983 = vpop.xlane.xlu0 %2982
  %v2984 = vmul.f32 %v2980, %v122
  %v2985 = vmul.f32 %v2983, %v122
  %v2986 = vadd.f32 %v2984, 1e-05
  %v2987 = vadd.f32 %v2985, 1e-05
  %v2988 = vrsqrt.pop %v2986
  %v2989 = vrsqrt.pop %v2987
  %v2990 = vmul.f32 %v2974, %v2988
  %v2991 = vmul.f32 %v2975, %v2989
  %v2993 = vlaneseq
  %v2994 = vshrl.u32 %v2993, 7
  %v2995 = vsub.s32 0, %v2994
  %v2996 = vrot.slane %v2964, %v2995
  %v2998 = vmul.f32 %v2990, %v2996
  %v2999 = vmul.f32 %v2991, %v2996
  %v3001 = vlaneseq
  %v3002 = vshrl.u32 %v3001, 7
  %v3003 = vsub.s32 0, %v3002
  %v3004 = vrot.slane %v2965, %v3003
  %v3006 = vadd.f32 %v2998, %v3004
  %v3007 = vadd.f32 %v2999, %v3004
  %v3008 = vpack.c.bf16 %v3007, %v3006
  %v3009 = vld [vmem:[%s12] sm:$0xf]
  %v3010 = vld [vmem:[%s12 + $0x4] sm:$0xf]
  %v3011 = vld [vmem:[%s12 + $0x8] sm:$0xf]
  %v3012 = vld [vmem:[%s12 + $0xc] sm:$0xf]
  %v3013 = vld [vmem:[%s13] sm:$0x1]
  %v3015 = vlaneseq
  %v3016 = vshrl.u32 %v3015, 7
  %v3017 = vsub.s32 0, %v3016
  %v3018 = vrot.slane %v3013, %v3017
  %v3024 = vunpack.c.l.b16 %v3009
  %v3025 = vunpack.c.l.b16 %v3010
  %v3026 = vunpack.c.l.b16 %v3011
  %v3027 = vunpack.c.l.b16 %v3012
  %v3028 = vpack.c.b16 %v3025, %v3024
  %v3029 = vpack.c.b16 %v3027, %v3026
  %v3033 = vsel %vm115, %v3008, 0
  %3035 = vmatprep.subr.bf16.mxu0 0
  %3036 = vmatpush1.bf16.msra.mxu0 %v3028
  %3037 = vmatprep.subr.bf16.mxu0 0
  %3038 = vmatpush1.bf16.msra.mxu0 %v3029
  %3039 = vmatprep.subr.bf16.mxu0 0
  %3040 = vmatpush1.bf16.msra.mxu0 0
  %3041 = vmatprep.subr.bf16.mxu0 0
  %3042 = vmatpush1.bf16.msra.mxu0 0
  %3043 = vmatprep.subr.bf16.mxu0 0
  %3044 = vmatpush1.bf16.msra.mxu0 0
  %3045 = vmatprep.subr.bf16.mxu0 0
  %3046 = vmatpush1.bf16.msra.mxu0 0
  %3047 = vmatprep.subr.bf16.mxu0 0
  %3048 = vmatpush1.bf16.msra.mxu0 0
  %3049 = vmatprep.subr.bf16.mxu0 0
  %3050 = vmatpush1.bf16.msra.mxu0 0
  %3051 = vmatprep.subr.bf16.mxu0 0
  %3052 = vmatpush1.bf16.msra.mxu0 0
  %3053 = vmatprep.subr.bf16.mxu0 0
  %3054 = vmatpush1.bf16.msra.mxu0 0
  %3055 = vmatprep.subr.bf16.mxu0 0
  %3056 = vmatpush1.bf16.msra.mxu0 0
  %3057 = vmatprep.subr.bf16.mxu0 0
  %3058 = vmatpush1.bf16.msra.mxu0 0
  %3059 = vmatprep.subr.bf16.mxu0 0
  %3060 = vmatpush1.bf16.msra.mxu0 0
  %3061 = vmatprep.subr.bf16.mxu0 0
  %3062 = vmatpush1.bf16.msra.mxu0 0
  %3063 = vmatprep.subr.bf16.mxu0 0
  %3064 = vmatpush1.bf16.msra.mxu0 0
  %3065 = vmatprep.subr.bf16.mxu0 0
  %3066 = vmatpush1.bf16.msra.mxu0 0
  %3067 = vmatprep.mubr.bf16.mxu0 0
  %3068 = vmatmul.mubr.bf16.gmra.mrb[0].mxu0 %v3033
  %v3069 = vpop.f32.mrb[0].mxu0
  %v3070 = vadd.f32 %v3018, %v3069
  %v3071 = vpop.f32.mrb[0].mxu0
  %v3072 = vpop.f32.mrb[0].mxu0
  %v3073 = vadd.f32 %v3018, %v3072
  %v3074 = vpop.f32.mrb[0].mxu0
  %3075 = vdwg.mxu0
  %3076 = vst [vmem:[%s14] sm:$0xff] %v3070
  %3077 = vst [vmem:[%s14 + $0x8] sm:$0xff] %v3073
  // Predicated region
  $region58: #{gpt2_forward.1} parent=0 // pred_check
    _
  $region59: #{gpt2_forward.1} parent=0 // pred_check_branch
    %3079 = sbr.rel (0) target = $region61
  $region60: #{gpt2_forward.1} parent=0 // pred_region
    _
  $region61: #{gpt2_forward.1} parent=0 // pred_fallthru
    _
  // Predicated region
  $region62: #{gpt2_forward.1} parent=0 // pred_check
    _
  $region63: #{gpt2_forward.1} parent=0 // pred_check_branch
    %3081 = sbr.rel (0) target = $region65
  $region64: #{gpt2_forward.1} parent=0 // pred_region
    _
  $region65: #{gpt2_forward.1} parent=0 // pred_fallthru
    _

</llo_original>
